<compile_context>
chip_gen: v7x
topology: tpu7x:2x2x1
jax: 0.10.0
libtpu: 0.0.40
codegen_flags: <defaults>
</compile_context>

<pallas_src>
import numpy as np
import jax
import jax.numpy as jnp
from jax import lax
from jax.experimental import pallas as pl
from jax.experimental.pallas import tpu as pltpu

# The PyTorch module hardcodes 512 channels and a 7x7 grid via
# nn.Linear(512, num_layers*hidden) and nn.Linear(512*49, hidden).
MAX_LENGTHS = 16          # PyTorch script uses 120; shrunk for a small test
IMG_C = 512
IMG_HW = 7
N_PATCH = IMG_HW * IMG_HW          # 49
EMBED = 64                         # embed_size (300 in the script; small here)
HIDDEN = 32                        # hidden_size (256 in the script; small here)
VOCAB = 5                          # ['<pad>', '<unk>', '<eos>', '<sta>', "'"]

HIDDEN_PAD = ((HIDDEN + 127) // 128) * 128   # per-gate lane-aligned slot (128 here)
VOCAB_PAD = 128                              # lane-dense output store
K_FEAT = N_PATCH * IMG_C                     # 25088
TK = 3584                                    # K tile for kernel 1 (25088 = 7 * 3584)


# ----------------------------------------------------------------------------
# Kernel 1 (K-tiled): h0 = mean@W_init ; featproj = flatten(feats)@W_fc2 ;
#                     fg  = featproj @ [W_ir_f|W_iz_f|W_in_f] + fused biases
# ----------------------------------------------------------------------------
def _feat_kernel(mean_ref, feats_ref, wfc2_ref, winit_ref, binit_ref, bfc2_ref,
                 wfg_ref, bfg_ref, h0_ref, fg_ref, acc_ref):
    k = pl.program_id(0)

    @pl.when(k == 0)
    def _():
        acc_ref[...] = jnp.zeros_like(acc_ref)
        # Tiny (B,512)x(512,HP) matmul for the initial hidden state.
        h0_ref[...] = (jnp.dot(mean_ref[...], winit_ref[...],
                               preferred_element_type=jnp.float32) + binit_ref[...])

    # Streamed bf16 weight, f32 accumulation of the fc2 output (featproj).
    acc_ref[...] += jnp.dot(feats_ref[...], wfc2_ref[...],
                            preferred_element_type=jnp.float32)

    @pl.when(k == pl.num_programs(0) - 1)
    def _():
        fp = acc_ref[...] + bfc2_ref[...]                         # featproj (B, H)
        # Time-invariant input-gate contribution of featproj, all 3 gates fused
        # (lane slots [r|z|n], each HP wide).  r/z fold in b_ih+b_hh; n keeps
        # only b_ih_n (b_hh_n must stay inside the r*(...) term of the cell).
        fg_ref[...] = (jnp.dot(fp, wfg_ref[...],
                               preferred_element_type=jnp.float32) + bfg_ref[...])


# ----------------------------------------------------------------------------
# Kernel 2: fused input-gate pre-phase + fori_loop recurrence + lane-dense fc
# ----------------------------------------------------------------------------
def _gru_seq_kernel(emb_ref, h0_ref, fg_ref, we_ref, wh_ref, bhn_ref,
                    wfc_ref, bfc_ref, out_ref, gi_s, hh_s):
    Bp, HP = h0_ref.shape
    T = hh_s.shape[0] // Bp

    # Pre-phase: embedding half of ALL input gates for ALL time steps in ONE
    # (T*Bp, E) x (E, 3*HP) bf16 matmul (f32 accumulation).
    gi_s[...] = jnp.dot(emb_ref[...], we_ref[...],
                        preferred_element_type=jnp.float32)

    # Hoist every time-invariant operand out of the loop.
    fg = fg_ref[...]          # featproj gate terms + fused biases   (Bp, 3*HP)
    wh = wh_ref[...]          # fused hidden weights [r|z|n]         (HP, 3*HP)
    bhn = bhn_ref[...]        # b_hh_n                               (1, HP)

    def step(t, h):
        row = pl.multiple_of(t * Bp, Bp)          # Bp % 8 == 0 -> sublane-aligned
        g = gi_s[pl.ds(row, Bp), :] + fg          # (Bp, 3*HP)
        gh = jnp.dot(h, wh, preferred_element_type=jnp.float32)   # ONE MXU push
        r = jax.nn.sigmoid(g[:, :HP] + gh[:, :HP])
        z = jax.nn.sigmoid(g[:, HP:2 * HP] + gh[:, HP:2 * HP])
        n = jnp.tanh(g[:, 2 * HP:] + r * (gh[:, 2 * HP:] + bhn))
        h_new = (1.0 - z) * n + z * h
        hh_s[pl.ds(row, Bp), :] = h_new
        return h_new

    lax.fori_loop(0, T, step, h0_ref[...], unroll=4)

    # Batched, lane-dense (width 128) output projection + single store.
    out_ref[...] = (jnp.dot(hh_s[...], wfc_ref[...],
                            preferred_element_type=jnp.float32) + bfc_ref[...])


# ----------------------------------------------------------------------------
# One-time parameter preparation (hoisted out of the traced forward)
# ----------------------------------------------------------------------------
def prepare_params(p):
    H, HP, E, V = HIDDEN, HIDDEN_PAD, EMBED, VOCAB

    w_ih, w_hh = p["w_ih"], p["w_hh"]            # (3H, E+H), (3H, H)
    b_ih, b_hh = p["b_ih"], p["b_hh"]
    wih_e, wih_f = w_ih[:, :E], w_ih[:, E:]

    def pad_gates(per_gate_t, rows):
        # place gate g's (rows_g, H) transposed weight at cols [g*HP, g*HP+H)
        out = jnp.zeros((rows, 3 * HP), jnp.float32)
        for g, m in enumerate(per_gate_t):
            out = out.at[:m.shape[0], g * HP:g * HP + H].set(m)
        return out

    we_pad = pad_gates([wih_e[g * H:(g + 1) * H].T for g in range(3)], E)   # (E,3HP)
    wf_pad = pad_gates([wih_f[g * H:(g + 1) * H].T for g in range(3)], H)   # (H,3HP)
    wh_pad = pad_gates([w_hh[g * H:(g + 1) * H].T for g in range(3)], HP)   # (HP,3HP)

    bg = jnp.zeros((1, 3 * HP), jnp.float32)
    bg = bg.at[0, 0 * HP:0 * HP + H].set(b_ih[0:H] + b_hh[0:H])
    bg = bg.at[0, 1 * HP:1 * HP + H].set(b_ih[H:2 * H] + b_hh[H:2 * H])
    bg = bg.at[0, 2 * HP:2 * HP + H].set(b_ih[2 * H:3 * H])
    bhn_pad = jnp.zeros((1, HP), jnp.float32).at[0, :H].set(b_hh[2 * H:3 * H])

    winit_pad = jnp.zeros((IMG_C, HP), jnp.float32).at[:, :H].set(p["w_init"].T)
    binit_pad = jnp.zeros((1, HP), jnp.float32).at[0, :H].set(p["b_init"])

    wfc_pad = jnp.zeros((HP, VOCAB_PAD), jnp.float32).at[:H, :V].set(p["w_fc"].T)
    bfc_pad = jnp.zeros((1, VOCAB_PAD), jnp.float32).at[0, :V].set(p["b_fc"])

    return {
        "w_init": winit_pad, "b_init": binit_pad,
        "w_fc2": p["w_fc2"].T.astype(jnp.bfloat16),   # big streamed weight, bf16
        "b_fc2": p["b_fc2"].reshape(1, H),
        "wf_gates": wf_pad, "b_gates": bg,
        "we_gates": we_pad.astype(jnp.bfloat16),
        "wh_gates": wh_pad, "b_hn": bhn_pad,
        "w_fc": wfc_pad, "b_fc": bfc_pad,
    }


# ----------------------------------------------------------------------------
# Forward wrapper (layout plumbing only)
# ----------------------------------------------------------------------------
def decoder_gru_forward(features_nchw, embeddings, length, prep):
    B = features_nchw.shape[0]
    H, HP, T = HIDDEN, HIDDEN_PAD, length
    Bp = ((B + 7) // 8) * 8                       # sublane-aligned batch

    # NCHW -> (B, 7, 7, 512); flatten for fc2, patch-mean for init_state.
    feats = jnp.transpose(features_nchw, (0, 2, 3, 1))
    feats_flat = feats.reshape(B, K_FEAT).astype(jnp.bfloat16)
    mean_feats = feats.reshape(B, N_PATCH, IMG_C).mean(axis=1)     # (B, 512) f32

    h0, fg = pl.pallas_call(
        _feat_kernel,
        grid=(K_FEAT // TK,),
        out_shape=(jax.ShapeDtypeStruct((B, HP), jnp.float32),
                   jax.ShapeDtypeStruct((B, 3 * HP), jnp.float32)),
        in_specs=[
            pl.BlockSpec((B, IMG_C), lambda k: (0, 0)),            # patch mean
            pl.BlockSpec((B, TK), lambda k: (0, k)),               # feats (bf16)
            pl.BlockSpec((TK, H), lambda k: (k, 0)),               # W_fc2.T (bf16)
            pl.BlockSpec((IMG_C, HP), lambda k: (0, 0)),           # W_init.T
            pl.BlockSpec((1, HP), lambda k: (0, 0)),               # b_init
            pl.BlockSpec((1, H), lambda k: (0, 0)),                # b_fc2
            pl.BlockSpec((H, 3 * HP), lambda k: (0, 0)),           # feat gate W
            pl.BlockSpec((1, 3 * HP), lambda k: (0, 0)),           # fused gate b
        ],
        out_specs=(pl.BlockSpec((B, HP), lambda k: (0, 0)),
                   pl.BlockSpec((B, 3 * HP), lambda k: (0, 0))),
        scratch_shapes=[pltpu.VMEM((B, H), jnp.float32)],          # featproj acc
        compiler_params=pltpu.CompilerParams(
            dimension_semantics=("arbitrary",),
            vmem_limit_bytes=64 * 1024 * 1024),
    )(mean_feats, feats_flat, prep["w_fc2"], prep["w_init"], prep["b_init"],
      prep["b_fc2"], prep["wf_gates"], prep["b_gates"])

    # Time-major embeddings, batch padded to Bp, 2-D (T*Bp, E), bf16.
    emb = jnp.transpose(embeddings[:, :T, :], (1, 0, 2))           # (T, B, E)
    emb = jnp.pad(emb, ((0, 0), (0, Bp - B), (0, 0)))
    emb2d = emb.reshape(T * Bp, EMBED).astype(jnp.bfloat16)
    h0p = jnp.pad(h0, ((0, Bp - B), (0, 0)))
    fgp = jnp.pad(fg, ((0, Bp - B), (0, 0)))

    vmem = pl.BlockSpec(memory_space=pltpu.MemorySpace.VMEM)
    out2d = pl.pallas_call(
        _gru_seq_kernel,
        out_shape=jax.ShapeDtypeStruct((T * Bp, VOCAB_PAD), jnp.float32),
        in_specs=[vmem] * 8,
        out_specs=vmem,
        scratch_shapes=[pltpu.VMEM((T * Bp, 3 * HP), jnp.float32),  # input gates
                        pltpu.VMEM((T * Bp, HP), jnp.float32)],     # h history
        compiler_params=pltpu.CompilerParams(vmem_limit_bytes=64 * 1024 * 1024),
    )(emb2d, h0p, fgp, prep["we_gates"], prep["wh_gates"], prep["b_hn"],
      prep["w_fc"], prep["b_fc"])

    out = out2d.reshape(T, Bp, VOCAB_PAD)[:, :B, :VOCAB]           # (T, B, V)
    return jnp.transpose(out, (1, 0, 2))                           # (B, T, V)


# ----------------------------------------------------------------------------
# Deterministic parameter init + pure-JAX reference
# ----------------------------------------------------------------------------
def init_params(key):
    ks = jax.random.split(key, 10)

    def nrm(k, shape, scale):
        return scale * jax.random.normal(k, shape, jnp.float32)

    return {
        "w_init": nrm(ks[0], (HIDDEN, IMG_C), 0.02),               # init_state
        "b_init": nrm(ks[1], (HIDDEN,), 0.02),
        "w_fc2":  nrm(ks[2], (HIDDEN, IMG_C * N_PATCH), 0.002),    # fc2
        "b_fc2":  nrm(ks[3], (HIDDEN,), 0.02),
        "w_ih":   nrm(ks[4], (3 * HIDDEN, EMBED + HIDDEN), 0.05),  # gru W_ih_l0
        "w_hh":   nrm(ks[5], (3 * HIDDEN, HIDDEN), 0.05),          # gru W_hh_l0
        "b_ih":   nrm(ks[6], (3 * HIDDEN,), 0.05),
        "b_hh":   nrm(ks[7], (3 * HIDDEN,), 0.05),
        "w_fc":   nrm(ks[8], (VOCAB, HIDDEN), 0.1),                # fc
        "b_fc":   nrm(ks[9], (VOCAB,), 0.1),
    }


def reference_forward(features_nchw, embeddings, length, p):
    B = features_nchw.shape[0]
    feats = jnp.transpose(features_nchw, (0, 2, 3, 1)).reshape(B, N_PATCH, IMG_C)
    h = feats.mean(axis=1) @ p["w_init"].T + p["b_init"]
    featproj = feats.reshape(B, -1) @ p["w_fc2"].T + p["b_fc2"]
    H = HIDDEN
    preds = []
    for i in range(length):
        x = jnp.concatenate([embeddings[:, i, :], featproj], axis=-1)
        gi = x @ p["w_ih"].T + p["b_ih"]
        gh = h @ p["w_hh"].T + p["b_hh"]
        r = jax.nn.sigmoid(gi[:, :H] + gh[:, :H])
        z = jax.nn.sigmoid(gi[:, H:2 * H] + gh[:, H:2 * H])
        n = jnp.tanh(gi[:, 2 * H:] + r * gh[:, 2 * H:])
        h = (1.0 - z) * n + z * h
        preds.append(h @ p["w_fc"].T + p["b_fc"])
    return jnp.stack(preds, axis=1)


if __name__ == "__main__":
    key = jax.random.PRNGKey(0)
    k_feat, k_emb, k_par = jax.random.split(key, 3)

    B = 2
    LENGTH = 8
    features = jax.random.normal(k_feat, (B, IMG_C, IMG_HW, IMG_HW), jnp.float32)
    embeddings = jax.random.normal(k_emb, (B, MAX_LENGTHS, EMBED), jnp.float32)
    params = init_params(k_par)
    prep = prepare_params(params)          # one-time weight prep (not per-call)

    out = decoder_gru_forward(features, embeddings, LENGTH, prep)
    out = jax.block_until_ready(out)
    assert out.shape == (B, LENGTH, VOCAB)

    ref = jax.block_until_ready(reference_forward(features, embeddings, LENGTH, params))
    np.testing.assert_allclose(np.asarray(out), np.asarray(ref), rtol=2e-2, atol=2e-2)

    print("KERNEL_OK")
</pallas_src>

<mosaic_0001>
module attributes {stable_mosaic.version = 11 : i64} {
  func.func @_feat_kernel(%arg0: i32, %arg1: memref<2x512xf32, #tpu.memory_space<vmem>>, %arg2: memref<2x3584xbf16, #tpu.memory_space<vmem>>, %arg3: memref<3584x32xbf16, #tpu.memory_space<vmem>>, %arg4: memref<512x128xf32, #tpu.memory_space<vmem>>, %arg5: memref<1x128xf32, #tpu.memory_space<vmem>>, %arg6: memref<1x32xf32, #tpu.memory_space<vmem>>, %arg7: memref<32x384xf32, #tpu.memory_space<vmem>>, %arg8: memref<1x384xf32, #tpu.memory_space<vmem>>, %arg9: memref<2x128xf32, #tpu.memory_space<vmem>>, %arg10: memref<2x384xf32, #tpu.memory_space<vmem>>, %arg11: memref<2x32xf32, #tpu.memory_space<vmem>>) attributes {dimension_semantics = [#tpu.dimension_semantics<arbitrary>], iteration_bounds = array<i64: 7>, scalar_prefetch = 0 : i64, scratch_operands = 1 : i64, tpu.core_type = #tpu.core_type<tc>, window_params = [{pipeline_mode = #tpu.pipeline_mode<synchronous>, transform_indices = @transform_0, window_bounds = array<i64: 2, 512>}, {transform_indices = @transform_1, window_bounds = array<i64: 2, 3584>}, {transform_indices = @transform_2, window_bounds = array<i64: 3584, 32>}, {pipeline_mode = #tpu.pipeline_mode<synchronous>, transform_indices = @transform_3, window_bounds = array<i64: 512, 128>}, {pipeline_mode = #tpu.pipeline_mode<synchronous>, transform_indices = @transform_4, window_bounds = array<i64: 1, 128>}, {pipeline_mode = #tpu.pipeline_mode<synchronous>, transform_indices = @transform_5, window_bounds = array<i64: 1, 32>}, {pipeline_mode = #tpu.pipeline_mode<synchronous>, transform_indices = @transform_6, window_bounds = array<i64: 32, 384>}, {pipeline_mode = #tpu.pipeline_mode<synchronous>, transform_indices = @transform_7, window_bounds = array<i64: 1, 384>}, {pipeline_mode = #tpu.pipeline_mode<synchronous>, transform_indices = @transform_8, window_bounds = array<i64: 2, 128>}, {pipeline_mode = #tpu.pipeline_mode<synchronous>, transform_indices = @transform_9, window_bounds = array<i64: 2, 384>}]} {
    %c0_i32 = arith.constant 0 : i32
    %0 = arith.cmpi eq, %arg0, %c0_i32 : i32
    %1 = arith.extui %0 : i1 to i32
    %c0_i32_0 = arith.constant 0 : i32
    %2 = arith.cmpi ne, %1, %c0_i32_0 : i32
    scf.if %2 {
      %cst_9 = arith.constant 0.000000e+00 : f32
      %12 = vector.broadcast %cst_9 : f32 to vector<2x32xf32>
      %c0_10 = arith.constant 0 : index
      %c0_11 = arith.constant 0 : index
      %13 = vector.load %arg11[%c0_10, %c0_11] : memref<2x32xf32, #tpu.memory_space<vmem>>, vector<2x32xf32>
      tpu.vector_store %arg11[%c0_10, %c0_11], %12 {strides = array<i32>} : memref<2x32xf32, #tpu.memory_space<vmem>>, vector<2x32xf32>,
      %c0_12 = arith.constant 0 : index
      %c0_13 = arith.constant 0 : index
      %14 = vector.load %arg1[%c0_12, %c0_13] : memref<2x512xf32, #tpu.memory_space<vmem>>, vector<2x512xf32>
      %c0_14 = arith.constant 0 : index
      %c0_15 = arith.constant 0 : index
      %15 = vector.load %arg4[%c0_14, %c0_15] : memref<512x128xf32, #tpu.memory_space<vmem>>, vector<512x128xf32>
      %cst_16 = arith.constant dense<0.000000e+00> : vector<2x128xf32>
      %16 = tpu.matmul %14, %15, %cst_16 {dimension_numbers = #tpu.dot_dimension_numbers<[1], [0], [0], [1], [0, 0, 1, 1], [], []>} : vector<2x512xf32>, vector<512x128xf32>, vector<2x128xf32> -> vector<2x128xf32>
      %c0_17 = arith.constant 0 : index
      %c0_18 = arith.constant 0 : index
      %17 = vector.load %arg5[%c0_17, %c0_18] : memref<1x128xf32, #tpu.memory_space<vmem>>, vector<1x128xf32>
      %18 = vector.broadcast %17 : vector<1x128xf32> to vector<2x128xf32>
      %19 = arith.addf %16, %18 : vector<2x128xf32>
      %c0_19 = arith.constant 0 : index
      %c0_20 = arith.constant 0 : index
      %20 = vector.load %arg9[%c0_19, %c0_20] : memref<2x128xf32, #tpu.memory_space<vmem>>, vector<2x128xf32>
      tpu.vector_store %arg9[%c0_19, %c0_20], %19 {strides = array<i32>} : memref<2x128xf32, #tpu.memory_space<vmem>>, vector<2x128xf32>,
    } else {
    }
    %c0 = arith.constant 0 : index
    %c0_1 = arith.constant 0 : index
    %3 = vector.load %arg11[%c0, %c0_1] : memref<2x32xf32, #tpu.memory_space<vmem>>, vector<2x32xf32>
    %c0_2 = arith.constant 0 : index
    %c0_3 = arith.constant 0 : index
    %4 = vector.load %arg2[%c0_2, %c0_3] : memref<2x3584xbf16, #tpu.memory_space<vmem>>, vector<2x3584xbf16>
    %c0_4 = arith.constant 0 : index
    %c0_5 = arith.constant 0 : index
    %5 = vector.load %arg3[%c0_4, %c0_5] : memref<3584x32xbf16, #tpu.memory_space<vmem>>, vector<3584x32xbf16>
    %cst = arith.constant dense<0.000000e+00> : vector<2x32xf32>
    %6 = tpu.matmul %4, %5, %cst {dimension_numbers = #tpu.dot_dimension_numbers<[1], [0], [0], [1], [0, 0, 1, 1], [], []>} : vector<2x3584xbf16>, vector<3584x32xbf16>, vector<2x32xf32> -> vector<2x32xf32>
    %7 = arith.addf %3, %6 : vector<2x32xf32>
    %c0_6 = arith.constant 0 : index
    %c0_7 = arith.constant 0 : index
    %8 = vector.load %arg11[%c0_6, %c0_7] : memref<2x32xf32, #tpu.memory_space<vmem>>, vector<2x32xf32>
    tpu.vector_store %arg11[%c0_6, %c0_7], %7 {strides = array<i32>} : memref<2x32xf32, #tpu.memory_space<vmem>>, vector<2x32xf32>,
    %c6_i32 = arith.constant 6 : i32
    %9 = arith.cmpi eq, %arg0, %c6_i32 : i32
    %10 = arith.extui %9 : i1 to i32
    %c0_i32_8 = arith.constant 0 : i32
    %11 = arith.cmpi ne, %10, %c0_i32_8 : i32
    scf.if %11 {
      %c0_9 = arith.constant 0 : index
      %c0_10 = arith.constant 0 : index
      %12 = vector.load %arg11[%c0_9, %c0_10] : memref<2x32xf32, #tpu.memory_space<vmem>>, vector<2x32xf32>
      %c0_11 = arith.constant 0 : index
      %c0_12 = arith.constant 0 : index
      %13 = vector.load %arg6[%c0_11, %c0_12] : memref<1x32xf32, #tpu.memory_space<vmem>>, vector<1x32xf32>
      %14 = vector.broadcast %13 : vector<1x32xf32> to vector<2x32xf32>
      %15 = arith.addf %12, %14 : vector<2x32xf32>
      %c0_13 = arith.constant 0 : index
      %c0_14 = arith.constant 0 : index
      %16 = vector.load %arg7[%c0_13, %c0_14] : memref<32x384xf32, #tpu.memory_space<vmem>>, vector<32x384xf32>
      %cst_15 = arith.constant dense<0.000000e+00> : vector<2x384xf32>
      %17 = tpu.matmul %15, %16, %cst_15 {dimension_numbers = #tpu.dot_dimension_numbers<[1], [0], [0], [1], [0, 0, 1, 1], [], []>} : vector<2x32xf32>, vector<32x384xf32>, vector<2x384xf32> -> vector<2x384xf32>
      %c0_16 = arith.constant 0 : index
      %c0_17 = arith.constant 0 : index
      %18 = vector.load %arg8[%c0_16, %c0_17] : memref<1x384xf32, #tpu.memory_space<vmem>>, vector<1x384xf32>
      %19 = vector.broadcast %18 : vector<1x384xf32> to vector<2x384xf32>
      %20 = arith.addf %17, %19 : vector<2x384xf32>
      %c0_18 = arith.constant 0 : index
      %c0_19 = arith.constant 0 : index
      %21 = vector.load %arg10[%c0_18, %c0_19] : memref<2x384xf32, #tpu.memory_space<vmem>>, vector<2x384xf32>
      tpu.vector_store %arg10[%c0_18, %c0_19], %20 {strides = array<i32>} : memref<2x384xf32, #tpu.memory_space<vmem>>, vector<2x384xf32>,
    } else {
    }
    return
  }
  func.func @transform_0(%arg0: i32) -> (i32, i32) {
    %c0_i32 = arith.constant 0 : i32
    %c0_i32_0 = arith.constant 0 : i32
    %c0_i32_1 = arith.constant 0 : i32
    return %c0_i32, %c0_i32_0 : i32, i32
  }
  func.func @transform_1(%arg0: i32) -> (i32, i32) {
    %c0_i32 = arith.constant 0 : i32
    %c0_i32_0 = arith.constant 0 : i32
    return %c0_i32, %arg0 : i32, i32
  }
  func.func @transform_2(%arg0: i32) -> (i32, i32) {
    %c0_i32 = arith.constant 0 : i32
    %c0_i32_0 = arith.constant 0 : i32
    return %arg0, %c0_i32 : i32, i32
  }
  func.func @transform_3(%arg0: i32) -> (i32, i32) {
    %c0_i32 = arith.constant 0 : i32
    %c0_i32_0 = arith.constant 0 : i32
    %c0_i32_1 = arith.constant 0 : i32
    return %c0_i32, %c0_i32_0 : i32, i32
  }
  func.func @transform_4(%arg0: i32) -> (i32, i32) {
    %c0_i32 = arith.constant 0 : i32
    %c0_i32_0 = arith.constant 0 : i32
    %c0_i32_1 = arith.constant 0 : i32
    return %c0_i32, %c0_i32_0 : i32, i32
  }
  func.func @transform_5(%arg0: i32) -> (i32, i32) {
    %c0_i32 = arith.constant 0 : i32
    %c0_i32_0 = arith.constant 0 : i32
    %c0_i32_1 = arith.constant 0 : i32
    return %c0_i32, %c0_i32_0 : i32, i32
  }
  func.func @transform_6(%arg0: i32) -> (i32, i32) {
    %c0_i32 = arith.constant 0 : i32
    %c0_i32_0 = arith.constant 0 : i32
    %c0_i32_1 = arith.constant 0 : i32
    return %c0_i32, %c0_i32_0 : i32, i32
  }
  func.func @transform_7(%arg0: i32) -> (i32, i32) {
    %c0_i32 = arith.constant 0 : i32
    %c0_i32_0 = arith.constant 0 : i32
    %c0_i32_1 = arith.constant 0 : i32
    return %c0_i32, %c0_i32_0 : i32, i32
  }
  func.func @transform_8(%arg0: i32) -> (i32, i32) {
    %c0_i32 = arith.constant 0 : i32
    %c0_i32_0 = arith.constant 0 : i32
    %c0_i32_1 = arith.constant 0 : i32
    return %c0_i32, %c0_i32_0 : i32, i32
  }
  func.func @transform_9(%arg0: i32) -> (i32, i32) {
    %c0_i32 = arith.constant 0 : i32
    %c0_i32_0 = arith.constant 0 : i32
    %c0_i32_1 = arith.constant 0 : i32
    return %c0_i32, %c0_i32_0 : i32, i32
  }
}

</mosaic_0001>

<llo_original>
// kernel: tpu_custom_call.1
$region0: #{tpu_custom_call.1}
  #allocation0 [shape = 'u32[]', space=smem, size = 0x4, offset = 0x4, fixed_abs, tag = 'smem constant byte address 0x4 - core index']
  #allocation1 [shape = 'u32[144,128]{1,0:T(1,128)}', space=vmem, size = 0x12000, scoped, tag = 'internal scratch']
  #allocation2 [shape = 'f32[2,32]{1,0:T(2,128)}', space=vmem, size = 0x400, scoped, tag = 'scratch operand']
  %s0 = inlined_call_operand.hbm [shape: f32[2,512], index: 0, kind: input, shape index: {}]
  %s1 = inlined_call_operand.hbm [shape: bf16[2,25088], index: 1, kind: input, shape index: {}]
  %s2 = inlined_call_operand.hbm [shape: bf16[25088,32], index: 2, kind: input, shape index: {}]
  %s3 = inlined_call_operand.hbm [shape: f32[512,128], index: 3, kind: input, shape index: {}]
  %s4 = inlined_call_operand.hbm [shape: f32[1,128], index: 4, kind: input, shape index: {}]
  %s5 = inlined_call_operand.hbm [shape: f32[1,32], index: 5, kind: input, shape index: {}]
  %s6 = inlined_call_operand.hbm [shape: f32[32,384], index: 6, kind: input, shape index: {}]
  %s7 = inlined_call_operand.hbm [shape: f32[1,384], index: 7, kind: input, shape index: {}]
  %s8 = inlined_call_operand.hbm [shape: f32[2,128], index: 8, kind: output, shape index: {0}]
  %s9 = inlined_call_operand.hbm [shape: f32[2,384], index: 9, kind: output, shape index: {1}]
  %10 = xla_tuple %s8, %s9
  %s11 = sld [smem:[#allocation0]]
  $region113: #{tpu_custom_call.1} parent=0
    _
  %s13 = ssub.s32 1, %s11
  %s14 = scalar_select 0, %s13, %s11
  $region1: #{tpu_custom_call.1} parent=0
    #allocation3 [shape = 'u8[4096]{0}', space=vmem, size = 0x1000, scoped, tag = 'input window, operand 0, single buffered']
    #allocation4 [shape = 's32[2]{0}', space=sflag, size = 0x8, scoped, tag = 'scoped memory for tpu_custom_call.1']
    #allocation5 [shape = 's32[2]{0}', space=sflag, size = 0x8, scoped, tag = 'scoped memory for tpu_custom_call.1']
    #allocation6 [shape = 'u8[28672]{0}', space=vmem, size = 0x7000, scoped, tag = 'input window, operand 1']
    #allocation7 [shape = 's32[2]{0}', space=sflag, size = 0x8, scoped, tag = 'scoped memory for tpu_custom_call.1']
    #allocation8 [shape = 'u8[1835008]{0}', space=vmem, size = 0x1c0000, scoped, tag = 'input window, operand 2']
    #allocation9 [shape = 'u8[262144]{0}', space=vmem, size = 0x40000, scoped, tag = 'input window, operand 3, single buffered']
    #allocation10 [shape = 's32[1]{0}', space=sflag, size = 0x4, scoped, tag = 'scoped memory for tpu_custom_call.1']
    #allocation11 [shape = 'u8[512]{0}', space=vmem, size = 0x400, scoped, tag = 'input window, operand 4, single buffered']
    #allocation12 [shape = 'u8[512]{0}', space=vmem, size = 0x400, scoped, tag = 'input window, operand 5, single buffered']
    #allocation13 [shape = 's32[1]{0}', space=sflag, size = 0x4, scoped, tag = 'scoped memory for tpu_custom_call.1']
    #allocation14 [shape = 'u8[49152]{0}', space=vmem, size = 0xc000, scoped, tag = 'input window, operand 6, single buffered']
    #allocation15 [shape = 'u8[1536]{0}', space=vmem, size = 0x800, scoped, tag = 'input window, operand 7, single buffered']
    #allocation16 [shape = 's32[1]{0}', space=sflag, size = 0x4, scoped, tag = 'scoped memory for tpu_custom_call.1']
    #allocation17 [shape = 'u8[1024]{0}', space=vmem, size = 0x400, scoped, tag = 'output window, operand 0, single buffered']
    #allocation18 [shape = 'u8[3072]{0}', space=vmem, size = 0xc00, scoped, tag = 'output window, operand 1, single buffered']
    #allocation19 [shape = 's32[1]{0}', space=sflag, size = 0x4, scoped, tag = 'scoped memory for tpu_custom_call.1']
    %15 = vsyncpa [#allocation4], 0
    %16 = vsyncpa [#allocation7], 0
    %s17 = scalar_lea.sflag [#allocation7], 1
    %18 = vsyncpa %s17, 0
    %19 = vsyncpa [#allocation10], 0
    %20 = vsyncpa [#allocation13], 0
    %21 = vsyncpa [#allocation16], 0
    %22 = vsyncpa [#allocation5], 0
    %23 = vsyncpa [#allocation19], 0
    loop: start=0, step=1, limit=9
    $region2: #{tpu_custom_call.1} parent=1 // loop_pre_header
      _
    $region3: #{tpu_custom_call.1} parent=1 // loop_header
      %s25 = sphi 0, %s29
      %p26 = scmp.ge.s32.totalorder %s25, 9
      %s33 = sphi 0, %s33
      %s35 = sphi 0, %s33
      %s36 = sphi 0, %s35
      %s50 = sphi 0, %s36
      %s56 = sphi 0, %s58
      %s59 = sphi 0, %s56
      %s60 = sphi 0, %s59
      %s76 = sphi 0, %s60
      %s82 = sphi 0, %s84
      %s85 = sphi 0, %s82
      %s86 = sphi 0, %s85
      %s102 = sphi 0, %s86
      %s106 = sphi 0, %s106
      %s108 = sphi 0, %s106
      %s109 = sphi 0, %s108
      %s123 = sphi 0, %s109
      %s127 = sphi 0, %s127
      %s129 = sphi 0, %s127
      %s130 = sphi 0, %s129
      %s144 = sphi 0, %s130
      %s148 = sphi 0, %s148
      %s150 = sphi 0, %s148
      %s151 = sphi 0, %s150
      %s165 = sphi 0, %s151
      %s169 = sphi 0, %s169
      %s171 = sphi 0, %s169
      %s172 = sphi 0, %s171
      %s186 = sphi 0, %s172
      %s190 = sphi 0, %s190
      %s192 = sphi 0, %s190
      %s193 = sphi 0, %s192
      %s207 = sphi 0, %s193
      %s211 = sphi 0, %s211
      %s213 = sphi 0, %s211
      %s214 = sphi 0, %s213
      %s228 = sphi 0, %s214
      %s232 = sphi 0, %s232
      %s234 = sphi 0, %s232
      %s235 = sphi 0, %s234
      %s249 = sphi 0, %s235
    $region4: #{tpu_custom_call.1} parent=1 // loop_header_branch
      %28 = sbr.rel (%p26) target = $region8
    $region5: #{tpu_custom_call.1} parent=1 // loop_body
      %s30 = ssub.s32 %s25, 1
      %s31 = ssub.s32 %s25, 2
      %s32 = sadd.s32 %s25, 1
      %s34 = sadd.s32 %s33, 1
      %p37 = scmp.eq.s32.totalorder %s25, 6
      %p38 = scmp.ne.s32.totalorder %s33, %s35
      %p39 = scmp.eq.s32.totalorder %s25, 0
      %p40 = por %p38, %p39
      %p41 = scmp.ne.s32.totalorder %s33, %s35
      %p42 = scmp.eq.s32.totalorder %s30, 6
      %p43 = por %p41, %p42
      %p44 = scmp.ne.s32.totalorder %s35, %s36
      %p45 = scmp.eq.s32.totalorder %s30, 0
      %p46 = por %p44, %p45
      %p47 = scmp.ne.s32.totalorder %s35, %s36
      %p48 = scmp.eq.s32.totalorder %s31, 6
      %p49 = por %p47, %p48
      %p51 = scmp.ne.s32.totalorder %s36, %s50
      %p52 = scmp.eq.s32.totalorder %s31, 0
      %p53 = por %p51, %p52
      %s54 = ssub.s32 %s25, %s32
      %p55 = scmp.eq.s32.totalorder %s54, 0
      %s57 = sadd.s32 %s56, 1
      %s58 = scalar_select %p55, %s56, %s57
      %p61 = pneg %p55
      %p62 = scmp.eq.s32.totalorder %s25, 6
      %p63 = por %p61, %p62
      %p64 = scmp.ne.s32.totalorder %s56, %s59
      %p65 = scmp.eq.s32.totalorder %s25, 0
      %p66 = por %p64, %p65
      %p67 = scmp.ne.s32.totalorder %s56, %s59
      %p68 = scmp.eq.s32.totalorder %s30, 6
      %p69 = por %p67, %p68
      %p70 = scmp.ne.s32.totalorder %s59, %s60
      %p71 = scmp.eq.s32.totalorder %s30, 0
      %p72 = por %p70, %p71
      %p73 = scmp.ne.s32.totalorder %s59, %s60
      %p74 = scmp.eq.s32.totalorder %s31, 6
      %p75 = por %p73, %p74
      %p77 = scmp.ne.s32.totalorder %s60, %s76
      %p78 = scmp.eq.s32.totalorder %s31, 0
      %p79 = por %p77, %p78
      %s80 = ssub.s32 %s25, %s32
      %p81 = scmp.eq.s32.totalorder %s80, 0
      %s83 = sadd.s32 %s82, 1
      %s84 = scalar_select %p81, %s82, %s83
      %p87 = pneg %p81
      %p88 = scmp.eq.s32.totalorder %s25, 6
      %p89 = por %p87, %p88
      %p90 = scmp.ne.s32.totalorder %s82, %s85
      %p91 = scmp.eq.s32.totalorder %s25, 0
      %p92 = por %p90, %p91
      %p93 = scmp.ne.s32.totalorder %s82, %s85
      %p94 = scmp.eq.s32.totalorder %s30, 6
      %p95 = por %p93, %p94
      %p96 = scmp.ne.s32.totalorder %s85, %s86
      %p97 = scmp.eq.s32.totalorder %s30, 0
      %p98 = por %p96, %p97
      %p99 = scmp.ne.s32.totalorder %s85, %s86
      %p100 = scmp.eq.s32.totalorder %s31, 6
      %p101 = por %p99, %p100
      %p103 = scmp.ne.s32.totalorder %s86, %s102
      %p104 = scmp.eq.s32.totalorder %s31, 0
      %p105 = por %p103, %p104
      %s107 = sadd.s32 %s106, 1
      %p110 = scmp.eq.s32.totalorder %s25, 6
      %p111 = scmp.ne.s32.totalorder %s106, %s108
      %p112 = scmp.eq.s32.totalorder %s25, 0
      %p113 = por %p111, %p112
      %p114 = scmp.ne.s32.totalorder %s106, %s108
      %p115 = scmp.eq.s32.totalorder %s30, 6
      %p116 = por %p114, %p115
      %p117 = scmp.ne.s32.totalorder %s108, %s109
      %p118 = scmp.eq.s32.totalorder %s30, 0
      %p119 = por %p117, %p118
      %p120 = scmp.ne.s32.totalorder %s108, %s109
      %p121 = scmp.eq.s32.totalorder %s31, 6
      %p122 = por %p120, %p121
      %p124 = scmp.ne.s32.totalorder %s109, %s123
      %p125 = scmp.eq.s32.totalorder %s31, 0
      %p126 = por %p124, %p125
      %s128 = sadd.s32 %s127, 1
      %p131 = scmp.eq.s32.totalorder %s25, 6
      %p132 = scmp.ne.s32.totalorder %s127, %s129
      %p133 = scmp.eq.s32.totalorder %s25, 0
      %p134 = por %p132, %p133
      %p135 = scmp.ne.s32.totalorder %s127, %s129
      %p136 = scmp.eq.s32.totalorder %s30, 6
      %p137 = por %p135, %p136
      %p138 = scmp.ne.s32.totalorder %s129, %s130
      %p139 = scmp.eq.s32.totalorder %s30, 0
      %p140 = por %p138, %p139
      %p141 = scmp.ne.s32.totalorder %s129, %s130
      %p142 = scmp.eq.s32.totalorder %s31, 6
      %p143 = por %p141, %p142
      %p145 = scmp.ne.s32.totalorder %s130, %s144
      %p146 = scmp.eq.s32.totalorder %s31, 0
      %p147 = por %p145, %p146
      %s149 = sadd.s32 %s148, 1
      %p152 = scmp.eq.s32.totalorder %s25, 6
      %p153 = scmp.ne.s32.totalorder %s148, %s150
      %p154 = scmp.eq.s32.totalorder %s25, 0
      %p155 = por %p153, %p154
      %p156 = scmp.ne.s32.totalorder %s148, %s150
      %p157 = scmp.eq.s32.totalorder %s30, 6
      %p158 = por %p156, %p157
      %p159 = scmp.ne.s32.totalorder %s150, %s151
      %p160 = scmp.eq.s32.totalorder %s30, 0
      %p161 = por %p159, %p160
      %p162 = scmp.ne.s32.totalorder %s150, %s151
      %p163 = scmp.eq.s32.totalorder %s31, 6
      %p164 = por %p162, %p163
      %p166 = scmp.ne.s32.totalorder %s151, %s165
      %p167 = scmp.eq.s32.totalorder %s31, 0
      %p168 = por %p166, %p167
      %s170 = sadd.s32 %s169, 1
      %p173 = scmp.eq.s32.totalorder %s25, 6
      %p174 = scmp.ne.s32.totalorder %s169, %s171
      %p175 = scmp.eq.s32.totalorder %s25, 0
      %p176 = por %p174, %p175
      %p177 = scmp.ne.s32.totalorder %s169, %s171
      %p178 = scmp.eq.s32.totalorder %s30, 6
      %p179 = por %p177, %p178
      %p180 = scmp.ne.s32.totalorder %s171, %s172
      %p181 = scmp.eq.s32.totalorder %s30, 0
      %p182 = por %p180, %p181
      %p183 = scmp.ne.s32.totalorder %s171, %s172
      %p184 = scmp.eq.s32.totalorder %s31, 6
      %p185 = por %p183, %p184
      %p187 = scmp.ne.s32.totalorder %s172, %s186
      %p188 = scmp.eq.s32.totalorder %s31, 0
      %p189 = por %p187, %p188
      %s191 = sadd.s32 %s190, 1
      %p194 = scmp.eq.s32.totalorder %s25, 6
      %p195 = scmp.ne.s32.totalorder %s190, %s192
      %p196 = scmp.eq.s32.totalorder %s25, 0
      %p197 = por %p195, %p196
      %p198 = scmp.ne.s32.totalorder %s190, %s192
      %p199 = scmp.eq.s32.totalorder %s30, 6
      %p200 = por %p198, %p199
      %p201 = scmp.ne.s32.totalorder %s192, %s193
      %p202 = scmp.eq.s32.totalorder %s30, 0
      %p203 = por %p201, %p202
      %p204 = scmp.ne.s32.totalorder %s192, %s193
      %p205 = scmp.eq.s32.totalorder %s31, 6
      %p206 = por %p204, %p205
      %p208 = scmp.ne.s32.totalorder %s193, %s207
      %p209 = scmp.eq.s32.totalorder %s31, 0
      %p210 = por %p208, %p209
      %s212 = sadd.s32 %s211, 1
      %p215 = scmp.eq.s32.totalorder %s25, 6
      %p216 = scmp.ne.s32.totalorder %s211, %s213
      %p217 = scmp.eq.s32.totalorder %s25, 0
      %p218 = por %p216, %p217
      %p219 = scmp.ne.s32.totalorder %s211, %s213
      %p220 = scmp.eq.s32.totalorder %s30, 6
      %p221 = por %p219, %p220
      %p222 = scmp.ne.s32.totalorder %s213, %s214
      %p223 = scmp.eq.s32.totalorder %s30, 0
      %p224 = por %p222, %p223
      %p225 = scmp.ne.s32.totalorder %s213, %s214
      %p226 = scmp.eq.s32.totalorder %s31, 6
      %p227 = por %p225, %p226
      %p229 = scmp.ne.s32.totalorder %s214, %s228
      %p230 = scmp.eq.s32.totalorder %s31, 0
      %p231 = por %p229, %p230
      %s233 = sadd.s32 %s232, 1
      %p236 = scmp.eq.s32.totalorder %s25, 6
      %p237 = scmp.ne.s32.totalorder %s232, %s234
      %p238 = scmp.eq.s32.totalorder %s25, 0
      %p239 = por %p237, %p238
      %p240 = scmp.ne.s32.totalorder %s232, %s234
      %p241 = scmp.eq.s32.totalorder %s30, 6
      %p242 = por %p240, %p241
      %p243 = scmp.ne.s32.totalorder %s234, %s235
      %p244 = scmp.eq.s32.totalorder %s30, 0
      %p245 = por %p243, %p244
      %p246 = scmp.ne.s32.totalorder %s234, %s235
      %p247 = scmp.eq.s32.totalorder %s31, 6
      %p248 = por %p246, %p247
      %p250 = scmp.ne.s32.totalorder %s235, %s249
      %p251 = scmp.eq.s32.totalorder %s31, 0
      %p252 = por %p250, %p251
      %p253 = scmp.le.s32.totalorder 1, %s25
      %p254 = scmp.lt.s32.totalorder %s25, 8
      %p255 = pnand %p253, %p254
      %p256 = pneg %p255
      // Predicated region
      $region9: #{tpu_custom_call.1} parent=5 // pred_check
        _
      $region10: #{tpu_custom_call.1} parent=5 // pred_check_branch
        %258 = sbr.rel (%p255) target = $region12
      $region11: #{tpu_custom_call.1} parent=5 // pred_region
        %s259 = ssub.s32 %s25, 1
        // Predicated region
        $region13: #{tpu_custom_call.1} parent=11 // pred_check
          %p260 = pneg %p46
        $region14: #{tpu_custom_call.1} parent=11 // pred_check_branch
          %262 = sbr.rel (%p260) target = $region16
        $region15: #{tpu_custom_call.1} parent=11 // pred_region
          %s264 = ssub.s32 128, 128
          %265 = vsyncadd [#allocation4], %s264
          %s267 = sshll.u32 [#allocation3], 4
          %s268 = int_to_ptr.vmem [resolvable:$true] %s267
          %270 = dma.hbm_to_vmem [thread:$0]  %s0, 128, %s268, [#allocation4]
        $region16: #{tpu_custom_call.1} parent=11 // pred_fallthru
          _
        // Predicated region
        $region17: #{tpu_custom_call.1} parent=11 // pred_check
          %p271 = pneg %p119
        $region18: #{tpu_custom_call.1} parent=11 // pred_check_branch
          %273 = sbr.rel (%p271) target = $region20
        $region19: #{tpu_custom_call.1} parent=11 // pred_region
          %s275 = ssub.s32 8192, 8192
          %276 = vsyncadd [#allocation10], %s275
          %s277 = sshll.u32 [#allocation9], 4
          %s278 = int_to_ptr.vmem [resolvable:$true] %s277
          %283 = dma.hbm_to_vmem [thread:$0]  %s3, 8192, %s278, [#allocation10], 128, 128, 8
        $region20: #{tpu_custom_call.1} parent=11 // pred_fallthru
          _
        // Predicated region
        $region21: #{tpu_custom_call.1} parent=11 // pred_check
          %p284 = pneg %p140
        $region22: #{tpu_custom_call.1} parent=11 // pred_check_branch
          %286 = sbr.rel (%p284) target = $region24
        $region23: #{tpu_custom_call.1} parent=11 // pred_region
          %s288 = ssub.s32 16, 16
          %289 = vsyncadd [#allocation10], %s288
          %s291 = sshll.u32 [#allocation11], 4
          %s292 = int_to_ptr.vmem [resolvable:$true] %s291
          %294 = dma.hbm_to_vmem [thread:$0]  %s4, 16, %s292, [#allocation10]
        $region24: #{tpu_custom_call.1} parent=11 // pred_fallthru
          _
        // Predicated region
        $region25: #{tpu_custom_call.1} parent=11 // pred_check
          %p295 = pneg %p161
        $region26: #{tpu_custom_call.1} parent=11 // pred_check_branch
          %297 = sbr.rel (%p295) target = $region28
        $region27: #{tpu_custom_call.1} parent=11 // pred_region
          %s299 = ssub.s32 16, 16
          %300 = vsyncadd [#allocation13], %s299
          %s302 = sshll.u32 [#allocation12], 4
          %s303 = int_to_ptr.vmem [resolvable:$true] %s302
          %305 = dma.hbm_to_vmem [thread:$0]  %s5, 16, %s303, [#allocation13]
        $region28: #{tpu_custom_call.1} parent=11 // pred_fallthru
          _
        // Predicated region
        $region29: #{tpu_custom_call.1} parent=11 // pred_check
          %p306 = pneg %p182
        $region30: #{tpu_custom_call.1} parent=11 // pred_check_branch
          %308 = sbr.rel (%p306) target = $region32
        $region31: #{tpu_custom_call.1} parent=11 // pred_region
          %s310 = ssub.s32 1536, 1536
          %311 = vsyncadd [#allocation13], %s310
          %s312 = sshll.u32 [#allocation14], 4
          %s313 = int_to_ptr.vmem [resolvable:$true] %s312
          %318 = dma.hbm_to_vmem [thread:$0]  %s6, 1536, %s313, [#allocation13], 384, 384, 24
        $region32: #{tpu_custom_call.1} parent=11 // pred_fallthru
          _
        // Predicated region
        $region33: #{tpu_custom_call.1} parent=11 // pred_check
          %p319 = pneg %p203
        $region34: #{tpu_custom_call.1} parent=11 // pred_check_branch
          %321 = sbr.rel (%p319) target = $region36
        $region35: #{tpu_custom_call.1} parent=11 // pred_region
          %s323 = ssub.s32 48, 48
          %324 = vsyncadd [#allocation16], %s323
          %s326 = sshll.u32 [#allocation15], 4
          %s327 = int_to_ptr.vmem [resolvable:$true] %s326
          %329 = dma.hbm_to_vmem [thread:$0]  %s7, 48, %s327, [#allocation16]
        $region36: #{tpu_custom_call.1} parent=11 // pred_fallthru
          _
      $region12: #{tpu_custom_call.1} parent=5 // pred_fallthru
        _
      %p330 = scmp.lt.s32.totalorder %s25, 7
      // Predicated region
      $region37: #{tpu_custom_call.1} parent=5 // pred_check
        %p331 = pneg %p330
      $region38: #{tpu_custom_call.1} parent=5 // pred_check_branch
        %333 = sbr.rel (%p331) target = $region40
      $region39: #{tpu_custom_call.1} parent=5 // pred_region
        // Predicated region
        $region41: #{tpu_custom_call.1} parent=39 // pred_check
          %p334 = pneg %p66
        $region42: #{tpu_custom_call.1} parent=39 // pred_check_branch
          %336 = sbr.rel (%p334) target = $region44
        $region43: #{tpu_custom_call.1} parent=39 // pred_region
          %s337 = sand.u32 %s25, 1
          %s338 = scalar_lea.sflag [#allocation7], %s337
          %s339 = sand.u32 %s56, 1
          %s340 = smul.addr %s339, 28
          %s341 = scalar_lea.vmem [#allocation6], %s340
          %s342 = smul.u32 28, %s25
          %s344 = ssub.s32 448, 448
          %345 = vsyncadd %s338, %s344
          %s346 = smul.addr %s342, 16
          %s347 = scalar_lea.hbm %s1, %s346
          %s349 = sshll.u32 %s341, 4
          %s350 = int_to_ptr.vmem [resolvable:$true] %s349
          %352 = dma.hbm_to_vmem [thread:$0]  %s347, 448, %s350, %s338
        $region44: #{tpu_custom_call.1} parent=39 // pred_fallthru
          _
        // Predicated region
        $region45: #{tpu_custom_call.1} parent=39 // pred_check
          %p353 = pneg %p92
        $region46: #{tpu_custom_call.1} parent=39 // pred_check_branch
          %355 = sbr.rel (%p353) target = $region48
        $region47: #{tpu_custom_call.1} parent=39 // pred_region
          %s356 = sand.u32 %s25, 1
          %s357 = scalar_lea.sflag [#allocation7], %s356
          %s358 = sand.u32 %s82, 1
          %s359 = smul.addr %s358, 1792
          %s360 = scalar_lea.vmem [#allocation8], %s359
          %s361 = smul.u32 448, %s25
          %s363 = ssub.s32 28672, 28672
          %364 = vsyncadd %s357, %s363
          %s365 = smul.addr %s361, 64
          %s366 = scalar_lea.hbm %s2, %s365
          %s367 = sshll.u32 %s360, 4
          %s368 = int_to_ptr.vmem [resolvable:$true] %s367
          %373 = dma.hbm_to_vmem [thread:$0]  %s366, 28672, %s368, %s357, 64, 64, 4
        $region48: #{tpu_custom_call.1} parent=39 // pred_fallthru
          _
      $region40: #{tpu_custom_call.1} parent=5 // pred_fallthru
        _
      %p374 = scmp.le.s32.totalorder 1, %s25
      %p375 = scmp.lt.s32.totalorder %s25, 8
      %p376 = pnand %p374, %p375
      %p377 = pneg %p376
      // Predicated region
      $region49: #{tpu_custom_call.1} parent=5 // pred_check
        _
      $region50: #{tpu_custom_call.1} parent=5 // pred_check_branch
        %379 = sbr.rel (%p376) target = $region52
      $region51: #{tpu_custom_call.1} parent=5 // pred_region
        %s380 = ssub.s32 %s25, 1
        // Predicated region
        $region53: #{tpu_custom_call.1} parent=51 // pred_check
          %p381 = pneg %p46
        $region54: #{tpu_custom_call.1} parent=51 // pred_check_branch
          %383 = sbr.rel (%p381) target = $region56
        $region55: #{tpu_custom_call.1} parent=51 // pred_region
          %384 = dma.done [#allocation4], 128
        $region56: #{tpu_custom_call.1} parent=51 // pred_fallthru
          _
        %s385 = sand.u32 %s30, 1
        %s386 = scalar_lea.sflag [#allocation7], %s385
        %s387 = sand.u32 %s59, 1
        %s388 = smul.addr %s387, 28
        %s389 = scalar_lea.vmem [#allocation6], %s388
        // Predicated region
        $region57: #{tpu_custom_call.1} parent=51 // pred_check
          %p390 = pneg %p72
        $region58: #{tpu_custom_call.1} parent=51 // pred_check_branch
          %392 = sbr.rel (%p390) target = $region60
        $region59: #{tpu_custom_call.1} parent=51 // pred_region
          %393 = dma.done %s386, 448
        $region60: #{tpu_custom_call.1} parent=51 // pred_fallthru
          _
        %s394 = sand.u32 %s30, 1
        %s395 = scalar_lea.sflag [#allocation7], %s394
        %s396 = sand.u32 %s85, 1
        %s397 = smul.addr %s396, 1792
        %s398 = scalar_lea.vmem [#allocation8], %s397
        // Predicated region
        $region61: #{tpu_custom_call.1} parent=51 // pred_check
          %p399 = pneg %p98
        $region62: #{tpu_custom_call.1} parent=51 // pred_check_branch
          %401 = sbr.rel (%p399) target = $region64
        $region63: #{tpu_custom_call.1} parent=51 // pred_region
          %402 = dma.done %s395, 28672
        $region64: #{tpu_custom_call.1} parent=51 // pred_fallthru
          _
        // Predicated region
        $region65: #{tpu_custom_call.1} parent=51 // pred_check
          %p403 = pneg %p119
        $region66: #{tpu_custom_call.1} parent=51 // pred_check_branch
          %405 = sbr.rel (%p403) target = $region68
        $region67: #{tpu_custom_call.1} parent=51 // pred_region
          %406 = dma.done [#allocation10], 8192
        $region68: #{tpu_custom_call.1} parent=51 // pred_fallthru
          _
        // Predicated region
        $region69: #{tpu_custom_call.1} parent=51 // pred_check
          %p407 = pneg %p140
        $region70: #{tpu_custom_call.1} parent=51 // pred_check_branch
          %409 = sbr.rel (%p407) target = $region72
        $region71: #{tpu_custom_call.1} parent=51 // pred_region
          %410 = dma.done [#allocation10], 16
        $region72: #{tpu_custom_call.1} parent=51 // pred_fallthru
          _
        // Predicated region
        $region73: #{tpu_custom_call.1} parent=51 // pred_check
          %p411 = pneg %p161
        $region74: #{tpu_custom_call.1} parent=51 // pred_check_branch
          %413 = sbr.rel (%p411) target = $region76
        $region75: #{tpu_custom_call.1} parent=51 // pred_region
          %414 = dma.done [#allocation13], 16
        $region76: #{tpu_custom_call.1} parent=51 // pred_fallthru
          _
        // Predicated region
        $region77: #{tpu_custom_call.1} parent=51 // pred_check
          %p415 = pneg %p182
        $region78: #{tpu_custom_call.1} parent=51 // pred_check_branch
          %417 = sbr.rel (%p415) target = $region80
        $region79: #{tpu_custom_call.1} parent=51 // pred_region
          %418 = dma.done [#allocation13], 1536
        $region80: #{tpu_custom_call.1} parent=51 // pred_fallthru
          _
        // Predicated region
        $region81: #{tpu_custom_call.1} parent=51 // pred_check
          %p419 = pneg %p203
        $region82: #{tpu_custom_call.1} parent=51 // pred_check_branch
          %421 = sbr.rel (%p419) target = $region84
        $region83: #{tpu_custom_call.1} parent=51 // pred_region
          %422 = dma.done [#allocation16], 48
        $region84: #{tpu_custom_call.1} parent=51 // pred_fallthru
          _
        %p423 = pneg %p46
        %p424 = pneg %p43
        %s425 = sand.u32 %s30, 1
        %s426 = scalar_lea.sflag [#allocation7], %s425
        %s427 = sand.u32 %s59, 1
        %s428 = smul.addr %s427, 28
        %s429 = scalar_lea.vmem [#allocation6], %s428
        %p430 = pneg %p72
        %p431 = pneg %p69
        %s432 = sand.u32 %s30, 1
        %s433 = scalar_lea.sflag [#allocation7], %s432
        %s434 = sand.u32 %s85, 1
        %s435 = smul.addr %s434, 1792
        %s436 = scalar_lea.vmem [#allocation8], %s435
        %p437 = pneg %p98
        %p438 = pneg %p95
        %p439 = pneg %p119
        %p440 = pneg %p116
        %p441 = pneg %p140
        %p442 = pneg %p137
        %p443 = pneg %p161
        %p444 = pneg %p158
        %p445 = pneg %p182
        %p446 = pneg %p179
        %p447 = pneg %p203
        %p448 = pneg %p200
        %p449 = pneg %p224
        %p450 = pneg %p221
        %p451 = pneg %p245
        %p452 = pneg %p242
        %s453 = smul.u32 28, %s30
        %s454 = smul.u32 448, %s30
        %p456 = scmp.eq.s32.totalorder %s30, 0
        // Predicated region
        $region85: #{tpu_custom_call.1} parent=51 // pred_check
          %p457 = pneg %p456
        $region86: #{tpu_custom_call.1} parent=51 // pred_check_branch
          %459 = sbr.rel (%p457) target = $region88
        $region87: #{tpu_custom_call.1} parent=51 // pred_region
          %vm460 = vcmask 254976
          %461 = vst.msk [vmem:[#allocation2] sm:$0x3] %vm460, 0.0
          %v462 = vld [vmem:[#allocation3] sm:$0xff]
          %v463 = vld [vmem:[#allocation9] sm:$0xff]
          %v464 = vld [vmem:[#allocation9 + $0x8] sm:$0xff]
          %v465 = vld [vmem:[#allocation9 + $0x10] sm:$0xff]
          %v466 = vld [vmem:[#allocation9 + $0x18] sm:$0xff]
          %v467 = vld [vmem:[#allocation9 + $0x20] sm:$0xff]
          %v468 = vld [vmem:[#allocation9 + $0x28] sm:$0xff]
          %v469 = vld [vmem:[#allocation9 + $0x30] sm:$0xff]
          %v470 = vld [vmem:[#allocation9 + $0x38] sm:$0xff]
          %v471 = vld [vmem:[#allocation9 + $0x40] sm:$0xff]
          %v472 = vld [vmem:[#allocation9 + $0x48] sm:$0xff]
          %v473 = vld [vmem:[#allocation9 + $0x50] sm:$0xff]
          %v474 = vld [vmem:[#allocation9 + $0x58] sm:$0xff]
          %v475 = vld [vmem:[#allocation9 + $0x60] sm:$0xff]
          %v476 = vld [vmem:[#allocation9 + $0x68] sm:$0xff]
          %v477 = vld [vmem:[#allocation9 + $0x70] sm:$0xff]
          %v478 = vld [vmem:[#allocation9 + $0x78] sm:$0xff]
          %v479 = vld [vmem:[#allocation9 + $0x80] sm:$0xff]
          %v480 = vld [vmem:[#allocation9 + $0x88] sm:$0xff]
          %v481 = vld [vmem:[#allocation9 + $0x90] sm:$0xff]
          %v482 = vld [vmem:[#allocation9 + $0x98] sm:$0xff]
          %v483 = vld [vmem:[#allocation9 + $0xa0] sm:$0xff]
          %v484 = vld [vmem:[#allocation9 + $0xa8] sm:$0xff]
          %v485 = vld [vmem:[#allocation9 + $0xb0] sm:$0xff]
          %v486 = vld [vmem:[#allocation9 + $0xb8] sm:$0xff]
          %v487 = vld [vmem:[#allocation9 + $0xc0] sm:$0xff]
          %v488 = vld [vmem:[#allocation9 + $0xc8] sm:$0xff]
          %v489 = vld [vmem:[#allocation9 + $0xd0] sm:$0xff]
          %v490 = vld [vmem:[#allocation9 + $0xd8] sm:$0xff]
          %v491 = vld [vmem:[#allocation9 + $0xe0] sm:$0xff]
          %v492 = vld [vmem:[#allocation9 + $0xe8] sm:$0xff]
          %v493 = vld [vmem:[#allocation9 + $0xf0] sm:$0xff]
          %v494 = vld [vmem:[#allocation9 + $0xf8] sm:$0xff]
          %v495 = vld [vmem:[#allocation9 + $0x100] sm:$0xff]
          %v496 = vld [vmem:[#allocation9 + $0x108] sm:$0xff]
          %v497 = vld [vmem:[#allocation9 + $0x110] sm:$0xff]
          %v498 = vld [vmem:[#allocation9 + $0x118] sm:$0xff]
          %v499 = vld [vmem:[#allocation9 + $0x120] sm:$0xff]
          %v500 = vld [vmem:[#allocation9 + $0x128] sm:$0xff]
          %v501 = vld [vmem:[#allocation9 + $0x130] sm:$0xff]
          %v502 = vld [vmem:[#allocation9 + $0x138] sm:$0xff]
          %v503 = vld [vmem:[#allocation9 + $0x140] sm:$0xff]
          %v504 = vld [vmem:[#allocation9 + $0x148] sm:$0xff]
          %v505 = vld [vmem:[#allocation9 + $0x150] sm:$0xff]
          %v506 = vld [vmem:[#allocation9 + $0x158] sm:$0xff]
          %v507 = vld [vmem:[#allocation9 + $0x160] sm:$0xff]
          %v508 = vld [vmem:[#allocation9 + $0x168] sm:$0xff]
          %v509 = vld [vmem:[#allocation9 + $0x170] sm:$0xff]
          %v510 = vld [vmem:[#allocation9 + $0x178] sm:$0xff]
          %v511 = vld [vmem:[#allocation9 + $0x180] sm:$0xff]
          %v512 = vld [vmem:[#allocation9 + $0x188] sm:$0xff]
          %v513 = vld [vmem:[#allocation9 + $0x190] sm:$0xff]
          %v514 = vld [vmem:[#allocation9 + $0x198] sm:$0xff]
          %v515 = vld [vmem:[#allocation9 + $0x1a0] sm:$0xff]
          %v516 = vld [vmem:[#allocation9 + $0x1a8] sm:$0xff]
          %v517 = vld [vmem:[#allocation9 + $0x1b0] sm:$0xff]
          %v518 = vld [vmem:[#allocation9 + $0x1b8] sm:$0xff]
          %v519 = vld [vmem:[#allocation9 + $0x1c0] sm:$0xff]
          %v520 = vld [vmem:[#allocation9 + $0x1c8] sm:$0xff]
          %v521 = vld [vmem:[#allocation9 + $0x1d0] sm:$0xff]
          %v522 = vld [vmem:[#allocation9 + $0x1d8] sm:$0xff]
          %v523 = vld [vmem:[#allocation9 + $0x1e0] sm:$0xff]
          %v524 = vld [vmem:[#allocation9 + $0x1e8] sm:$0xff]
          %v525 = vld [vmem:[#allocation9 + $0x1f0] sm:$0xff]
          %v526 = vld [vmem:[#allocation9 + $0x1f8] sm:$0xff]
          %v527 = vld [vmem:[#allocation11] sm:$0x1]
          %v529 = vlaneseq
          %v530 = vshrl.u32 %v529, 7
          %v531 = vsub.s32 0, %v530
          %v532 = vrot.slane %v527, %v531
          %v535 = vcombine.high %v462, %v462
          %v537 = vunpack.c.l.s4 1983009808
          %v538 = vunpack.c.0.s8 %v537
          %v539 = vlaneseq
          %v540 = vshrl.u32 %v539, 7
          %v541 = vsub.s32 %v538, %v540
          %v542 = vrot.slane %v462, %v541
          %v544 = vunpack.c.l.s4 1983009808
          %v545 = vunpack.c.0.s8 %v544
          %v546 = vlaneseq
          %v547 = vshrl.u32 %v546, 7
          %v548 = vsub.s32 %v545, %v547
          %v549 = vrot.slane %v535, %v548
          %v550 = vcombine.high %v542, %v542
          %v551 = vcombine.high %v549, %v549
          %556 = vmatprep.subr.mxu0 0.0
          %557 = vmatpush1.msra.mxu0 %v463
          %558 = vmatprep.subr.mxu0 0.0
          %559 = vmatpush1.msra.mxu0 %v464
          %560 = vmatprep.subr.mxu0 0.0
          %561 = vmatpush1.msra.mxu0 %v465
          %562 = vmatprep.subr.mxu0 0.0
          %563 = vmatpush1.msra.mxu0 %v466
          %564 = vmatprep.subr.mxu0 0.0
          %565 = vmatpush1.msra.mxu0 %v467
          %566 = vmatprep.subr.mxu0 0.0
          %567 = vmatpush1.msra.mxu0 %v468
          %568 = vmatprep.subr.mxu0 0.0
          %569 = vmatpush1.msra.mxu0 %v469
          %570 = vmatprep.subr.mxu0 0.0
          %571 = vmatpush1.msra.mxu0 %v470
          %572 = vmatprep.subr.mxu0 0.0
          %573 = vmatpush1.msra.mxu0 %v471
          %574 = vmatprep.subr.mxu0 0.0
          %575 = vmatpush1.msra.mxu0 %v472
          %576 = vmatprep.subr.mxu0 0.0
          %577 = vmatpush1.msra.mxu0 %v473
          %578 = vmatprep.subr.mxu0 0.0
          %579 = vmatpush1.msra.mxu0 %v474
          %580 = vmatprep.subr.mxu0 0.0
          %581 = vmatpush1.msra.mxu0 %v475
          %582 = vmatprep.subr.mxu0 0.0
          %583 = vmatpush1.msra.mxu0 %v476
          %584 = vmatprep.subr.mxu0 0.0
          %585 = vmatpush1.msra.mxu0 %v477
          %586 = vmatprep.subr.mxu0 0.0
          %587 = vmatpush1.msra.mxu0 %v478
          %588 = vmatprep.subr.mxu0 0.0
          %589 = vmatpush1.msra.mxu0 %v479
          %590 = vmatprep.subr.mxu0 0.0
          %591 = vmatpush1.msra.mxu0 %v480
          %592 = vmatprep.subr.mxu0 0.0
          %593 = vmatpush1.msra.mxu0 %v481
          %594 = vmatprep.subr.mxu0 0.0
          %595 = vmatpush1.msra.mxu0 %v482
          %596 = vmatprep.subr.mxu0 0.0
          %597 = vmatpush1.msra.mxu0 %v483
          %598 = vmatprep.subr.mxu0 0.0
          %599 = vmatpush1.msra.mxu0 %v484
          %600 = vmatprep.subr.mxu0 0.0
          %601 = vmatpush1.msra.mxu0 %v485
          %602 = vmatprep.subr.mxu0 0.0
          %603 = vmatpush1.msra.mxu0 %v486
          %604 = vmatprep.subr.mxu0 0.0
          %605 = vmatpush1.msra.mxu0 %v487
          %606 = vmatprep.subr.mxu0 0.0
          %607 = vmatpush1.msra.mxu0 %v488
          %608 = vmatprep.subr.mxu0 0.0
          %609 = vmatpush1.msra.mxu0 %v489
          %610 = vmatprep.subr.mxu0 0.0
          %611 = vmatpush1.msra.mxu0 %v490
          %612 = vmatprep.subr.mxu0 0.0
          %613 = vmatpush1.msra.mxu0 %v491
          %614 = vmatprep.subr.mxu0 0.0
          %615 = vmatpush1.msra.mxu0 %v492
          %616 = vmatprep.subr.mxu0 0.0
          %617 = vmatpush1.msra.mxu0 %v493
          %618 = vmatprep.subr.mxu0 0.0
          %619 = vmatpush1.msra.mxu0 %v494
          %620 = vmatprep.mubr.f32.mxu0 %v550
          %621 = vmatmul.mubr.f32.gmra.mrb[0].mxu0 %v542
          %v622 = vpop.f32.mrb[0].mxu0
          %v623 = vadd.f32 %v532, %v622
          %v624 = vpop.f32.mrb[0].mxu0
          %625 = vdwg.mxu0
          %626 = vmatprep.subr.mxu0 0.0
          %627 = vmatpush1.msra.mxu0 %v495
          %628 = vmatprep.subr.mxu0 0.0
          %629 = vmatpush1.msra.mxu0 %v496
          %630 = vmatprep.subr.mxu0 0.0
          %631 = vmatpush1.msra.mxu0 %v497
          %632 = vmatprep.subr.mxu0 0.0
          %633 = vmatpush1.msra.mxu0 %v498
          %634 = vmatprep.subr.mxu0 0.0
          %635 = vmatpush1.msra.mxu0 %v499
          %636 = vmatprep.subr.mxu0 0.0
          %637 = vmatpush1.msra.mxu0 %v500
          %638 = vmatprep.subr.mxu0 0.0
          %639 = vmatpush1.msra.mxu0 %v501
          %640 = vmatprep.subr.mxu0 0.0
          %641 = vmatpush1.msra.mxu0 %v502
          %642 = vmatprep.subr.mxu0 0.0
          %643 = vmatpush1.msra.mxu0 %v503
          %644 = vmatprep.subr.mxu0 0.0
          %645 = vmatpush1.msra.mxu0 %v504
          %646 = vmatprep.subr.mxu0 0.0
          %647 = vmatpush1.msra.mxu0 %v505
          %648 = vmatprep.subr.mxu0 0.0
          %649 = vmatpush1.msra.mxu0 %v506
          %650 = vmatprep.subr.mxu0 0.0
          %651 = vmatpush1.msra.mxu0 %v507
          %652 = vmatprep.subr.mxu0 0.0
          %653 = vmatpush1.msra.mxu0 %v508
          %654 = vmatprep.subr.mxu0 0.0
          %655 = vmatpush1.msra.mxu0 %v509
          %656 = vmatprep.subr.mxu0 0.0
          %657 = vmatpush1.msra.mxu0 %v510
          %658 = vmatprep.subr.mxu0 0.0
          %659 = vmatpush1.msra.mxu0 %v511
          %660 = vmatprep.subr.mxu0 0.0
          %661 = vmatpush1.msra.mxu0 %v512
          %662 = vmatprep.subr.mxu0 0.0
          %663 = vmatpush1.msra.mxu0 %v513
          %664 = vmatprep.subr.mxu0 0.0
          %665 = vmatpush1.msra.mxu0 %v514
          %666 = vmatprep.subr.mxu0 0.0
          %667 = vmatpush1.msra.mxu0 %v515
          %668 = vmatprep.subr.mxu0 0.0
          %669 = vmatpush1.msra.mxu0 %v516
          %670 = vmatprep.subr.mxu0 0.0
          %671 = vmatpush1.msra.mxu0 %v517
          %672 = vmatprep.subr.mxu0 0.0
          %673 = vmatpush1.msra.mxu0 %v518
          %674 = vmatprep.subr.mxu0 0.0
          %675 = vmatpush1.msra.mxu0 %v519
          %676 = vmatprep.subr.mxu0 0.0
          %677 = vmatpush1.msra.mxu0 %v520
          %678 = vmatprep.subr.mxu0 0.0
          %679 = vmatpush1.msra.mxu0 %v521
          %680 = vmatprep.subr.mxu0 0.0
          %681 = vmatpush1.msra.mxu0 %v522
          %682 = vmatprep.subr.mxu0 0.0
          %683 = vmatpush1.msra.mxu0 %v523
          %684 = vmatprep.subr.mxu0 0.0
          %685 = vmatpush1.msra.mxu0 %v524
          %686 = vmatprep.subr.mxu0 0.0
          %687 = vmatpush1.msra.mxu0 %v525
          %688 = vmatprep.subr.mxu0 0.0
          %689 = vmatpush1.msra.mxu0 %v526
          %690 = vmatprep.mubr.f32.mxu0 %v551
          %691 = vmatmul.mubr.f32.gmra.mrb[0].mxu0 %v549
          %v692 = vpop.f32.mrb[0].mxu0
          %v693 = vadd.f32 %v623, %v692
          %v694 = vpop.f32.mrb[0].mxu0
          %695 = vdwg.mxu0
          %696 = vst [vmem:[#allocation17] sm:$0x3] %v693
        $region88: #{tpu_custom_call.1} parent=51 // pred_fallthru
          _
        %v697 = vld [vmem:[#allocation2] sm:$0x3]
        %v698 = vld [vmem:[%s389] sm:$0xff]
        %v699 = vld [vmem:[%s389 + $0x8] sm:$0xff]
        %v700 = vld [vmem:[%s389 + $0x10] sm:$0xff]
        %v701 = vld [vmem:[%s389 + $0x18] sm:$0xf]
        %v702 = vld [vmem:[%s398] sm:$0xf]
        %v703 = vld [vmem:[%s398 + $0x4] sm:$0xf]
        %v704 = vld [vmem:[%s398 + $0x8] sm:$0xf]
        %v705 = vld [vmem:[%s398 + $0xc] sm:$0xf]
        %v706 = vld [vmem:[%s398 + $0x10] sm:$0xf]
        %v707 = vld [vmem:[%s398 + $0x14] sm:$0xf]
        %v708 = vld [vmem:[%s398 + $0x18] sm:$0xf]
        %v709 = vld [vmem:[%s398 + $0x1c] sm:$0xf]
        %v710 = vld [vmem:[%s398 + $0x20] sm:$0xf]
        %v711 = vld [vmem:[%s398 + $0x24] sm:$0xf]
        %v712 = vld [vmem:[%s398 + $0x28] sm:$0xf]
        %v713 = vld [vmem:[%s398 + $0x2c] sm:$0xf]
        %v714 = vld [vmem:[%s398 + $0x30] sm:$0xf]
        %v715 = vld [vmem:[%s398 + $0x34] sm:$0xf]
        %v716 = vld [vmem:[%s398 + $0x38] sm:$0xf]
        %v717 = vld [vmem:[%s398 + $0x3c] sm:$0xf]
        %v718 = vld [vmem:[%s398 + $0x40] sm:$0xf]
        %v719 = vld [vmem:[%s398 + $0x44] sm:$0xf]
        %v720 = vld [vmem:[%s398 + $0x48] sm:$0xf]
        %v721 = vld [vmem:[%s398 + $0x4c] sm:$0xf]
        %v722 = vld [vmem:[%s398 + $0x50] sm:$0xf]
        %v723 = vld [vmem:[%s398 + $0x54] sm:$0xf]
        %v724 = vld [vmem:[%s398 + $0x58] sm:$0xf]
        %v725 = vld [vmem:[%s398 + $0x5c] sm:$0xf]
        %v726 = vld [vmem:[%s398 + $0x60] sm:$0xf]
        %v727 = vld [vmem:[%s398 + $0x64] sm:$0xf]
        %v728 = vld [vmem:[%s398 + $0x68] sm:$0xf]
        %v729 = vld [vmem:[%s398 + $0x6c] sm:$0xf]
        %v730 = vld [vmem:[%s398 + $0x70] sm:$0xf]
        %v731 = vld [vmem:[%s398 + $0x74] sm:$0xf]
        %v732 = vld [vmem:[%s398 + $0x78] sm:$0xf]
        %v733 = vld [vmem:[%s398 + $0x7c] sm:$0xf]
        %v734 = vld [vmem:[%s398 + $0x80] sm:$0xf]
        %v735 = vld [vmem:[%s398 + $0x84] sm:$0xf]
        %v736 = vld [vmem:[%s398 + $0x88] sm:$0xf]
        %v737 = vld [vmem:[%s398 + $0x8c] sm:$0xf]
        %v738 = vld [vmem:[%s398 + $0x90] sm:$0xf]
        %v739 = vld [vmem:[%s398 + $0x94] sm:$0xf]
        %v740 = vld [vmem:[%s398 + $0x98] sm:$0xf]
        %v741 = vld [vmem:[%s398 + $0x9c] sm:$0xf]
        %v742 = vld [vmem:[%s398 + $0xa0] sm:$0xf]
        %v743 = vld [vmem:[%s398 + $0xa4] sm:$0xf]
        %v744 = vld [vmem:[%s398 + $0xa8] sm:$0xf]
        %v745 = vld [vmem:[%s398 + $0xac] sm:$0xf]
        %v746 = vld [vmem:[%s398 + $0xb0] sm:$0xf]
        %v747 = vld [vmem:[%s398 + $0xb4] sm:$0xf]
        %v748 = vld [vmem:[%s398 + $0xb8] sm:$0xf]
        %v749 = vld [vmem:[%s398 + $0xbc] sm:$0xf]
        %v750 = vld [vmem:[%s398 + $0xc0] sm:$0xf]
        %v751 = vld [vmem:[%s398 + $0xc4] sm:$0xf]
        %v752 = vld [vmem:[%s398 + $0xc8] sm:$0xf]
        %v753 = vld [vmem:[%s398 + $0xcc] sm:$0xf]
        %v754 = vld [vmem:[%s398 + $0xd0] sm:$0xf]
        %v755 = vld [vmem:[%s398 + $0xd4] sm:$0xf]
        %v756 = vld [vmem:[%s398 + $0xd8] sm:$0xf]
        %v757 = vld [vmem:[%s398 + $0xdc] sm:$0xf]
        %v758 = vld [vmem:[%s398 + $0xe0] sm:$0xf]
        %v759 = vld [vmem:[%s398 + $0xe4] sm:$0xf]
        %v760 = vld [vmem:[%s398 + $0xe8] sm:$0xf]
        %v761 = vld [vmem:[%s398 + $0xec] sm:$0xf]
        %v762 = vld [vmem:[%s398 + $0xf0] sm:$0xf]
        %v763 = vld [vmem:[%s398 + $0xf4] sm:$0xf]
        %v764 = vld [vmem:[%s398 + $0xf8] sm:$0xf]
        %v765 = vld [vmem:[%s398 + $0xfc] sm:$0xf]
        %v766 = vld [vmem:[%s398 + $0x100] sm:$0xf]
        %v767 = vld [vmem:[%s398 + $0x104] sm:$0xf]
        %v768 = vld [vmem:[%s398 + $0x108] sm:$0xf]
        %v769 = vld [vmem:[%s398 + $0x10c] sm:$0xf]
        %v770 = vld [vmem:[%s398 + $0x110] sm:$0xf]
        %v771 = vld [vmem:[%s398 + $0x114] sm:$0xf]
        %v772 = vld [vmem:[%s398 + $0x118] sm:$0xf]
        %v773 = vld [vmem:[%s398 + $0x11c] sm:$0xf]
        %v774 = vld [vmem:[%s398 + $0x120] sm:$0xf]
        %v775 = vld [vmem:[%s398 + $0x124] sm:$0xf]
        %v776 = vld [vmem:[%s398 + $0x128] sm:$0xf]
        %v777 = vld [vmem:[%s398 + $0x12c] sm:$0xf]
        %v778 = vld [vmem:[%s398 + $0x130] sm:$0xf]
        %v779 = vld [vmem:[%s398 + $0x134] sm:$0xf]
        %v780 = vld [vmem:[%s398 + $0x138] sm:$0xf]
        %v781 = vld [vmem:[%s398 + $0x13c] sm:$0xf]
        %v782 = vld [vmem:[%s398 + $0x140] sm:$0xf]
        %v783 = vld [vmem:[%s398 + $0x144] sm:$0xf]
        %v784 = vld [vmem:[%s398 + $0x148] sm:$0xf]
        %v785 = vld [vmem:[%s398 + $0x14c] sm:$0xf]
        %v786 = vld [vmem:[%s398 + $0x150] sm:$0xf]
        %v787 = vld [vmem:[%s398 + $0x154] sm:$0xf]
        %v788 = vld [vmem:[%s398 + $0x158] sm:$0xf]
        %v789 = vld [vmem:[%s398 + $0x15c] sm:$0xf]
        %v790 = vld [vmem:[%s398 + $0x160] sm:$0xf]
        %v791 = vld [vmem:[%s398 + $0x164] sm:$0xf]
        %v792 = vld [vmem:[%s398 + $0x168] sm:$0xf]
        %v793 = vld [vmem:[%s398 + $0x16c] sm:$0xf]
        %v794 = vld [vmem:[%s398 + $0x170] sm:$0xf]
        %v795 = vld [vmem:[%s398 + $0x174] sm:$0xf]
        %v796 = vld [vmem:[%s398 + $0x178] sm:$0xf]
        %v797 = vld [vmem:[%s398 + $0x17c] sm:$0xf]
        %v798 = vld [vmem:[%s398 + $0x180] sm:$0xf]
        %v799 = vld [vmem:[%s398 + $0x184] sm:$0xf]
        %v800 = vld [vmem:[%s398 + $0x188] sm:$0xf]
        %v801 = vld [vmem:[%s398 + $0x18c] sm:$0xf]
        %v802 = vld [vmem:[%s398 + $0x190] sm:$0xf]
        %v803 = vld [vmem:[%s398 + $0x194] sm:$0xf]
        %v804 = vld [vmem:[%s398 + $0x198] sm:$0xf]
        %v805 = vld [vmem:[%s398 + $0x19c] sm:$0xf]
        %v806 = vld [vmem:[%s398 + $0x1a0] sm:$0xf]
        %v807 = vld [vmem:[%s398 + $0x1a4] sm:$0xf]
        %v808 = vld [vmem:[%s398 + $0x1a8] sm:$0xf]
        %v809 = vld [vmem:[%s398 + $0x1ac] sm:$0xf]
        %v810 = vld [vmem:[%s398 + $0x1b0] sm:$0xf]
        %v811 = vld [vmem:[%s398 + $0x1b4] sm:$0xf]
        %v812 = vld [vmem:[%s398 + $0x1b8] sm:$0xf]
        %v813 = vld [vmem:[%s398 + $0x1bc] sm:$0xf]
        %v814 = vld [vmem:[%s398 + $0x1c0] sm:$0xf]
        %v815 = vld [vmem:[%s398 + $0x1c4] sm:$0xf]
        %v816 = vld [vmem:[%s398 + $0x1c8] sm:$0xf]
        %v817 = vld [vmem:[%s398 + $0x1cc] sm:$0xf]
        %v818 = vld [vmem:[%s398 + $0x1d0] sm:$0xf]
        %v819 = vld [vmem:[%s398 + $0x1d4] sm:$0xf]
        %v820 = vld [vmem:[%s398 + $0x1d8] sm:$0xf]
        %v821 = vld [vmem:[%s398 + $0x1dc] sm:$0xf]
        %v822 = vld [vmem:[%s398 + $0x1e0] sm:$0xf]
        %v823 = vld [vmem:[%s398 + $0x1e4] sm:$0xf]
        %v824 = vld [vmem:[%s398 + $0x1e8] sm:$0xf]
        %v825 = vld [vmem:[%s398 + $0x1ec] sm:$0xf]
        %v826 = vld [vmem:[%s398 + $0x1f0] sm:$0xf]
        %v827 = vld [vmem:[%s398 + $0x1f4] sm:$0xf]
        %v828 = vld [vmem:[%s398 + $0x1f8] sm:$0xf]
        %v829 = vld [vmem:[%s398 + $0x1fc] sm:$0xf]
        %v830 = vld [vmem:[%s398 + $0x200] sm:$0xf]
        %v831 = vld [vmem:[%s398 + $0x204] sm:$0xf]
        %v832 = vld [vmem:[%s398 + $0x208] sm:$0xf]
        %v833 = vld [vmem:[%s398 + $0x20c] sm:$0xf]
        %v834 = vld [vmem:[%s398 + $0x210] sm:$0xf]
        %v835 = vld [vmem:[%s398 + $0x214] sm:$0xf]
        %v836 = vld [vmem:[%s398 + $0x218] sm:$0xf]
        %v837 = vld [vmem:[%s398 + $0x21c] sm:$0xf]
        %v838 = vld [vmem:[%s398 + $0x220] sm:$0xf]
        %v839 = vld [vmem:[%s398 + $0x224] sm:$0xf]
        %v840 = vld [vmem:[%s398 + $0x228] sm:$0xf]
        %v841 = vld [vmem:[%s398 + $0x22c] sm:$0xf]
        %v842 = vld [vmem:[%s398 + $0x230] sm:$0xf]
        %v843 = vld [vmem:[%s398 + $0x234] sm:$0xf]
        %v844 = vld [vmem:[%s398 + $0x238] sm:$0xf]
        %v845 = vld [vmem:[%s398 + $0x23c] sm:$0xf]
        %v846 = vld [vmem:[%s398 + $0x240] sm:$0xf]
        %v847 = vld [vmem:[%s398 + $0x244] sm:$0xf]
        %v848 = vld [vmem:[%s398 + $0x248] sm:$0xf]
        %v849 = vld [vmem:[%s398 + $0x24c] sm:$0xf]
        %v850 = vld [vmem:[%s398 + $0x250] sm:$0xf]
        %v851 = vld [vmem:[%s398 + $0x254] sm:$0xf]
        %v852 = vld [vmem:[%s398 + $0x258] sm:$0xf]
        %v853 = vld [vmem:[%s398 + $0x25c] sm:$0xf]
        %v854 = vld [vmem:[%s398 + $0x260] sm:$0xf]
        %v855 = vld [vmem:[%s398 + $0x264] sm:$0xf]
        %v856 = vld [vmem:[%s398 + $0x268] sm:$0xf]
        %v857 = vld [vmem:[%s398 + $0x26c] sm:$0xf]
        %v858 = vld [vmem:[%s398 + $0x270] sm:$0xf]
        %v859 = vld [vmem:[%s398 + $0x274] sm:$0xf]
        %v860 = vld [vmem:[%s398 + $0x278] sm:$0xf]
        %v861 = vld [vmem:[%s398 + $0x27c] sm:$0xf]
        %v862 = vld [vmem:[%s398 + $0x280] sm:$0xf]
        %v863 = vld [vmem:[%s398 + $0x284] sm:$0xf]
        %v864 = vld [vmem:[%s398 + $0x288] sm:$0xf]
        %v865 = vld [vmem:[%s398 + $0x28c] sm:$0xf]
        %v866 = vld [vmem:[%s398 + $0x290] sm:$0xf]
        %v867 = vld [vmem:[%s398 + $0x294] sm:$0xf]
        %v868 = vld [vmem:[%s398 + $0x298] sm:$0xf]
        %v869 = vld [vmem:[%s398 + $0x29c] sm:$0xf]
        %v870 = vld [vmem:[%s398 + $0x2a0] sm:$0xf]
        %v871 = vld [vmem:[%s398 + $0x2a4] sm:$0xf]
        %v872 = vld [vmem:[%s398 + $0x2a8] sm:$0xf]
        %v873 = vld [vmem:[%s398 + $0x2ac] sm:$0xf]
        %v874 = vld [vmem:[%s398 + $0x2b0] sm:$0xf]
        %v875 = vld [vmem:[%s398 + $0x2b4] sm:$0xf]
        %v876 = vld [vmem:[%s398 + $0x2b8] sm:$0xf]
        %v877 = vld [vmem:[%s398 + $0x2bc] sm:$0xf]
        %v878 = vld [vmem:[%s398 + $0x2c0] sm:$0xf]
        %v879 = vld [vmem:[%s398 + $0x2c4] sm:$0xf]
        %v880 = vld [vmem:[%s398 + $0x2c8] sm:$0xf]
        %v881 = vld [vmem:[%s398 + $0x2cc] sm:$0xf]
        %v882 = vld [vmem:[%s398 + $0x2d0] sm:$0xf]
        %v883 = vld [vmem:[%s398 + $0x2d4] sm:$0xf]
        %v884 = vld [vmem:[%s398 + $0x2d8] sm:$0xf]
        %v885 = vld [vmem:[%s398 + $0x2dc] sm:$0xf]
        %v886 = vld [vmem:[%s398 + $0x2e0] sm:$0xf]
        %v887 = vld [vmem:[%s398 + $0x2e4] sm:$0xf]
        %v888 = vld [vmem:[%s398 + $0x2e8] sm:$0xf]
        %v889 = vld [vmem:[%s398 + $0x2ec] sm:$0xf]
        %v890 = vld [vmem:[%s398 + $0x2f0] sm:$0xf]
        %v891 = vld [vmem:[%s398 + $0x2f4] sm:$0xf]
        %v892 = vld [vmem:[%s398 + $0x2f8] sm:$0xf]
        %v893 = vld [vmem:[%s398 + $0x2fc] sm:$0xf]
        %v894 = vld [vmem:[%s398 + $0x300] sm:$0xf]
        %v895 = vld [vmem:[%s398 + $0x304] sm:$0xf]
        %v896 = vld [vmem:[%s398 + $0x308] sm:$0xf]
        %v897 = vld [vmem:[%s398 + $0x30c] sm:$0xf]
        %v898 = vld [vmem:[%s398 + $0x310] sm:$0xf]
        %v899 = vld [vmem:[%s398 + $0x314] sm:$0xf]
        %v900 = vld [vmem:[%s398 + $0x318] sm:$0xf]
        %v901 = vld [vmem:[%s398 + $0x31c] sm:$0xf]
        %v902 = vld [vmem:[%s398 + $0x320] sm:$0xf]
        %v903 = vld [vmem:[%s398 + $0x324] sm:$0xf]
        %v904 = vld [vmem:[%s398 + $0x328] sm:$0xf]
        %v905 = vld [vmem:[%s398 + $0x32c] sm:$0xf]
        %v906 = vld [vmem:[%s398 + $0x330] sm:$0xf]
        %v907 = vld [vmem:[%s398 + $0x334] sm:$0xf]
        %v908 = vld [vmem:[%s398 + $0x338] sm:$0xf]
        %v909 = vld [vmem:[%s398 + $0x33c] sm:$0xf]
        %v910 = vld [vmem:[%s398 + $0x340] sm:$0xf]
        %v911 = vld [vmem:[%s398 + $0x344] sm:$0xf]
        %v912 = vld [vmem:[%s398 + $0x348] sm:$0xf]
        %v913 = vld [vmem:[%s398 + $0x34c] sm:$0xf]
        %v914 = vld [vmem:[%s398 + $0x350] sm:$0xf]
        %v915 = vld [vmem:[%s398 + $0x354] sm:$0xf]
        %v916 = vld [vmem:[%s398 + $0x358] sm:$0xf]
        %v917 = vld [vmem:[%s398 + $0x35c] sm:$0xf]
        %v918 = vld [vmem:[%s398 + $0x360] sm:$0xf]
        %v919 = vld [vmem:[%s398 + $0x364] sm:$0xf]
        %v920 = vld [vmem:[%s398 + $0x368] sm:$0xf]
        %v921 = vld [vmem:[%s398 + $0x36c] sm:$0xf]
        %v922 = vld [vmem:[%s398 + $0x370] sm:$0xf]
        %v923 = vld [vmem:[%s398 + $0x374] sm:$0xf]
        %v924 = vld [vmem:[%s398 + $0x378] sm:$0xf]
        %v925 = vld [vmem:[%s398 + $0x37c] sm:$0xf]
        %v926 = vld [vmem:[%s398 + $0x380] sm:$0xf]
        %v927 = vld [vmem:[%s398 + $0x384] sm:$0xf]
        %v928 = vld [vmem:[%s398 + $0x388] sm:$0xf]
        %v929 = vld [vmem:[%s398 + $0x38c] sm:$0xf]
        %v930 = vld [vmem:[%s398 + $0x390] sm:$0xf]
        %v931 = vld [vmem:[%s398 + $0x394] sm:$0xf]
        %v932 = vld [vmem:[%s398 + $0x398] sm:$0xf]
        %v933 = vld [vmem:[%s398 + $0x39c] sm:$0xf]
        %v934 = vld [vmem:[%s398 + $0x3a0] sm:$0xf]
        %v935 = vld [vmem:[%s398 + $0x3a4] sm:$0xf]
        %v936 = vld [vmem:[%s398 + $0x3a8] sm:$0xf]
        %v937 = vld [vmem:[%s398 + $0x3ac] sm:$0xf]
        %v938 = vld [vmem:[%s398 + $0x3b0] sm:$0xf]
        %v939 = vld [vmem:[%s398 + $0x3b4] sm:$0xf]
        %v940 = vld [vmem:[%s398 + $0x3b8] sm:$0xf]
        %v941 = vld [vmem:[%s398 + $0x3bc] sm:$0xf]
        %v942 = vld [vmem:[%s398 + $0x3c0] sm:$0xf]
        %v943 = vld [vmem:[%s398 + $0x3c4] sm:$0xf]
        %v944 = vld [vmem:[%s398 + $0x3c8] sm:$0xf]
        %v945 = vld [vmem:[%s398 + $0x3cc] sm:$0xf]
        %v946 = vld [vmem:[%s398 + $0x3d0] sm:$0xf]
        %v947 = vld [vmem:[%s398 + $0x3d4] sm:$0xf]
        %v948 = vld [vmem:[%s398 + $0x3d8] sm:$0xf]
        %v949 = vld [vmem:[%s398 + $0x3dc] sm:$0xf]
        %v950 = vld [vmem:[%s398 + $0x3e0] sm:$0xf]
        %v951 = vld [vmem:[%s398 + $0x3e4] sm:$0xf]
        %v952 = vld [vmem:[%s398 + $0x3e8] sm:$0xf]
        %v953 = vld [vmem:[%s398 + $0x3ec] sm:$0xf]
        %v954 = vld [vmem:[%s398 + $0x3f0] sm:$0xf]
        %v955 = vld [vmem:[%s398 + $0x3f4] sm:$0xf]
        %v956 = vld [vmem:[%s398 + $0x3f8] sm:$0xf]
        %v957 = vld [vmem:[%s398 + $0x3fc] sm:$0xf]
        %v958 = vld [vmem:[%s398 + $0x400] sm:$0xf]
        %v959 = vld [vmem:[%s398 + $0x404] sm:$0xf]
        %v960 = vld [vmem:[%s398 + $0x408] sm:$0xf]
        %v961 = vld [vmem:[%s398 + $0x40c] sm:$0xf]
        %v962 = vld [vmem:[%s398 + $0x410] sm:$0xf]
        %v963 = vld [vmem:[%s398 + $0x414] sm:$0xf]
        %v964 = vld [vmem:[%s398 + $0x418] sm:$0xf]
        %v965 = vld [vmem:[%s398 + $0x41c] sm:$0xf]
        %v966 = vld [vmem:[%s398 + $0x420] sm:$0xf]
        %v967 = vld [vmem:[%s398 + $0x424] sm:$0xf]
        %v968 = vld [vmem:[%s398 + $0x428] sm:$0xf]
        %v969 = vld [vmem:[%s398 + $0x42c] sm:$0xf]
        %v970 = vld [vmem:[%s398 + $0x430] sm:$0xf]
        %v971 = vld [vmem:[%s398 + $0x434] sm:$0xf]
        %v972 = vld [vmem:[%s398 + $0x438] sm:$0xf]
        %v973 = vld [vmem:[%s398 + $0x43c] sm:$0xf]
        %v974 = vld [vmem:[%s398 + $0x440] sm:$0xf]
        %v975 = vld [vmem:[%s398 + $0x444] sm:$0xf]
        %v976 = vld [vmem:[%s398 + $0x448] sm:$0xf]
        %v977 = vld [vmem:[%s398 + $0x44c] sm:$0xf]
        %v978 = vld [vmem:[%s398 + $0x450] sm:$0xf]
        %v979 = vld [vmem:[%s398 + $0x454] sm:$0xf]
        %v980 = vld [vmem:[%s398 + $0x458] sm:$0xf]
        %v981 = vld [vmem:[%s398 + $0x45c] sm:$0xf]
        %v982 = vld [vmem:[%s398 + $0x460] sm:$0xf]
        %v983 = vld [vmem:[%s398 + $0x464] sm:$0xf]
        %v984 = vld [vmem:[%s398 + $0x468] sm:$0xf]
        %v985 = vld [vmem:[%s398 + $0x46c] sm:$0xf]
        %v986 = vld [vmem:[%s398 + $0x470] sm:$0xf]
        %v987 = vld [vmem:[%s398 + $0x474] sm:$0xf]
        %v988 = vld [vmem:[%s398 + $0x478] sm:$0xf]
        %v989 = vld [vmem:[%s398 + $0x47c] sm:$0xf]
        %v990 = vld [vmem:[%s398 + $0x480] sm:$0xf]
        %v991 = vld [vmem:[%s398 + $0x484] sm:$0xf]
        %v992 = vld [vmem:[%s398 + $0x488] sm:$0xf]
        %v993 = vld [vmem:[%s398 + $0x48c] sm:$0xf]
        %v994 = vld [vmem:[%s398 + $0x490] sm:$0xf]
        %v995 = vld [vmem:[%s398 + $0x494] sm:$0xf]
        %v996 = vld [vmem:[%s398 + $0x498] sm:$0xf]
        %v997 = vld [vmem:[%s398 + $0x49c] sm:$0xf]
        %v998 = vld [vmem:[%s398 + $0x4a0] sm:$0xf]
        %v999 = vld [vmem:[%s398 + $0x4a4] sm:$0xf]
        %v1000 = vld [vmem:[%s398 + $0x4a8] sm:$0xf]
        %v1001 = vld [vmem:[%s398 + $0x4ac] sm:$0xf]
        %v1002 = vld [vmem:[%s398 + $0x4b0] sm:$0xf]
        %v1003 = vld [vmem:[%s398 + $0x4b4] sm:$0xf]
        %v1004 = vld [vmem:[%s398 + $0x4b8] sm:$0xf]
        %v1005 = vld [vmem:[%s398 + $0x4bc] sm:$0xf]
        %v1006 = vld [vmem:[%s398 + $0x4c0] sm:$0xf]
        %v1007 = vld [vmem:[%s398 + $0x4c4] sm:$0xf]
        %v1008 = vld [vmem:[%s398 + $0x4c8] sm:$0xf]
        %v1009 = vld [vmem:[%s398 + $0x4cc] sm:$0xf]
        %v1010 = vld [vmem:[%s398 + $0x4d0] sm:$0xf]
        %v1011 = vld [vmem:[%s398 + $0x4d4] sm:$0xf]
        %v1012 = vld [vmem:[%s398 + $0x4d8] sm:$0xf]
        %v1013 = vld [vmem:[%s398 + $0x4dc] sm:$0xf]
        %v1014 = vld [vmem:[%s398 + $0x4e0] sm:$0xf]
        %v1015 = vld [vmem:[%s398 + $0x4e4] sm:$0xf]
        %v1016 = vld [vmem:[%s398 + $0x4e8] sm:$0xf]
        %v1017 = vld [vmem:[%s398 + $0x4ec] sm:$0xf]
        %v1018 = vld [vmem:[%s398 + $0x4f0] sm:$0xf]
        %v1019 = vld [vmem:[%s398 + $0x4f4] sm:$0xf]
        %v1020 = vld [vmem:[%s398 + $0x4f8] sm:$0xf]
        %v1021 = vld [vmem:[%s398 + $0x4fc] sm:$0xf]
        %v1022 = vld [vmem:[%s398 + $0x500] sm:$0xf]
        %v1023 = vld [vmem:[%s398 + $0x504] sm:$0xf]
        %v1024 = vld [vmem:[%s398 + $0x508] sm:$0xf]
        %v1025 = vld [vmem:[%s398 + $0x50c] sm:$0xf]
        %v1026 = vld [vmem:[%s398 + $0x510] sm:$0xf]
        %v1027 = vld [vmem:[%s398 + $0x514] sm:$0xf]
        %v1028 = vld [vmem:[%s398 + $0x518] sm:$0xf]
        %v1029 = vld [vmem:[%s398 + $0x51c] sm:$0xf]
        %v1030 = vld [vmem:[%s398 + $0x520] sm:$0xf]
        %v1031 = vld [vmem:[%s398 + $0x524] sm:$0xf]
        %v1032 = vld [vmem:[%s398 + $0x528] sm:$0xf]
        %v1033 = vld [vmem:[%s398 + $0x52c] sm:$0xf]
        %v1034 = vld [vmem:[%s398 + $0x530] sm:$0xf]
        %v1035 = vld [vmem:[%s398 + $0x534] sm:$0xf]
        %v1036 = vld [vmem:[%s398 + $0x538] sm:$0xf]
        %v1037 = vld [vmem:[%s398 + $0x53c] sm:$0xf]
        %v1038 = vld [vmem:[%s398 + $0x540] sm:$0xf]
        %v1039 = vld [vmem:[%s398 + $0x544] sm:$0xf]
        %v1040 = vld [vmem:[%s398 + $0x548] sm:$0xf]
        %v1041 = vld [vmem:[%s398 + $0x54c] sm:$0xf]
        %v1042 = vld [vmem:[%s398 + $0x550] sm:$0xf]
        %v1043 = vld [vmem:[%s398 + $0x554] sm:$0xf]
        %v1044 = vld [vmem:[%s398 + $0x558] sm:$0xf]
        %v1045 = vld [vmem:[%s398 + $0x55c] sm:$0xf]
        %v1046 = vld [vmem:[%s398 + $0x560] sm:$0xf]
        %v1047 = vld [vmem:[%s398 + $0x564] sm:$0xf]
        %v1048 = vld [vmem:[%s398 + $0x568] sm:$0xf]
        %v1049 = vld [vmem:[%s398 + $0x56c] sm:$0xf]
        %v1050 = vld [vmem:[%s398 + $0x570] sm:$0xf]
        %v1051 = vld [vmem:[%s398 + $0x574] sm:$0xf]
        %v1052 = vld [vmem:[%s398 + $0x578] sm:$0xf]
        %v1053 = vld [vmem:[%s398 + $0x57c] sm:$0xf]
        %v1054 = vld [vmem:[%s398 + $0x580] sm:$0xf]
        %v1055 = vld [vmem:[%s398 + $0x584] sm:$0xf]
        %v1056 = vld [vmem:[%s398 + $0x588] sm:$0xf]
        %v1057 = vld [vmem:[%s398 + $0x58c] sm:$0xf]
        %v1058 = vld [vmem:[%s398 + $0x590] sm:$0xf]
        %v1059 = vld [vmem:[%s398 + $0x594] sm:$0xf]
        %v1060 = vld [vmem:[%s398 + $0x598] sm:$0xf]
        %v1061 = vld [vmem:[%s398 + $0x59c] sm:$0xf]
        %v1062 = vld [vmem:[%s398 + $0x5a0] sm:$0xf]
        %v1063 = vld [vmem:[%s398 + $0x5a4] sm:$0xf]
        %v1064 = vld [vmem:[%s398 + $0x5a8] sm:$0xf]
        %v1065 = vld [vmem:[%s398 + $0x5ac] sm:$0xf]
        %v1066 = vld [vmem:[%s398 + $0x5b0] sm:$0xf]
        %v1067 = vld [vmem:[%s398 + $0x5b4] sm:$0xf]
        %v1068 = vld [vmem:[%s398 + $0x5b8] sm:$0xf]
        %v1069 = vld [vmem:[%s398 + $0x5bc] sm:$0xf]
        %v1070 = vld [vmem:[%s398 + $0x5c0] sm:$0xf]
        %v1071 = vld [vmem:[%s398 + $0x5c4] sm:$0xf]
        %v1072 = vld [vmem:[%s398 + $0x5c8] sm:$0xf]
        %v1073 = vld [vmem:[%s398 + $0x5cc] sm:$0xf]
        %v1074 = vld [vmem:[%s398 + $0x5d0] sm:$0xf]
        %v1075 = vld [vmem:[%s398 + $0x5d4] sm:$0xf]
        %v1076 = vld [vmem:[%s398 + $0x5d8] sm:$0xf]
        %v1077 = vld [vmem:[%s398 + $0x5dc] sm:$0xf]
        %v1078 = vld [vmem:[%s398 + $0x5e0] sm:$0xf]
        %v1079 = vld [vmem:[%s398 + $0x5e4] sm:$0xf]
        %v1080 = vld [vmem:[%s398 + $0x5e8] sm:$0xf]
        %v1081 = vld [vmem:[%s398 + $0x5ec] sm:$0xf]
        %v1082 = vld [vmem:[%s398 + $0x5f0] sm:$0xf]
        %v1083 = vld [vmem:[%s398 + $0x5f4] sm:$0xf]
        %v1084 = vld [vmem:[%s398 + $0x5f8] sm:$0xf]
        %v1085 = vld [vmem:[%s398 + $0x5fc] sm:$0xf]
        %v1086 = vld [vmem:[%s398 + $0x600] sm:$0xf]
        %v1087 = vld [vmem:[%s398 + $0x604] sm:$0xf]
        %v1088 = vld [vmem:[%s398 + $0x608] sm:$0xf]
        %v1089 = vld [vmem:[%s398 + $0x60c] sm:$0xf]
        %v1090 = vld [vmem:[%s398 + $0x610] sm:$0xf]
        %v1091 = vld [vmem:[%s398 + $0x614] sm:$0xf]
        %v1092 = vld [vmem:[%s398 + $0x618] sm:$0xf]
        %v1093 = vld [vmem:[%s398 + $0x61c] sm:$0xf]
        %v1094 = vld [vmem:[%s398 + $0x620] sm:$0xf]
        %v1095 = vld [vmem:[%s398 + $0x624] sm:$0xf]
        %v1096 = vld [vmem:[%s398 + $0x628] sm:$0xf]
        %v1097 = vld [vmem:[%s398 + $0x62c] sm:$0xf]
        %v1098 = vld [vmem:[%s398 + $0x630] sm:$0xf]
        %v1099 = vld [vmem:[%s398 + $0x634] sm:$0xf]
        %v1100 = vld [vmem:[%s398 + $0x638] sm:$0xf]
        %v1101 = vld [vmem:[%s398 + $0x63c] sm:$0xf]
        %v1102 = vld [vmem:[%s398 + $0x640] sm:$0xf]
        %v1103 = vld [vmem:[%s398 + $0x644] sm:$0xf]
        %v1104 = vld [vmem:[%s398 + $0x648] sm:$0xf]
        %v1105 = vld [vmem:[%s398 + $0x64c] sm:$0xf]
        %v1106 = vld [vmem:[%s398 + $0x650] sm:$0xf]
        %v1107 = vld [vmem:[%s398 + $0x654] sm:$0xf]
        %v1108 = vld [vmem:[%s398 + $0x658] sm:$0xf]
        %v1109 = vld [vmem:[%s398 + $0x65c] sm:$0xf]
        %v1110 = vld [vmem:[%s398 + $0x660] sm:$0xf]
        %v1111 = vld [vmem:[%s398 + $0x664] sm:$0xf]
        %v1112 = vld [vmem:[%s398 + $0x668] sm:$0xf]
        %v1113 = vld [vmem:[%s398 + $0x66c] sm:$0xf]
        %v1114 = vld [vmem:[%s398 + $0x670] sm:$0xf]
        %v1115 = vld [vmem:[%s398 + $0x674] sm:$0xf]
        %v1116 = vld [vmem:[%s398 + $0x678] sm:$0xf]
        %v1117 = vld [vmem:[%s398 + $0x67c] sm:$0xf]
        %v1118 = vld [vmem:[%s398 + $0x680] sm:$0xf]
        %v1119 = vld [vmem:[%s398 + $0x684] sm:$0xf]
        %v1120 = vld [vmem:[%s398 + $0x688] sm:$0xf]
        %v1121 = vld [vmem:[%s398 + $0x68c] sm:$0xf]
        %v1122 = vld [vmem:[%s398 + $0x690] sm:$0xf]
        %v1123 = vld [vmem:[%s398 + $0x694] sm:$0xf]
        %v1124 = vld [vmem:[%s398 + $0x698] sm:$0xf]
        %v1125 = vld [vmem:[%s398 + $0x69c] sm:$0xf]
        %v1126 = vld [vmem:[%s398 + $0x6a0] sm:$0xf]
        %v1127 = vld [vmem:[%s398 + $0x6a4] sm:$0xf]
        %v1128 = vld [vmem:[%s398 + $0x6a8] sm:$0xf]
        %v1129 = vld [vmem:[%s398 + $0x6ac] sm:$0xf]
        %v1130 = vld [vmem:[%s398 + $0x6b0] sm:$0xf]
        %v1131 = vld [vmem:[%s398 + $0x6b4] sm:$0xf]
        %v1132 = vld [vmem:[%s398 + $0x6b8] sm:$0xf]
        %v1133 = vld [vmem:[%s398 + $0x6bc] sm:$0xf]
        %v1134 = vld [vmem:[%s398 + $0x6c0] sm:$0xf]
        %v1135 = vld [vmem:[%s398 + $0x6c4] sm:$0xf]
        %v1136 = vld [vmem:[%s398 + $0x6c8] sm:$0xf]
        %v1137 = vld [vmem:[%s398 + $0x6cc] sm:$0xf]
        %v1138 = vld [vmem:[%s398 + $0x6d0] sm:$0xf]
        %v1139 = vld [vmem:[%s398 + $0x6d4] sm:$0xf]
        %v1140 = vld [vmem:[%s398 + $0x6d8] sm:$0xf]
        %v1141 = vld [vmem:[%s398 + $0x6dc] sm:$0xf]
        %v1142 = vld [vmem:[%s398 + $0x6e0] sm:$0xf]
        %v1143 = vld [vmem:[%s398 + $0x6e4] sm:$0xf]
        %v1144 = vld [vmem:[%s398 + $0x6e8] sm:$0xf]
        %v1145 = vld [vmem:[%s398 + $0x6ec] sm:$0xf]
        %v1146 = vld [vmem:[%s398 + $0x6f0] sm:$0xf]
        %v1147 = vld [vmem:[%s398 + $0x6f4] sm:$0xf]
        %v1148 = vld [vmem:[%s398 + $0x6f8] sm:$0xf]
        %v1149 = vld [vmem:[%s398 + $0x6fc] sm:$0xf]
        %v1154 = vcombine.high %v698, %v698
        %v1156 = vunpack.c.l.s4 1966171168
        %v1157 = vunpack.c.0.s8 %v1156
        %v1158 = vlaneseq
        %v1159 = vshrl.u32 %v1158, 7
        %v1160 = vsub.s32 %v1157, %v1159
        %v1161 = vrot.slane %v698, %v1160
        %v1163 = vunpack.c.l.s4 1966171168
        %v1164 = vunpack.c.0.s8 %v1163
        %v1165 = vlaneseq
        %v1166 = vshrl.u32 %v1165, 7
        %v1167 = vsub.s32 %v1164, %v1166
        %v1168 = vrot.slane %v1154, %v1167
        %v1169 = vcombine.high %v1161, %v1161
        %v1170 = vcombine.high %v1168, %v1168
        %v1172 = vunpack.c.l.s4 1966171168
        %v1173 = vunpack.c.0.s8 %v1172
        %v1174 = vlaneseq
        %v1175 = vshrl.u32 %v1174, 7
        %v1176 = vsub.s32 %v1173, %v1175
        %v1177 = vrot.slane %v1161, %v1176
        %v1179 = vunpack.c.l.s4 1966171168
        %v1180 = vunpack.c.0.s8 %v1179
        %v1181 = vlaneseq
        %v1182 = vshrl.u32 %v1181, 7
        %v1183 = vsub.s32 %v1180, %v1182
        %v1184 = vrot.slane %v1168, %v1183
        %v1186 = vunpack.c.l.s4 1966171168
        %v1187 = vunpack.c.0.s8 %v1186
        %v1188 = vlaneseq
        %v1189 = vshrl.u32 %v1188, 7
        %v1190 = vsub.s32 %v1187, %v1189
        %v1191 = vrot.slane %v1169, %v1190
        %v1193 = vunpack.c.l.s4 1966171168
        %v1194 = vunpack.c.0.s8 %v1193
        %v1195 = vlaneseq
        %v1196 = vshrl.u32 %v1195, 7
        %v1197 = vsub.s32 %v1194, %v1196
        %v1198 = vrot.slane %v1170, %v1197
        %v1199 = vcombine.high %v1177, %v1177
        %v1200 = vcombine.high %v1184, %v1184
        %v1201 = vcombine.high %v1191, %v1191
        %v1202 = vcombine.high %v1198, %v1198
        %v1203 = vcombine.high %v699, %v699
        %v1205 = vunpack.c.l.s4 1966171168
        %v1206 = vunpack.c.0.s8 %v1205
        %v1207 = vlaneseq
        %v1208 = vshrl.u32 %v1207, 7
        %v1209 = vsub.s32 %v1206, %v1208
        %v1210 = vrot.slane %v699, %v1209
        %v1212 = vunpack.c.l.s4 1966171168
        %v1213 = vunpack.c.0.s8 %v1212
        %v1214 = vlaneseq
        %v1215 = vshrl.u32 %v1214, 7
        %v1216 = vsub.s32 %v1213, %v1215
        %v1217 = vrot.slane %v1203, %v1216
        %v1218 = vcombine.high %v1210, %v1210
        %v1219 = vcombine.high %v1217, %v1217
        %v1221 = vunpack.c.l.s4 1966171168
        %v1222 = vunpack.c.0.s8 %v1221
        %v1223 = vlaneseq
        %v1224 = vshrl.u32 %v1223, 7
        %v1225 = vsub.s32 %v1222, %v1224
        %v1226 = vrot.slane %v1210, %v1225
        %v1228 = vunpack.c.l.s4 1966171168
        %v1229 = vunpack.c.0.s8 %v1228
        %v1230 = vlaneseq
        %v1231 = vshrl.u32 %v1230, 7
        %v1232 = vsub.s32 %v1229, %v1231
        %v1233 = vrot.slane %v1217, %v1232
        %v1235 = vunpack.c.l.s4 1966171168
        %v1236 = vunpack.c.0.s8 %v1235
        %v1237 = vlaneseq
        %v1238 = vshrl.u32 %v1237, 7
        %v1239 = vsub.s32 %v1236, %v1238
        %v1240 = vrot.slane %v1218, %v1239
        %v1242 = vunpack.c.l.s4 1966171168
        %v1243 = vunpack.c.0.s8 %v1242
        %v1244 = vlaneseq
        %v1245 = vshrl.u32 %v1244, 7
        %v1246 = vsub.s32 %v1243, %v1245
        %v1247 = vrot.slane %v1219, %v1246
        %v1248 = vcombine.high %v1226, %v1226
        %v1249 = vcombine.high %v1233, %v1233
        %v1250 = vcombine.high %v1240, %v1240
        %v1251 = vcombine.high %v1247, %v1247
        %v1252 = vcombine.high %v700, %v700
        %v1254 = vunpack.c.l.s4 1966171168
        %v1255 = vunpack.c.0.s8 %v1254
        %v1256 = vlaneseq
        %v1257 = vshrl.u32 %v1256, 7
        %v1258 = vsub.s32 %v1255, %v1257
        %v1259 = vrot.slane %v700, %v1258
        %v1261 = vunpack.c.l.s4 1966171168
        %v1262 = vunpack.c.0.s8 %v1261
        %v1263 = vlaneseq
        %v1264 = vshrl.u32 %v1263, 7
        %v1265 = vsub.s32 %v1262, %v1264
        %v1266 = vrot.slane %v1252, %v1265
        %v1267 = vcombine.high %v1259, %v1259
        %v1268 = vcombine.high %v1266, %v1266
        %v1270 = vunpack.c.l.s4 1966171168
        %v1271 = vunpack.c.0.s8 %v1270
        %v1272 = vlaneseq
        %v1273 = vshrl.u32 %v1272, 7
        %v1274 = vsub.s32 %v1271, %v1273
        %v1275 = vrot.slane %v1259, %v1274
        %v1277 = vunpack.c.l.s4 1966171168
        %v1278 = vunpack.c.0.s8 %v1277
        %v1279 = vlaneseq
        %v1280 = vshrl.u32 %v1279, 7
        %v1281 = vsub.s32 %v1278, %v1280
        %v1282 = vrot.slane %v1266, %v1281
        %v1284 = vunpack.c.l.s4 1966171168
        %v1285 = vunpack.c.0.s8 %v1284
        %v1286 = vlaneseq
        %v1287 = vshrl.u32 %v1286, 7
        %v1288 = vsub.s32 %v1285, %v1287
        %v1289 = vrot.slane %v1267, %v1288
        %v1291 = vunpack.c.l.s4 1966171168
        %v1292 = vunpack.c.0.s8 %v1291
        %v1293 = vlaneseq
        %v1294 = vshrl.u32 %v1293, 7
        %v1295 = vsub.s32 %v1292, %v1294
        %v1296 = vrot.slane %v1268, %v1295
        %v1297 = vcombine.high %v1275, %v1275
        %v1298 = vcombine.high %v1282, %v1282
        %v1299 = vcombine.high %v1289, %v1289
        %v1300 = vcombine.high %v1296, %v1296
        %v1302 = vunpack.c.l.s4 1966171168
        %v1303 = vunpack.c.0.s8 %v1302
        %v1304 = vlaneseq
        %v1305 = vshrl.u32 %v1304, 7
        %v1306 = vsub.s32 %v1303, %v1305
        %v1307 = vrot.slane %v701, %v1306
        %v1308 = vcombine.high %v1307, %v1307
        %v1310 = vunpack.c.l.s4 1966171168
        %v1311 = vunpack.c.0.s8 %v1310
        %v1312 = vlaneseq
        %v1313 = vshrl.u32 %v1312, 7
        %v1314 = vsub.s32 %v1311, %v1313
        %v1315 = vrot.slane %v1307, %v1314
        %v1317 = vunpack.c.l.s4 1966171168
        %v1318 = vunpack.c.0.s8 %v1317
        %v1319 = vlaneseq
        %v1320 = vshrl.u32 %v1319, 7
        %v1321 = vsub.s32 %v1318, %v1320
        %v1322 = vrot.slane %v1308, %v1321
        %v1323 = vcombine.high %v1315, %v1315
        %v1324 = vcombine.high %v1322, %v1322
        %v1801 = vunpack.c.l.b16 %v702
        %v1802 = vunpack.c.l.b16 %v703
        %v1803 = vunpack.c.l.b16 %v704
        %v1804 = vunpack.c.l.b16 %v705
        %v1805 = vunpack.c.l.b16 %v706
        %v1806 = vunpack.c.l.b16 %v707
        %v1807 = vunpack.c.l.b16 %v708
        %v1808 = vunpack.c.l.b16 %v709
        %v1809 = vunpack.c.l.b16 %v710
        %v1810 = vunpack.c.l.b16 %v711
        %v1811 = vunpack.c.l.b16 %v712
        %v1812 = vunpack.c.l.b16 %v713
        %v1813 = vunpack.c.l.b16 %v714
        %v1814 = vunpack.c.l.b16 %v715
        %v1815 = vunpack.c.l.b16 %v716
        %v1816 = vunpack.c.l.b16 %v717
        %v1817 = vunpack.c.l.b16 %v718
        %v1818 = vunpack.c.l.b16 %v719
        %v1819 = vunpack.c.l.b16 %v720
        %v1820 = vunpack.c.l.b16 %v721
        %v1821 = vunpack.c.l.b16 %v722
        %v1822 = vunpack.c.l.b16 %v723
        %v1823 = vunpack.c.l.b16 %v724
        %v1824 = vunpack.c.l.b16 %v725
        %v1825 = vunpack.c.l.b16 %v726
        %v1826 = vunpack.c.l.b16 %v727
        %v1827 = vunpack.c.l.b16 %v728
        %v1828 = vunpack.c.l.b16 %v729
        %v1829 = vunpack.c.l.b16 %v730
        %v1830 = vunpack.c.l.b16 %v731
        %v1831 = vunpack.c.l.b16 %v732
        %v1832 = vunpack.c.l.b16 %v733
        %v1833 = vunpack.c.l.b16 %v734
        %v1834 = vunpack.c.l.b16 %v735
        %v1835 = vunpack.c.l.b16 %v736
        %v1836 = vunpack.c.l.b16 %v737
        %v1837 = vunpack.c.l.b16 %v738
        %v1838 = vunpack.c.l.b16 %v739
        %v1839 = vunpack.c.l.b16 %v740
        %v1840 = vunpack.c.l.b16 %v741
        %v1841 = vunpack.c.l.b16 %v742
        %v1842 = vunpack.c.l.b16 %v743
        %v1843 = vunpack.c.l.b16 %v744
        %v1844 = vunpack.c.l.b16 %v745
        %v1845 = vunpack.c.l.b16 %v746
        %v1846 = vunpack.c.l.b16 %v747
        %v1847 = vunpack.c.l.b16 %v748
        %v1848 = vunpack.c.l.b16 %v749
        %v1849 = vunpack.c.l.b16 %v750
        %v1850 = vunpack.c.l.b16 %v751
        %v1851 = vunpack.c.l.b16 %v752
        %v1852 = vunpack.c.l.b16 %v753
        %v1853 = vunpack.c.l.b16 %v754
        %v1854 = vunpack.c.l.b16 %v755
        %v1855 = vunpack.c.l.b16 %v756
        %v1856 = vunpack.c.l.b16 %v757
        %v1857 = vunpack.c.l.b16 %v758
        %v1858 = vunpack.c.l.b16 %v759
        %v1859 = vunpack.c.l.b16 %v760
        %v1860 = vunpack.c.l.b16 %v761
        %v1861 = vunpack.c.l.b16 %v762
        %v1862 = vunpack.c.l.b16 %v763
        %v1863 = vunpack.c.l.b16 %v764
        %v1864 = vunpack.c.l.b16 %v765
        %v1865 = vunpack.c.l.b16 %v766
        %v1866 = vunpack.c.l.b16 %v767
        %v1867 = vunpack.c.l.b16 %v768
        %v1868 = vunpack.c.l.b16 %v769
        %v1869 = vunpack.c.l.b16 %v770
        %v1870 = vunpack.c.l.b16 %v771
        %v1871 = vunpack.c.l.b16 %v772
        %v1872 = vunpack.c.l.b16 %v773
        %v1873 = vunpack.c.l.b16 %v774
        %v1874 = vunpack.c.l.b16 %v775
        %v1875 = vunpack.c.l.b16 %v776
        %v1876 = vunpack.c.l.b16 %v777
        %v1877 = vunpack.c.l.b16 %v778
        %v1878 = vunpack.c.l.b16 %v779
        %v1879 = vunpack.c.l.b16 %v780
        %v1880 = vunpack.c.l.b16 %v781
        %v1881 = vunpack.c.l.b16 %v782
        %v1882 = vunpack.c.l.b16 %v783
        %v1883 = vunpack.c.l.b16 %v784
        %v1884 = vunpack.c.l.b16 %v785
        %v1885 = vunpack.c.l.b16 %v786
        %v1886 = vunpack.c.l.b16 %v787
        %v1887 = vunpack.c.l.b16 %v788
        %v1888 = vunpack.c.l.b16 %v789
        %v1889 = vunpack.c.l.b16 %v790
        %v1890 = vunpack.c.l.b16 %v791
        %v1891 = vunpack.c.l.b16 %v792
        %v1892 = vunpack.c.l.b16 %v793
        %v1893 = vunpack.c.l.b16 %v794
        %v1894 = vunpack.c.l.b16 %v795
        %v1895 = vunpack.c.l.b16 %v796
        %v1896 = vunpack.c.l.b16 %v797
        %v1897 = vunpack.c.l.b16 %v798
        %v1898 = vunpack.c.l.b16 %v799
        %v1899 = vunpack.c.l.b16 %v800
        %v1900 = vunpack.c.l.b16 %v801
        %v1901 = vunpack.c.l.b16 %v802
        %v1902 = vunpack.c.l.b16 %v803
        %v1903 = vunpack.c.l.b16 %v804
        %v1904 = vunpack.c.l.b16 %v805
        %v1905 = vunpack.c.l.b16 %v806
        %v1906 = vunpack.c.l.b16 %v807
        %v1907 = vunpack.c.l.b16 %v808
        %v1908 = vunpack.c.l.b16 %v809
        %v1909 = vunpack.c.l.b16 %v810
        %v1910 = vunpack.c.l.b16 %v811
        %v1911 = vunpack.c.l.b16 %v812
        %v1912 = vunpack.c.l.b16 %v813
        %v1913 = vunpack.c.l.b16 %v814
        %v1914 = vunpack.c.l.b16 %v815
        %v1915 = vunpack.c.l.b16 %v816
        %v1916 = vunpack.c.l.b16 %v817
        %v1917 = vunpack.c.l.b16 %v818
        %v1918 = vunpack.c.l.b16 %v819
        %v1919 = vunpack.c.l.b16 %v820
        %v1920 = vunpack.c.l.b16 %v821
        %v1921 = vunpack.c.l.b16 %v822
        %v1922 = vunpack.c.l.b16 %v823
        %v1923 = vunpack.c.l.b16 %v824
        %v1924 = vunpack.c.l.b16 %v825
        %v1925 = vunpack.c.l.b16 %v826
        %v1926 = vunpack.c.l.b16 %v827
        %v1927 = vunpack.c.l.b16 %v828
        %v1928 = vunpack.c.l.b16 %v829
        %v1929 = vunpack.c.l.b16 %v830
        %v1930 = vunpack.c.l.b16 %v831
        %v1931 = vunpack.c.l.b16 %v832
        %v1932 = vunpack.c.l.b16 %v833
        %v1933 = vunpack.c.l.b16 %v834
        %v1934 = vunpack.c.l.b16 %v835
        %v1935 = vunpack.c.l.b16 %v836
        %v1936 = vunpack.c.l.b16 %v837
        %v1937 = vunpack.c.l.b16 %v838
        %v1938 = vunpack.c.l.b16 %v839
        %v1939 = vunpack.c.l.b16 %v840
        %v1940 = vunpack.c.l.b16 %v841
        %v1941 = vunpack.c.l.b16 %v842
        %v1942 = vunpack.c.l.b16 %v843
        %v1943 = vunpack.c.l.b16 %v844
        %v1944 = vunpack.c.l.b16 %v845
        %v1945 = vunpack.c.l.b16 %v846
        %v1946 = vunpack.c.l.b16 %v847
        %v1947 = vunpack.c.l.b16 %v848
        %v1948 = vunpack.c.l.b16 %v849
        %v1949 = vunpack.c.l.b16 %v850
        %v1950 = vunpack.c.l.b16 %v851
        %v1951 = vunpack.c.l.b16 %v852
        %v1952 = vunpack.c.l.b16 %v853
        %v1953 = vunpack.c.l.b16 %v854
        %v1954 = vunpack.c.l.b16 %v855
        %v1955 = vunpack.c.l.b16 %v856
        %v1956 = vunpack.c.l.b16 %v857
        %v1957 = vunpack.c.l.b16 %v858
        %v1958 = vunpack.c.l.b16 %v859
        %v1959 = vunpack.c.l.b16 %v860
        %v1960 = vunpack.c.l.b16 %v861
        %v1961 = vunpack.c.l.b16 %v862
        %v1962 = vunpack.c.l.b16 %v863
        %v1963 = vunpack.c.l.b16 %v864
        %v1964 = vunpack.c.l.b16 %v865
        %v1965 = vunpack.c.l.b16 %v866
        %v1966 = vunpack.c.l.b16 %v867
        %v1967 = vunpack.c.l.b16 %v868
        %v1968 = vunpack.c.l.b16 %v869
        %v1969 = vunpack.c.l.b16 %v870
        %v1970 = vunpack.c.l.b16 %v871
        %v1971 = vunpack.c.l.b16 %v872
        %v1972 = vunpack.c.l.b16 %v873
        %v1973 = vunpack.c.l.b16 %v874
        %v1974 = vunpack.c.l.b16 %v875
        %v1975 = vunpack.c.l.b16 %v876
        %v1976 = vunpack.c.l.b16 %v877
        %v1977 = vunpack.c.l.b16 %v878
        %v1978 = vunpack.c.l.b16 %v879
        %v1979 = vunpack.c.l.b16 %v880
        %v1980 = vunpack.c.l.b16 %v881
        %v1981 = vunpack.c.l.b16 %v882
        %v1982 = vunpack.c.l.b16 %v883
        %v1983 = vunpack.c.l.b16 %v884
        %v1984 = vunpack.c.l.b16 %v885
        %v1985 = vunpack.c.l.b16 %v886
        %v1986 = vunpack.c.l.b16 %v887
        %v1987 = vunpack.c.l.b16 %v888
        %v1988 = vunpack.c.l.b16 %v889
        %v1989 = vunpack.c.l.b16 %v890
        %v1990 = vunpack.c.l.b16 %v891
        %v1991 = vunpack.c.l.b16 %v892
        %v1992 = vunpack.c.l.b16 %v893
        %v1993 = vunpack.c.l.b16 %v894
        %v1994 = vunpack.c.l.b16 %v895
        %v1995 = vunpack.c.l.b16 %v896
        %v1996 = vunpack.c.l.b16 %v897
        %v1997 = vunpack.c.l.b16 %v898
        %v1998 = vunpack.c.l.b16 %v899
        %v1999 = vunpack.c.l.b16 %v900
        %v2000 = vunpack.c.l.b16 %v901
        %v2001 = vunpack.c.l.b16 %v902
        %v2002 = vunpack.c.l.b16 %v903
        %v2003 = vunpack.c.l.b16 %v904
        %v2004 = vunpack.c.l.b16 %v905
        %v2005 = vunpack.c.l.b16 %v906
        %v2006 = vunpack.c.l.b16 %v907
        %v2007 = vunpack.c.l.b16 %v908
        %v2008 = vunpack.c.l.b16 %v909
        %v2009 = vunpack.c.l.b16 %v910
        %v2010 = vunpack.c.l.b16 %v911
        %v2011 = vunpack.c.l.b16 %v912
        %v2012 = vunpack.c.l.b16 %v913
        %v2013 = vunpack.c.l.b16 %v914
        %v2014 = vunpack.c.l.b16 %v915
        %v2015 = vunpack.c.l.b16 %v916
        %v2016 = vunpack.c.l.b16 %v917
        %v2017 = vunpack.c.l.b16 %v918
        %v2018 = vunpack.c.l.b16 %v919
        %v2019 = vunpack.c.l.b16 %v920
        %v2020 = vunpack.c.l.b16 %v921
        %v2021 = vunpack.c.l.b16 %v922
        %v2022 = vunpack.c.l.b16 %v923
        %v2023 = vunpack.c.l.b16 %v924
        %v2024 = vunpack.c.l.b16 %v925
        %v2025 = vunpack.c.l.b16 %v926
        %v2026 = vunpack.c.l.b16 %v927
        %v2027 = vunpack.c.l.b16 %v928
        %v2028 = vunpack.c.l.b16 %v929
        %v2029 = vunpack.c.l.b16 %v930
        %v2030 = vunpack.c.l.b16 %v931
        %v2031 = vunpack.c.l.b16 %v932
        %v2032 = vunpack.c.l.b16 %v933
        %v2033 = vunpack.c.l.b16 %v934
        %v2034 = vunpack.c.l.b16 %v935
        %v2035 = vunpack.c.l.b16 %v936
        %v2036 = vunpack.c.l.b16 %v937
        %v2037 = vunpack.c.l.b16 %v938
        %v2038 = vunpack.c.l.b16 %v939
        %v2039 = vunpack.c.l.b16 %v940
        %v2040 = vunpack.c.l.b16 %v941
        %v2041 = vunpack.c.l.b16 %v942
        %v2042 = vunpack.c.l.b16 %v943
        %v2043 = vunpack.c.l.b16 %v944
        %v2044 = vunpack.c.l.b16 %v945
        %v2045 = vunpack.c.l.b16 %v946
        %v2046 = vunpack.c.l.b16 %v947
        %v2047 = vunpack.c.l.b16 %v948
        %v2048 = vunpack.c.l.b16 %v949
        %v2049 = vunpack.c.l.b16 %v950
        %v2050 = vunpack.c.l.b16 %v951
        %v2051 = vunpack.c.l.b16 %v952
        %v2052 = vunpack.c.l.b16 %v953
        %v2053 = vunpack.c.l.b16 %v954
        %v2054 = vunpack.c.l.b16 %v955
        %v2055 = vunpack.c.l.b16 %v956
        %v2056 = vunpack.c.l.b16 %v957
        %v2057 = vunpack.c.l.b16 %v958
        %v2058 = vunpack.c.l.b16 %v959
        %v2059 = vunpack.c.l.b16 %v960
        %v2060 = vunpack.c.l.b16 %v961
        %v2061 = vunpack.c.l.b16 %v962
        %v2062 = vunpack.c.l.b16 %v963
        %v2063 = vunpack.c.l.b16 %v964
        %v2064 = vunpack.c.l.b16 %v965
        %v2065 = vunpack.c.l.b16 %v966
        %v2066 = vunpack.c.l.b16 %v967
        %v2067 = vunpack.c.l.b16 %v968
        %v2068 = vunpack.c.l.b16 %v969
        %v2069 = vunpack.c.l.b16 %v970
        %v2070 = vunpack.c.l.b16 %v971
        %v2071 = vunpack.c.l.b16 %v972
        %v2072 = vunpack.c.l.b16 %v973
        %v2073 = vunpack.c.l.b16 %v974
        %v2074 = vunpack.c.l.b16 %v975
        %v2075 = vunpack.c.l.b16 %v976
        %v2076 = vunpack.c.l.b16 %v977
        %v2077 = vunpack.c.l.b16 %v978
        %v2078 = vunpack.c.l.b16 %v979
        %v2079 = vunpack.c.l.b16 %v980
        %v2080 = vunpack.c.l.b16 %v981
        %v2081 = vunpack.c.l.b16 %v982
        %v2082 = vunpack.c.l.b16 %v983
        %v2083 = vunpack.c.l.b16 %v984
        %v2084 = vunpack.c.l.b16 %v985
        %v2085 = vunpack.c.l.b16 %v986
        %v2086 = vunpack.c.l.b16 %v987
        %v2087 = vunpack.c.l.b16 %v988
        %v2088 = vunpack.c.l.b16 %v989
        %v2089 = vunpack.c.l.b16 %v990
        %v2090 = vunpack.c.l.b16 %v991
        %v2091 = vunpack.c.l.b16 %v992
        %v2092 = vunpack.c.l.b16 %v993
        %v2093 = vunpack.c.l.b16 %v994
        %v2094 = vunpack.c.l.b16 %v995
        %v2095 = vunpack.c.l.b16 %v996
        %v2096 = vunpack.c.l.b16 %v997
        %v2097 = vunpack.c.l.b16 %v998
        %v2098 = vunpack.c.l.b16 %v999
        %v2099 = vunpack.c.l.b16 %v1000
        %v2100 = vunpack.c.l.b16 %v1001
        %v2101 = vunpack.c.l.b16 %v1002
        %v2102 = vunpack.c.l.b16 %v1003
        %v2103 = vunpack.c.l.b16 %v1004
        %v2104 = vunpack.c.l.b16 %v1005
        %v2105 = vunpack.c.l.b16 %v1006
        %v2106 = vunpack.c.l.b16 %v1007
        %v2107 = vunpack.c.l.b16 %v1008
        %v2108 = vunpack.c.l.b16 %v1009
        %v2109 = vunpack.c.l.b16 %v1010
        %v2110 = vunpack.c.l.b16 %v1011
        %v2111 = vunpack.c.l.b16 %v1012
        %v2112 = vunpack.c.l.b16 %v1013
        %v2113 = vunpack.c.l.b16 %v1014
        %v2114 = vunpack.c.l.b16 %v1015
        %v2115 = vunpack.c.l.b16 %v1016
        %v2116 = vunpack.c.l.b16 %v1017
        %v2117 = vunpack.c.l.b16 %v1018
        %v2118 = vunpack.c.l.b16 %v1019
        %v2119 = vunpack.c.l.b16 %v1020
        %v2120 = vunpack.c.l.b16 %v1021
        %v2121 = vunpack.c.l.b16 %v1022
        %v2122 = vunpack.c.l.b16 %v1023
        %v2123 = vunpack.c.l.b16 %v1024
        %v2124 = vunpack.c.l.b16 %v1025
        %v2125 = vunpack.c.l.b16 %v1026
        %v2126 = vunpack.c.l.b16 %v1027
        %v2127 = vunpack.c.l.b16 %v1028
        %v2128 = vunpack.c.l.b16 %v1029
        %v2129 = vunpack.c.l.b16 %v1030
        %v2130 = vunpack.c.l.b16 %v1031
        %v2131 = vunpack.c.l.b16 %v1032
        %v2132 = vunpack.c.l.b16 %v1033
        %v2133 = vunpack.c.l.b16 %v1034
        %v2134 = vunpack.c.l.b16 %v1035
        %v2135 = vunpack.c.l.b16 %v1036
        %v2136 = vunpack.c.l.b16 %v1037
        %v2137 = vunpack.c.l.b16 %v1038
        %v2138 = vunpack.c.l.b16 %v1039
        %v2139 = vunpack.c.l.b16 %v1040
        %v2140 = vunpack.c.l.b16 %v1041
        %v2141 = vunpack.c.l.b16 %v1042
        %v2142 = vunpack.c.l.b16 %v1043
        %v2143 = vunpack.c.l.b16 %v1044
        %v2144 = vunpack.c.l.b16 %v1045
        %v2145 = vunpack.c.l.b16 %v1046
        %v2146 = vunpack.c.l.b16 %v1047
        %v2147 = vunpack.c.l.b16 %v1048
        %v2148 = vunpack.c.l.b16 %v1049
        %v2149 = vunpack.c.l.b16 %v1050
        %v2150 = vunpack.c.l.b16 %v1051
        %v2151 = vunpack.c.l.b16 %v1052
        %v2152 = vunpack.c.l.b16 %v1053
        %v2153 = vunpack.c.l.b16 %v1054
        %v2154 = vunpack.c.l.b16 %v1055
        %v2155 = vunpack.c.l.b16 %v1056
        %v2156 = vunpack.c.l.b16 %v1057
        %v2157 = vunpack.c.l.b16 %v1058
        %v2158 = vunpack.c.l.b16 %v1059
        %v2159 = vunpack.c.l.b16 %v1060
        %v2160 = vunpack.c.l.b16 %v1061
        %v2161 = vunpack.c.l.b16 %v1062
        %v2162 = vunpack.c.l.b16 %v1063
        %v2163 = vunpack.c.l.b16 %v1064
        %v2164 = vunpack.c.l.b16 %v1065
        %v2165 = vunpack.c.l.b16 %v1066
        %v2166 = vunpack.c.l.b16 %v1067
        %v2167 = vunpack.c.l.b16 %v1068
        %v2168 = vunpack.c.l.b16 %v1069
        %v2169 = vunpack.c.l.b16 %v1070
        %v2170 = vunpack.c.l.b16 %v1071
        %v2171 = vunpack.c.l.b16 %v1072
        %v2172 = vunpack.c.l.b16 %v1073
        %v2173 = vunpack.c.l.b16 %v1074
        %v2174 = vunpack.c.l.b16 %v1075
        %v2175 = vunpack.c.l.b16 %v1076
        %v2176 = vunpack.c.l.b16 %v1077
        %v2177 = vunpack.c.l.b16 %v1078
        %v2178 = vunpack.c.l.b16 %v1079
        %v2179 = vunpack.c.l.b16 %v1080
        %v2180 = vunpack.c.l.b16 %v1081
        %v2181 = vunpack.c.l.b16 %v1082
        %v2182 = vunpack.c.l.b16 %v1083
        %v2183 = vunpack.c.l.b16 %v1084
        %v2184 = vunpack.c.l.b16 %v1085
        %v2185 = vunpack.c.l.b16 %v1086
        %v2186 = vunpack.c.l.b16 %v1087
        %v2187 = vunpack.c.l.b16 %v1088
        %v2188 = vunpack.c.l.b16 %v1089
        %v2189 = vunpack.c.l.b16 %v1090
        %v2190 = vunpack.c.l.b16 %v1091
        %v2191 = vunpack.c.l.b16 %v1092
        %v2192 = vunpack.c.l.b16 %v1093
        %v2193 = vunpack.c.l.b16 %v1094
        %v2194 = vunpack.c.l.b16 %v1095
        %v2195 = vunpack.c.l.b16 %v1096
        %v2196 = vunpack.c.l.b16 %v1097
        %v2197 = vunpack.c.l.b16 %v1098
        %v2198 = vunpack.c.l.b16 %v1099
        %v2199 = vunpack.c.l.b16 %v1100
        %v2200 = vunpack.c.l.b16 %v1101
        %v2201 = vunpack.c.l.b16 %v1102
        %v2202 = vunpack.c.l.b16 %v1103
        %v2203 = vunpack.c.l.b16 %v1104
        %v2204 = vunpack.c.l.b16 %v1105
        %v2205 = vunpack.c.l.b16 %v1106
        %v2206 = vunpack.c.l.b16 %v1107
        %v2207 = vunpack.c.l.b16 %v1108
        %v2208 = vunpack.c.l.b16 %v1109
        %v2209 = vunpack.c.l.b16 %v1110
        %v2210 = vunpack.c.l.b16 %v1111
        %v2211 = vunpack.c.l.b16 %v1112
        %v2212 = vunpack.c.l.b16 %v1113
        %v2213 = vunpack.c.l.b16 %v1114
        %v2214 = vunpack.c.l.b16 %v1115
        %v2215 = vunpack.c.l.b16 %v1116
        %v2216 = vunpack.c.l.b16 %v1117
        %v2217 = vunpack.c.l.b16 %v1118
        %v2218 = vunpack.c.l.b16 %v1119
        %v2219 = vunpack.c.l.b16 %v1120
        %v2220 = vunpack.c.l.b16 %v1121
        %v2221 = vunpack.c.l.b16 %v1122
        %v2222 = vunpack.c.l.b16 %v1123
        %v2223 = vunpack.c.l.b16 %v1124
        %v2224 = vunpack.c.l.b16 %v1125
        %v2225 = vunpack.c.l.b16 %v1126
        %v2226 = vunpack.c.l.b16 %v1127
        %v2227 = vunpack.c.l.b16 %v1128
        %v2228 = vunpack.c.l.b16 %v1129
        %v2229 = vunpack.c.l.b16 %v1130
        %v2230 = vunpack.c.l.b16 %v1131
        %v2231 = vunpack.c.l.b16 %v1132
        %v2232 = vunpack.c.l.b16 %v1133
        %v2233 = vunpack.c.l.b16 %v1134
        %v2234 = vunpack.c.l.b16 %v1135
        %v2235 = vunpack.c.l.b16 %v1136
        %v2236 = vunpack.c.l.b16 %v1137
        %v2237 = vunpack.c.l.b16 %v1138
        %v2238 = vunpack.c.l.b16 %v1139
        %v2239 = vunpack.c.l.b16 %v1140
        %v2240 = vunpack.c.l.b16 %v1141
        %v2241 = vunpack.c.l.b16 %v1142
        %v2242 = vunpack.c.l.b16 %v1143
        %v2243 = vunpack.c.l.b16 %v1144
        %v2244 = vunpack.c.l.b16 %v1145
        %v2245 = vunpack.c.l.b16 %v1146
        %v2246 = vunpack.c.l.b16 %v1147
        %v2247 = vunpack.c.l.b16 %v1148
        %v2248 = vunpack.c.l.b16 %v1149
        %v2249 = vpack.c.b16 %v1802, %v1801
        %v2250 = vpack.c.b16 %v1804, %v1803
        %v2251 = vpack.c.b16 %v1806, %v1805
        %v2252 = vpack.c.b16 %v1808, %v1807
        %v2253 = vpack.c.b16 %v1810, %v1809
        %v2254 = vpack.c.b16 %v1812, %v1811
        %v2255 = vpack.c.b16 %v1814, %v1813
        %v2256 = vpack.c.b16 %v1816, %v1815
        %v2257 = vpack.c.b16 %v1818, %v1817
        %v2258 = vpack.c.b16 %v1820, %v1819
        %v2259 = vpack.c.b16 %v1822, %v1821
        %v2260 = vpack.c.b16 %v1824, %v1823
        %v2261 = vpack.c.b16 %v1826, %v1825
        %v2262 = vpack.c.b16 %v1828, %v1827
        %v2263 = vpack.c.b16 %v1830, %v1829
        %v2264 = vpack.c.b16 %v1832, %v1831
        %v2265 = vpack.c.b16 %v1834, %v1833
        %v2266 = vpack.c.b16 %v1836, %v1835
        %v2267 = vpack.c.b16 %v1838, %v1837
        %v2268 = vpack.c.b16 %v1840, %v1839
        %v2269 = vpack.c.b16 %v1842, %v1841
        %v2270 = vpack.c.b16 %v1844, %v1843
        %v2271 = vpack.c.b16 %v1846, %v1845
        %v2272 = vpack.c.b16 %v1848, %v1847
        %v2273 = vpack.c.b16 %v1850, %v1849
        %v2274 = vpack.c.b16 %v1852, %v1851
        %v2275 = vpack.c.b16 %v1854, %v1853
        %v2276 = vpack.c.b16 %v1856, %v1855
        %v2277 = vpack.c.b16 %v1858, %v1857
        %v2278 = vpack.c.b16 %v1860, %v1859
        %v2279 = vpack.c.b16 %v1862, %v1861
        %v2280 = vpack.c.b16 %v1864, %v1863
        %v2281 = vpack.c.b16 %v1866, %v1865
        %v2282 = vpack.c.b16 %v1868, %v1867
        %v2283 = vpack.c.b16 %v1870, %v1869
        %v2284 = vpack.c.b16 %v1872, %v1871
        %v2285 = vpack.c.b16 %v1874, %v1873
        %v2286 = vpack.c.b16 %v1876, %v1875
        %v2287 = vpack.c.b16 %v1878, %v1877
        %v2288 = vpack.c.b16 %v1880, %v1879
        %v2289 = vpack.c.b16 %v1882, %v1881
        %v2290 = vpack.c.b16 %v1884, %v1883
        %v2291 = vpack.c.b16 %v1886, %v1885
        %v2292 = vpack.c.b16 %v1888, %v1887
        %v2293 = vpack.c.b16 %v1890, %v1889
        %v2294 = vpack.c.b16 %v1892, %v1891
        %v2295 = vpack.c.b16 %v1894, %v1893
        %v2296 = vpack.c.b16 %v1896, %v1895
        %v2297 = vpack.c.b16 %v1898, %v1897
        %v2298 = vpack.c.b16 %v1900, %v1899
        %v2299 = vpack.c.b16 %v1902, %v1901
        %v2300 = vpack.c.b16 %v1904, %v1903
        %v2301 = vpack.c.b16 %v1906, %v1905
        %v2302 = vpack.c.b16 %v1908, %v1907
        %v2303 = vpack.c.b16 %v1910, %v1909
        %v2304 = vpack.c.b16 %v1912, %v1911
        %v2305 = vpack.c.b16 %v1914, %v1913
        %v2306 = vpack.c.b16 %v1916, %v1915
        %v2307 = vpack.c.b16 %v1918, %v1917
        %v2308 = vpack.c.b16 %v1920, %v1919
        %v2309 = vpack.c.b16 %v1922, %v1921
        %v2310 = vpack.c.b16 %v1924, %v1923
        %v2311 = vpack.c.b16 %v1926, %v1925
        %v2312 = vpack.c.b16 %v1928, %v1927
        %v2313 = vpack.c.b16 %v1930, %v1929
        %v2314 = vpack.c.b16 %v1932, %v1931
        %v2315 = vpack.c.b16 %v1934, %v1933
        %v2316 = vpack.c.b16 %v1936, %v1935
        %v2317 = vpack.c.b16 %v1938, %v1937
        %v2318 = vpack.c.b16 %v1940, %v1939
        %v2319 = vpack.c.b16 %v1942, %v1941
        %v2320 = vpack.c.b16 %v1944, %v1943
        %v2321 = vpack.c.b16 %v1946, %v1945
        %v2322 = vpack.c.b16 %v1948, %v1947
        %v2323 = vpack.c.b16 %v1950, %v1949
        %v2324 = vpack.c.b16 %v1952, %v1951
        %v2325 = vpack.c.b16 %v1954, %v1953
        %v2326 = vpack.c.b16 %v1956, %v1955
        %v2327 = vpack.c.b16 %v1958, %v1957
        %v2328 = vpack.c.b16 %v1960, %v1959
        %v2329 = vpack.c.b16 %v1962, %v1961
        %v2330 = vpack.c.b16 %v1964, %v1963
        %v2331 = vpack.c.b16 %v1966, %v1965
        %v2332 = vpack.c.b16 %v1968, %v1967
        %v2333 = vpack.c.b16 %v1970, %v1969
        %v2334 = vpack.c.b16 %v1972, %v1971
        %v2335 = vpack.c.b16 %v1974, %v1973
        %v2336 = vpack.c.b16 %v1976, %v1975
        %v2337 = vpack.c.b16 %v1978, %v1977
        %v2338 = vpack.c.b16 %v1980, %v1979
        %v2339 = vpack.c.b16 %v1982, %v1981
        %v2340 = vpack.c.b16 %v1984, %v1983
        %v2341 = vpack.c.b16 %v1986, %v1985
        %v2342 = vpack.c.b16 %v1988, %v1987
        %v2343 = vpack.c.b16 %v1990, %v1989
        %v2344 = vpack.c.b16 %v1992, %v1991
        %v2345 = vpack.c.b16 %v1994, %v1993
        %v2346 = vpack.c.b16 %v1996, %v1995
        %v2347 = vpack.c.b16 %v1998, %v1997
        %v2348 = vpack.c.b16 %v2000, %v1999
        %v2349 = vpack.c.b16 %v2002, %v2001
        %v2350 = vpack.c.b16 %v2004, %v2003
        %v2351 = vpack.c.b16 %v2006, %v2005
        %v2352 = vpack.c.b16 %v2008, %v2007
        %v2353 = vpack.c.b16 %v2010, %v2009
        %v2354 = vpack.c.b16 %v2012, %v2011
        %v2355 = vpack.c.b16 %v2014, %v2013
        %v2356 = vpack.c.b16 %v2016, %v2015
        %v2357 = vpack.c.b16 %v2018, %v2017
        %v2358 = vpack.c.b16 %v2020, %v2019
        %v2359 = vpack.c.b16 %v2022, %v2021
        %v2360 = vpack.c.b16 %v2024, %v2023
        %v2361 = vpack.c.b16 %v2026, %v2025
        %v2362 = vpack.c.b16 %v2028, %v2027
        %v2363 = vpack.c.b16 %v2030, %v2029
        %v2364 = vpack.c.b16 %v2032, %v2031
        %v2365 = vpack.c.b16 %v2034, %v2033
        %v2366 = vpack.c.b16 %v2036, %v2035
        %v2367 = vpack.c.b16 %v2038, %v2037
        %v2368 = vpack.c.b16 %v2040, %v2039
        %v2369 = vpack.c.b16 %v2042, %v2041
        %v2370 = vpack.c.b16 %v2044, %v2043
        %v2371 = vpack.c.b16 %v2046, %v2045
        %v2372 = vpack.c.b16 %v2048, %v2047
        %v2373 = vpack.c.b16 %v2050, %v2049
        %v2374 = vpack.c.b16 %v2052, %v2051
        %v2375 = vpack.c.b16 %v2054, %v2053
        %v2376 = vpack.c.b16 %v2056, %v2055
        %v2377 = vpack.c.b16 %v2058, %v2057
        %v2378 = vpack.c.b16 %v2060, %v2059
        %v2379 = vpack.c.b16 %v2062, %v2061
        %v2380 = vpack.c.b16 %v2064, %v2063
        %v2381 = vpack.c.b16 %v2066, %v2065
        %v2382 = vpack.c.b16 %v2068, %v2067
        %v2383 = vpack.c.b16 %v2070, %v2069
        %v2384 = vpack.c.b16 %v2072, %v2071
        %v2385 = vpack.c.b16 %v2074, %v2073
        %v2386 = vpack.c.b16 %v2076, %v2075
        %v2387 = vpack.c.b16 %v2078, %v2077
        %v2388 = vpack.c.b16 %v2080, %v2079
        %v2389 = vpack.c.b16 %v2082, %v2081
        %v2390 = vpack.c.b16 %v2084, %v2083
        %v2391 = vpack.c.b16 %v2086, %v2085
        %v2392 = vpack.c.b16 %v2088, %v2087
        %v2393 = vpack.c.b16 %v2090, %v2089
        %v2394 = vpack.c.b16 %v2092, %v2091
        %v2395 = vpack.c.b16 %v2094, %v2093
        %v2396 = vpack.c.b16 %v2096, %v2095
        %v2397 = vpack.c.b16 %v2098, %v2097
        %v2398 = vpack.c.b16 %v2100, %v2099
        %v2399 = vpack.c.b16 %v2102, %v2101
        %v2400 = vpack.c.b16 %v2104, %v2103
        %v2401 = vpack.c.b16 %v2106, %v2105
        %v2402 = vpack.c.b16 %v2108, %v2107
        %v2403 = vpack.c.b16 %v2110, %v2109
        %v2404 = vpack.c.b16 %v2112, %v2111
        %v2405 = vpack.c.b16 %v2114, %v2113
        %v2406 = vpack.c.b16 %v2116, %v2115
        %v2407 = vpack.c.b16 %v2118, %v2117
        %v2408 = vpack.c.b16 %v2120, %v2119
        %v2409 = vpack.c.b16 %v2122, %v2121
        %v2410 = vpack.c.b16 %v2124, %v2123
        %v2411 = vpack.c.b16 %v2126, %v2125
        %v2412 = vpack.c.b16 %v2128, %v2127
        %v2413 = vpack.c.b16 %v2130, %v2129
        %v2414 = vpack.c.b16 %v2132, %v2131
        %v2415 = vpack.c.b16 %v2134, %v2133
        %v2416 = vpack.c.b16 %v2136, %v2135
        %v2417 = vpack.c.b16 %v2138, %v2137
        %v2418 = vpack.c.b16 %v2140, %v2139
        %v2419 = vpack.c.b16 %v2142, %v2141
        %v2420 = vpack.c.b16 %v2144, %v2143
        %v2421 = vpack.c.b16 %v2146, %v2145
        %v2422 = vpack.c.b16 %v2148, %v2147
        %v2423 = vpack.c.b16 %v2150, %v2149
        %v2424 = vpack.c.b16 %v2152, %v2151
        %v2425 = vpack.c.b16 %v2154, %v2153
        %v2426 = vpack.c.b16 %v2156, %v2155
        %v2427 = vpack.c.b16 %v2158, %v2157
        %v2428 = vpack.c.b16 %v2160, %v2159
        %v2429 = vpack.c.b16 %v2162, %v2161
        %v2430 = vpack.c.b16 %v2164, %v2163
        %v2431 = vpack.c.b16 %v2166, %v2165
        %v2432 = vpack.c.b16 %v2168, %v2167
        %v2433 = vpack.c.b16 %v2170, %v2169
        %v2434 = vpack.c.b16 %v2172, %v2171
        %v2435 = vpack.c.b16 %v2174, %v2173
        %v2436 = vpack.c.b16 %v2176, %v2175
        %v2437 = vpack.c.b16 %v2178, %v2177
        %v2438 = vpack.c.b16 %v2180, %v2179
        %v2439 = vpack.c.b16 %v2182, %v2181
        %v2440 = vpack.c.b16 %v2184, %v2183
        %v2441 = vpack.c.b16 %v2186, %v2185
        %v2442 = vpack.c.b16 %v2188, %v2187
        %v2443 = vpack.c.b16 %v2190, %v2189
        %v2444 = vpack.c.b16 %v2192, %v2191
        %v2445 = vpack.c.b16 %v2194, %v2193
        %v2446 = vpack.c.b16 %v2196, %v2195
        %v2447 = vpack.c.b16 %v2198, %v2197
        %v2448 = vpack.c.b16 %v2200, %v2199
        %v2449 = vpack.c.b16 %v2202, %v2201
        %v2450 = vpack.c.b16 %v2204, %v2203
        %v2451 = vpack.c.b16 %v2206, %v2205
        %v2452 = vpack.c.b16 %v2208, %v2207
        %v2453 = vpack.c.b16 %v2210, %v2209
        %v2454 = vpack.c.b16 %v2212, %v2211
        %v2455 = vpack.c.b16 %v2214, %v2213
        %v2456 = vpack.c.b16 %v2216, %v2215
        %v2457 = vpack.c.b16 %v2218, %v2217
        %v2458 = vpack.c.b16 %v2220, %v2219
        %v2459 = vpack.c.b16 %v2222, %v2221
        %v2460 = vpack.c.b16 %v2224, %v2223
        %v2461 = vpack.c.b16 %v2226, %v2225
        %v2462 = vpack.c.b16 %v2228, %v2227
        %v2463 = vpack.c.b16 %v2230, %v2229
        %v2464 = vpack.c.b16 %v2232, %v2231
        %v2465 = vpack.c.b16 %v2234, %v2233
        %v2466 = vpack.c.b16 %v2236, %v2235
        %v2467 = vpack.c.b16 %v2238, %v2237
        %v2468 = vpack.c.b16 %v2240, %v2239
        %v2469 = vpack.c.b16 %v2242, %v2241
        %v2470 = vpack.c.b16 %v2244, %v2243
        %v2471 = vpack.c.b16 %v2246, %v2245
        %v2472 = vpack.c.b16 %v2248, %v2247
        %2697 = vmatprep.subr.bf16.mxu0 0
        %2698 = vmatpush1.bf16.msra.mxu0 %v2249
        %2699 = vmatprep.subr.bf16.mxu0 0
        %2700 = vmatpush1.bf16.msra.mxu0 %v2250
        %2701 = vmatprep.subr.bf16.mxu0 0
        %2702 = vmatpush1.bf16.msra.mxu0 %v2251
        %2703 = vmatprep.subr.bf16.mxu0 0
        %2704 = vmatpush1.bf16.msra.mxu0 %v2252
        %2705 = vmatprep.subr.bf16.mxu0 0
        %2706 = vmatpush1.bf16.msra.mxu0 %v2253
        %2707 = vmatprep.subr.bf16.mxu0 0
        %2708 = vmatpush1.bf16.msra.mxu0 %v2254
        %2709 = vmatprep.subr.bf16.mxu0 0
        %2710 = vmatpush1.bf16.msra.mxu0 %v2255
        %2711 = vmatprep.subr.bf16.mxu0 0
        %2712 = vmatpush1.bf16.msra.mxu0 %v2256
        %2713 = vmatprep.subr.bf16.mxu0 0
        %2714 = vmatpush1.bf16.msra.mxu0 %v2257
        %2715 = vmatprep.subr.bf16.mxu0 0
        %2716 = vmatpush1.bf16.msra.mxu0 %v2258
        %2717 = vmatprep.subr.bf16.mxu0 0
        %2718 = vmatpush1.bf16.msra.mxu0 %v2259
        %2719 = vmatprep.subr.bf16.mxu0 0
        %2720 = vmatpush1.bf16.msra.mxu0 %v2260
        %2721 = vmatprep.subr.bf16.mxu0 0
        %2722 = vmatpush1.bf16.msra.mxu0 %v2261
        %2723 = vmatprep.subr.bf16.mxu0 0
        %2724 = vmatpush1.bf16.msra.mxu0 %v2262
        %2725 = vmatprep.subr.bf16.mxu0 0
        %2726 = vmatpush1.bf16.msra.mxu0 %v2263
        %2727 = vmatprep.subr.bf16.mxu0 0
        %2728 = vmatpush1.bf16.msra.mxu0 %v2264
        %2729 = vmatprep.mubr.bf16.mxu0 %v1191
        %2730 = vmatmul.mubr.bf16.gmra.mrb[0].mxu0 %v1177
        %v2731 = vpop.f32.mrb[0].mxu0
        %v2732 = vadd.f32 0.0, %v2731
        %v2733 = vpop.f32.mrb[0].mxu0
        %v2734 = vpop.f32.mrb[0].mxu0
        %v2735 = vpop.f32.mrb[0].mxu0
        %2736 = vdwg.mxu0
        %2737 = vmatprep.subr.bf16.mxu0 0
        %2738 = vmatpush1.bf16.msra.mxu0 %v2265
        %2739 = vmatprep.subr.bf16.mxu0 0
        %2740 = vmatpush1.bf16.msra.mxu0 %v2266
        %2741 = vmatprep.subr.bf16.mxu0 0
        %2742 = vmatpush1.bf16.msra.mxu0 %v2267
        %2743 = vmatprep.subr.bf16.mxu0 0
        %2744 = vmatpush1.bf16.msra.mxu0 %v2268
        %2745 = vmatprep.subr.bf16.mxu0 0
        %2746 = vmatpush1.bf16.msra.mxu0 %v2269
        %2747 = vmatprep.subr.bf16.mxu0 0
        %2748 = vmatpush1.bf16.msra.mxu0 %v2270
        %2749 = vmatprep.subr.bf16.mxu0 0
        %2750 = vmatpush1.bf16.msra.mxu0 %v2271
        %2751 = vmatprep.subr.bf16.mxu0 0
        %2752 = vmatpush1.bf16.msra.mxu0 %v2272
        %2753 = vmatprep.subr.bf16.mxu0 0
        %2754 = vmatpush1.bf16.msra.mxu0 %v2273
        %2755 = vmatprep.subr.bf16.mxu0 0
        %2756 = vmatpush1.bf16.msra.mxu0 %v2274
        %2757 = vmatprep.subr.bf16.mxu0 0
        %2758 = vmatpush1.bf16.msra.mxu0 %v2275
        %2759 = vmatprep.subr.bf16.mxu0 0
        %2760 = vmatpush1.bf16.msra.mxu0 %v2276
        %2761 = vmatprep.subr.bf16.mxu0 0
        %2762 = vmatpush1.bf16.msra.mxu0 %v2277
        %2763 = vmatprep.subr.bf16.mxu0 0
        %2764 = vmatpush1.bf16.msra.mxu0 %v2278
        %2765 = vmatprep.subr.bf16.mxu0 0
        %2766 = vmatpush1.bf16.msra.mxu0 %v2279
        %2767 = vmatprep.subr.bf16.mxu0 0
        %2768 = vmatpush1.bf16.msra.mxu0 %v2280
        %2769 = vmatprep.mubr.bf16.mxu0 %v1201
        %2770 = vmatmul.mubr.bf16.gmra.mrb[0].mxu0 %v1199
        %v2771 = vpop.f32.mrb[0].mxu0
        %v2772 = vadd.f32 %v2732, %v2771
        %v2773 = vpop.f32.mrb[0].mxu0
        %v2774 = vpop.f32.mrb[0].mxu0
        %v2775 = vpop.f32.mrb[0].mxu0
        %2776 = vdwg.mxu0
        %2777 = vmatprep.subr.bf16.mxu0 0
        %2778 = vmatpush1.bf16.msra.mxu0 %v2281
        %2779 = vmatprep.subr.bf16.mxu0 0
        %2780 = vmatpush1.bf16.msra.mxu0 %v2282
        %2781 = vmatprep.subr.bf16.mxu0 0
        %2782 = vmatpush1.bf16.msra.mxu0 %v2283
        %2783 = vmatprep.subr.bf16.mxu0 0
        %2784 = vmatpush1.bf16.msra.mxu0 %v2284
        %2785 = vmatprep.subr.bf16.mxu0 0
        %2786 = vmatpush1.bf16.msra.mxu0 %v2285
        %2787 = vmatprep.subr.bf16.mxu0 0
        %2788 = vmatpush1.bf16.msra.mxu0 %v2286
        %2789 = vmatprep.subr.bf16.mxu0 0
        %2790 = vmatpush1.bf16.msra.mxu0 %v2287
        %2791 = vmatprep.subr.bf16.mxu0 0
        %2792 = vmatpush1.bf16.msra.mxu0 %v2288
        %2793 = vmatprep.subr.bf16.mxu0 0
        %2794 = vmatpush1.bf16.msra.mxu0 %v2289
        %2795 = vmatprep.subr.bf16.mxu0 0
        %2796 = vmatpush1.bf16.msra.mxu0 %v2290
        %2797 = vmatprep.subr.bf16.mxu0 0
        %2798 = vmatpush1.bf16.msra.mxu0 %v2291
        %2799 = vmatprep.subr.bf16.mxu0 0
        %2800 = vmatpush1.bf16.msra.mxu0 %v2292
        %2801 = vmatprep.subr.bf16.mxu0 0
        %2802 = vmatpush1.bf16.msra.mxu0 %v2293
        %2803 = vmatprep.subr.bf16.mxu0 0
        %2804 = vmatpush1.bf16.msra.mxu0 %v2294
        %2805 = vmatprep.subr.bf16.mxu0 0
        %2806 = vmatpush1.bf16.msra.mxu0 %v2295
        %2807 = vmatprep.subr.bf16.mxu0 0
        %2808 = vmatpush1.bf16.msra.mxu0 %v2296
        %2809 = vmatprep.mubr.bf16.mxu0 %v1198
        %2810 = vmatmul.mubr.bf16.gmra.mrb[0].mxu0 %v1184
        %v2811 = vpop.f32.mrb[0].mxu0
        %v2812 = vadd.f32 %v2772, %v2811
        %v2813 = vpop.f32.mrb[0].mxu0
        %v2814 = vpop.f32.mrb[0].mxu0
        %v2815 = vpop.f32.mrb[0].mxu0
        %2816 = vdwg.mxu0
        %2817 = vmatprep.subr.bf16.mxu0 0
        %2818 = vmatpush1.bf16.msra.mxu0 %v2297
        %2819 = vmatprep.subr.bf16.mxu0 0
        %2820 = vmatpush1.bf16.msra.mxu0 %v2298
        %2821 = vmatprep.subr.bf16.mxu0 0
        %2822 = vmatpush1.bf16.msra.mxu0 %v2299
        %2823 = vmatprep.subr.bf16.mxu0 0
        %2824 = vmatpush1.bf16.msra.mxu0 %v2300
        %2825 = vmatprep.subr.bf16.mxu0 0
        %2826 = vmatpush1.bf16.msra.mxu0 %v2301
        %2827 = vmatprep.subr.bf16.mxu0 0
        %2828 = vmatpush1.bf16.msra.mxu0 %v2302
        %2829 = vmatprep.subr.bf16.mxu0 0
        %2830 = vmatpush1.bf16.msra.mxu0 %v2303
        %2831 = vmatprep.subr.bf16.mxu0 0
        %2832 = vmatpush1.bf16.msra.mxu0 %v2304
        %2833 = vmatprep.subr.bf16.mxu0 0
        %2834 = vmatpush1.bf16.msra.mxu0 %v2305
        %2835 = vmatprep.subr.bf16.mxu0 0
        %2836 = vmatpush1.bf16.msra.mxu0 %v2306
        %2837 = vmatprep.subr.bf16.mxu0 0
        %2838 = vmatpush1.bf16.msra.mxu0 %v2307
        %2839 = vmatprep.subr.bf16.mxu0 0
        %2840 = vmatpush1.bf16.msra.mxu0 %v2308
        %2841 = vmatprep.subr.bf16.mxu0 0
        %2842 = vmatpush1.bf16.msra.mxu0 %v2309
        %2843 = vmatprep.subr.bf16.mxu0 0
        %2844 = vmatpush1.bf16.msra.mxu0 %v2310
        %2845 = vmatprep.subr.bf16.mxu0 0
        %2846 = vmatpush1.bf16.msra.mxu0 %v2311
        %2847 = vmatprep.subr.bf16.mxu0 0
        %2848 = vmatpush1.bf16.msra.mxu0 %v2312
        %2849 = vmatprep.mubr.bf16.mxu0 %v1202
        %2850 = vmatmul.mubr.bf16.gmra.mrb[0].mxu0 %v1200
        %v2851 = vpop.f32.mrb[0].mxu0
        %v2852 = vadd.f32 %v2812, %v2851
        %v2853 = vpop.f32.mrb[0].mxu0
        %v2854 = vpop.f32.mrb[0].mxu0
        %v2855 = vpop.f32.mrb[0].mxu0
        %2856 = vdwg.mxu0
        %2857 = vmatprep.subr.bf16.mxu0 0
        %2858 = vmatpush1.bf16.msra.mxu0 %v2313
        %2859 = vmatprep.subr.bf16.mxu0 0
        %2860 = vmatpush1.bf16.msra.mxu0 %v2314
        %2861 = vmatprep.subr.bf16.mxu0 0
        %2862 = vmatpush1.bf16.msra.mxu0 %v2315
        %2863 = vmatprep.subr.bf16.mxu0 0
        %2864 = vmatpush1.bf16.msra.mxu0 %v2316
        %2865 = vmatprep.subr.bf16.mxu0 0
        %2866 = vmatpush1.bf16.msra.mxu0 %v2317
        %2867 = vmatprep.subr.bf16.mxu0 0
        %2868 = vmatpush1.bf16.msra.mxu0 %v2318
        %2869 = vmatprep.subr.bf16.mxu0 0
        %2870 = vmatpush1.bf16.msra.mxu0 %v2319
        %2871 = vmatprep.subr.bf16.mxu0 0
        %2872 = vmatpush1.bf16.msra.mxu0 %v2320
        %2873 = vmatprep.subr.bf16.mxu0 0
        %2874 = vmatpush1.bf16.msra.mxu0 %v2321
        %2875 = vmatprep.subr.bf16.mxu0 0
        %2876 = vmatpush1.bf16.msra.mxu0 %v2322
        %2877 = vmatprep.subr.bf16.mxu0 0
        %2878 = vmatpush1.bf16.msra.mxu0 %v2323
        %2879 = vmatprep.subr.bf16.mxu0 0
        %2880 = vmatpush1.bf16.msra.mxu0 %v2324
        %2881 = vmatprep.subr.bf16.mxu0 0
        %2882 = vmatpush1.bf16.msra.mxu0 %v2325
        %2883 = vmatprep.subr.bf16.mxu0 0
        %2884 = vmatpush1.bf16.msra.mxu0 %v2326
        %2885 = vmatprep.subr.bf16.mxu0 0
        %2886 = vmatpush1.bf16.msra.mxu0 %v2327
        %2887 = vmatprep.subr.bf16.mxu0 0
        %2888 = vmatpush1.bf16.msra.mxu0 %v2328
        %2889 = vmatprep.mubr.bf16.mxu0 %v1240
        %2890 = vmatmul.mubr.bf16.gmra.mrb[0].mxu0 %v1226
        %v2891 = vpop.f32.mrb[0].mxu0
        %v2892 = vadd.f32 %v2852, %v2891
        %v2893 = vpop.f32.mrb[0].mxu0
        %v2894 = vpop.f32.mrb[0].mxu0
        %v2895 = vpop.f32.mrb[0].mxu0
        %2896 = vdwg.mxu0
        %2897 = vmatprep.subr.bf16.mxu0 0
        %2898 = vmatpush1.bf16.msra.mxu0 %v2329
        %2899 = vmatprep.subr.bf16.mxu0 0
        %2900 = vmatpush1.bf16.msra.mxu0 %v2330
        %2901 = vmatprep.subr.bf16.mxu0 0
        %2902 = vmatpush1.bf16.msra.mxu0 %v2331
        %2903 = vmatprep.subr.bf16.mxu0 0
        %2904 = vmatpush1.bf16.msra.mxu0 %v2332
        %2905 = vmatprep.subr.bf16.mxu0 0
        %2906 = vmatpush1.bf16.msra.mxu0 %v2333
        %2907 = vmatprep.subr.bf16.mxu0 0
        %2908 = vmatpush1.bf16.msra.mxu0 %v2334
        %2909 = vmatprep.subr.bf16.mxu0 0
        %2910 = vmatpush1.bf16.msra.mxu0 %v2335
        %2911 = vmatprep.subr.bf16.mxu0 0
        %2912 = vmatpush1.bf16.msra.mxu0 %v2336
        %2913 = vmatprep.subr.bf16.mxu0 0
        %2914 = vmatpush1.bf16.msra.mxu0 %v2337
        %2915 = vmatprep.subr.bf16.mxu0 0
        %2916 = vmatpush1.bf16.msra.mxu0 %v2338
        %2917 = vmatprep.subr.bf16.mxu0 0
        %2918 = vmatpush1.bf16.msra.mxu0 %v2339
        %2919 = vmatprep.subr.bf16.mxu0 0
        %2920 = vmatpush1.bf16.msra.mxu0 %v2340
        %2921 = vmatprep.subr.bf16.mxu0 0
        %2922 = vmatpush1.bf16.msra.mxu0 %v2341
        %2923 = vmatprep.subr.bf16.mxu0 0
        %2924 = vmatpush1.bf16.msra.mxu0 %v2342
        %2925 = vmatprep.subr.bf16.mxu0 0
        %2926 = vmatpush1.bf16.msra.mxu0 %v2343
        %2927 = vmatprep.subr.bf16.mxu0 0
        %2928 = vmatpush1.bf16.msra.mxu0 %v2344
        %2929 = vmatprep.mubr.bf16.mxu0 %v1250
        %2930 = vmatmul.mubr.bf16.gmra.mrb[0].mxu0 %v1248
        %v2931 = vpop.f32.mrb[0].mxu0
        %v2932 = vadd.f32 %v2892, %v2931
        %v2933 = vpop.f32.mrb[0].mxu0
        %v2934 = vpop.f32.mrb[0].mxu0
        %v2935 = vpop.f32.mrb[0].mxu0
        %2936 = vdwg.mxu0
        %2937 = vmatprep.subr.bf16.mxu0 0
        %2938 = vmatpush1.bf16.msra.mxu0 %v2345
        %2939 = vmatprep.subr.bf16.mxu0 0
        %2940 = vmatpush1.bf16.msra.mxu0 %v2346
        %2941 = vmatprep.subr.bf16.mxu0 0
        %2942 = vmatpush1.bf16.msra.mxu0 %v2347
        %2943 = vmatprep.subr.bf16.mxu0 0
        %2944 = vmatpush1.bf16.msra.mxu0 %v2348
        %2945 = vmatprep.subr.bf16.mxu0 0
        %2946 = vmatpush1.bf16.msra.mxu0 %v2349
        %2947 = vmatprep.subr.bf16.mxu0 0
        %2948 = vmatpush1.bf16.msra.mxu0 %v2350
        %2949 = vmatprep.subr.bf16.mxu0 0
        %2950 = vmatpush1.bf16.msra.mxu0 %v2351
        %2951 = vmatprep.subr.bf16.mxu0 0
        %2952 = vmatpush1.bf16.msra.mxu0 %v2352
        %2953 = vmatprep.subr.bf16.mxu0 0
        %2954 = vmatpush1.bf16.msra.mxu0 %v2353
        %2955 = vmatprep.subr.bf16.mxu0 0
        %2956 = vmatpush1.bf16.msra.mxu0 %v2354
        %2957 = vmatprep.subr.bf16.mxu0 0
        %2958 = vmatpush1.bf16.msra.mxu0 %v2355
        %2959 = vmatprep.subr.bf16.mxu0 0
        %2960 = vmatpush1.bf16.msra.mxu0 %v2356
        %2961 = vmatprep.subr.bf16.mxu0 0
        %2962 = vmatpush1.bf16.msra.mxu0 %v2357
        %2963 = vmatprep.subr.bf16.mxu0 0
        %2964 = vmatpush1.bf16.msra.mxu0 %v2358
        %2965 = vmatprep.subr.bf16.mxu0 0
        %2966 = vmatpush1.bf16.msra.mxu0 %v2359
        %2967 = vmatprep.subr.bf16.mxu0 0
        %2968 = vmatpush1.bf16.msra.mxu0 %v2360
        %2969 = vmatprep.mubr.bf16.mxu0 %v1247
        %2970 = vmatmul.mubr.bf16.gmra.mrb[0].mxu0 %v1233
        %v2971 = vpop.f32.mrb[0].mxu0
        %v2972 = vadd.f32 %v2932, %v2971
        %v2973 = vpop.f32.mrb[0].mxu0
        %v2974 = vpop.f32.mrb[0].mxu0
        %v2975 = vpop.f32.mrb[0].mxu0
        %2976 = vdwg.mxu0
        %2977 = vmatprep.subr.bf16.mxu0 0
        %2978 = vmatpush1.bf16.msra.mxu0 %v2361
        %2979 = vmatprep.subr.bf16.mxu0 0
        %2980 = vmatpush1.bf16.msra.mxu0 %v2362
        %2981 = vmatprep.subr.bf16.mxu0 0
        %2982 = vmatpush1.bf16.msra.mxu0 %v2363
        %2983 = vmatprep.subr.bf16.mxu0 0
        %2984 = vmatpush1.bf16.msra.mxu0 %v2364
        %2985 = vmatprep.subr.bf16.mxu0 0
        %2986 = vmatpush1.bf16.msra.mxu0 %v2365
        %2987 = vmatprep.subr.bf16.mxu0 0
        %2988 = vmatpush1.bf16.msra.mxu0 %v2366
        %2989 = vmatprep.subr.bf16.mxu0 0
        %2990 = vmatpush1.bf16.msra.mxu0 %v2367
        %2991 = vmatprep.subr.bf16.mxu0 0
        %2992 = vmatpush1.bf16.msra.mxu0 %v2368
        %2993 = vmatprep.subr.bf16.mxu0 0
        %2994 = vmatpush1.bf16.msra.mxu0 %v2369
        %2995 = vmatprep.subr.bf16.mxu0 0
        %2996 = vmatpush1.bf16.msra.mxu0 %v2370
        %2997 = vmatprep.subr.bf16.mxu0 0
        %2998 = vmatpush1.bf16.msra.mxu0 %v2371
        %2999 = vmatprep.subr.bf16.mxu0 0
        %3000 = vmatpush1.bf16.msra.mxu0 %v2372
        %3001 = vmatprep.subr.bf16.mxu0 0
        %3002 = vmatpush1.bf16.msra.mxu0 %v2373
        %3003 = vmatprep.subr.bf16.mxu0 0
        %3004 = vmatpush1.bf16.msra.mxu0 %v2374
        %3005 = vmatprep.subr.bf16.mxu0 0
        %3006 = vmatpush1.bf16.msra.mxu0 %v2375
        %3007 = vmatprep.subr.bf16.mxu0 0
        %3008 = vmatpush1.bf16.msra.mxu0 %v2376
        %3009 = vmatprep.mubr.bf16.mxu0 %v1251
        %3010 = vmatmul.mubr.bf16.gmra.mrb[0].mxu0 %v1249
        %v3011 = vpop.f32.mrb[0].mxu0
        %v3012 = vadd.f32 %v2972, %v3011
        %v3013 = vpop.f32.mrb[0].mxu0
        %v3014 = vpop.f32.mrb[0].mxu0
        %v3015 = vpop.f32.mrb[0].mxu0
        %3016 = vdwg.mxu0
        %3017 = vmatprep.subr.bf16.mxu0 0
        %3018 = vmatpush1.bf16.msra.mxu0 %v2377
        %3019 = vmatprep.subr.bf16.mxu0 0
        %3020 = vmatpush1.bf16.msra.mxu0 %v2378
        %3021 = vmatprep.subr.bf16.mxu0 0
        %3022 = vmatpush1.bf16.msra.mxu0 %v2379
        %3023 = vmatprep.subr.bf16.mxu0 0
        %3024 = vmatpush1.bf16.msra.mxu0 %v2380
        %3025 = vmatprep.subr.bf16.mxu0 0
        %3026 = vmatpush1.bf16.msra.mxu0 %v2381
        %3027 = vmatprep.subr.bf16.mxu0 0
        %3028 = vmatpush1.bf16.msra.mxu0 %v2382
        %3029 = vmatprep.subr.bf16.mxu0 0
        %3030 = vmatpush1.bf16.msra.mxu0 %v2383
        %3031 = vmatprep.subr.bf16.mxu0 0
        %3032 = vmatpush1.bf16.msra.mxu0 %v2384
        %3033 = vmatprep.subr.bf16.mxu0 0
        %3034 = vmatpush1.bf16.msra.mxu0 %v2385
        %3035 = vmatprep.subr.bf16.mxu0 0
        %3036 = vmatpush1.bf16.msra.mxu0 %v2386
        %3037 = vmatprep.subr.bf16.mxu0 0
        %3038 = vmatpush1.bf16.msra.mxu0 %v2387
        %3039 = vmatprep.subr.bf16.mxu0 0
        %3040 = vmatpush1.bf16.msra.mxu0 %v2388
        %3041 = vmatprep.subr.bf16.mxu0 0
        %3042 = vmatpush1.bf16.msra.mxu0 %v2389
        %3043 = vmatprep.subr.bf16.mxu0 0
        %3044 = vmatpush1.bf16.msra.mxu0 %v2390
        %3045 = vmatprep.subr.bf16.mxu0 0
        %3046 = vmatpush1.bf16.msra.mxu0 %v2391
        %3047 = vmatprep.subr.bf16.mxu0 0
        %3048 = vmatpush1.bf16.msra.mxu0 %v2392
        %3049 = vmatprep.mubr.bf16.mxu0 %v1289
        %3050 = vmatmul.mubr.bf16.gmra.mrb[0].mxu0 %v1275
        %v3051 = vpop.f32.mrb[0].mxu0
        %v3052 = vadd.f32 %v3012, %v3051
        %v3053 = vpop.f32.mrb[0].mxu0
        %v3054 = vpop.f32.mrb[0].mxu0
        %v3055 = vpop.f32.mrb[0].mxu0
        %3056 = vdwg.mxu0
        %3057 = vmatprep.subr.bf16.mxu0 0
        %3058 = vmatpush1.bf16.msra.mxu0 %v2393
        %3059 = vmatprep.subr.bf16.mxu0 0
        %3060 = vmatpush1.bf16.msra.mxu0 %v2394
        %3061 = vmatprep.subr.bf16.mxu0 0
        %3062 = vmatpush1.bf16.msra.mxu0 %v2395
        %3063 = vmatprep.subr.bf16.mxu0 0
        %3064 = vmatpush1.bf16.msra.mxu0 %v2396
        %3065 = vmatprep.subr.bf16.mxu0 0
        %3066 = vmatpush1.bf16.msra.mxu0 %v2397
        %3067 = vmatprep.subr.bf16.mxu0 0
        %3068 = vmatpush1.bf16.msra.mxu0 %v2398
        %3069 = vmatprep.subr.bf16.mxu0 0
        %3070 = vmatpush1.bf16.msra.mxu0 %v2399
        %3071 = vmatprep.subr.bf16.mxu0 0
        %3072 = vmatpush1.bf16.msra.mxu0 %v2400
        %3073 = vmatprep.subr.bf16.mxu0 0
        %3074 = vmatpush1.bf16.msra.mxu0 %v2401
        %3075 = vmatprep.subr.bf16.mxu0 0
        %3076 = vmatpush1.bf16.msra.mxu0 %v2402
        %3077 = vmatprep.subr.bf16.mxu0 0
        %3078 = vmatpush1.bf16.msra.mxu0 %v2403
        %3079 = vmatprep.subr.bf16.mxu0 0
        %3080 = vmatpush1.bf16.msra.mxu0 %v2404
        %3081 = vmatprep.subr.bf16.mxu0 0
        %3082 = vmatpush1.bf16.msra.mxu0 %v2405
        %3083 = vmatprep.subr.bf16.mxu0 0
        %3084 = vmatpush1.bf16.msra.mxu0 %v2406
        %3085 = vmatprep.subr.bf16.mxu0 0
        %3086 = vmatpush1.bf16.msra.mxu0 %v2407
        %3087 = vmatprep.subr.bf16.mxu0 0
        %3088 = vmatpush1.bf16.msra.mxu0 %v2408
        %3089 = vmatprep.mubr.bf16.mxu0 %v1299
        %3090 = vmatmul.mubr.bf16.gmra.mrb[0].mxu0 %v1297
        %v3091 = vpop.f32.mrb[0].mxu0
        %v3092 = vadd.f32 %v3052, %v3091
        %v3093 = vpop.f32.mrb[0].mxu0
        %v3094 = vpop.f32.mrb[0].mxu0
        %v3095 = vpop.f32.mrb[0].mxu0
        %3096 = vdwg.mxu0
        %3097 = vmatprep.subr.bf16.mxu0 0
        %3098 = vmatpush1.bf16.msra.mxu0 %v2409
        %3099 = vmatprep.subr.bf16.mxu0 0
        %3100 = vmatpush1.bf16.msra.mxu0 %v2410
        %3101 = vmatprep.subr.bf16.mxu0 0
        %3102 = vmatpush1.bf16.msra.mxu0 %v2411
        %3103 = vmatprep.subr.bf16.mxu0 0
        %3104 = vmatpush1.bf16.msra.mxu0 %v2412
        %3105 = vmatprep.subr.bf16.mxu0 0
        %3106 = vmatpush1.bf16.msra.mxu0 %v2413
        %3107 = vmatprep.subr.bf16.mxu0 0
        %3108 = vmatpush1.bf16.msra.mxu0 %v2414
        %3109 = vmatprep.subr.bf16.mxu0 0
        %3110 = vmatpush1.bf16.msra.mxu0 %v2415
        %3111 = vmatprep.subr.bf16.mxu0 0
        %3112 = vmatpush1.bf16.msra.mxu0 %v2416
        %3113 = vmatprep.subr.bf16.mxu0 0
        %3114 = vmatpush1.bf16.msra.mxu0 %v2417
        %3115 = vmatprep.subr.bf16.mxu0 0
        %3116 = vmatpush1.bf16.msra.mxu0 %v2418
        %3117 = vmatprep.subr.bf16.mxu0 0
        %3118 = vmatpush1.bf16.msra.mxu0 %v2419
        %3119 = vmatprep.subr.bf16.mxu0 0
        %3120 = vmatpush1.bf16.msra.mxu0 %v2420
        %3121 = vmatprep.subr.bf16.mxu0 0
        %3122 = vmatpush1.bf16.msra.mxu0 %v2421
        %3123 = vmatprep.subr.bf16.mxu0 0
        %3124 = vmatpush1.bf16.msra.mxu0 %v2422
        %3125 = vmatprep.subr.bf16.mxu0 0
        %3126 = vmatpush1.bf16.msra.mxu0 %v2423
        %3127 = vmatprep.subr.bf16.mxu0 0
        %3128 = vmatpush1.bf16.msra.mxu0 %v2424
        %3129 = vmatprep.mubr.bf16.mxu0 %v1296
        %3130 = vmatmul.mubr.bf16.gmra.mrb[0].mxu0 %v1282
        %v3131 = vpop.f32.mrb[0].mxu0
        %v3132 = vadd.f32 %v3092, %v3131
        %v3133 = vpop.f32.mrb[0].mxu0
        %v3134 = vpop.f32.mrb[0].mxu0
        %v3135 = vpop.f32.mrb[0].mxu0
        %3136 = vdwg.mxu0
        %3137 = vmatprep.subr.bf16.mxu0 0
        %3138 = vmatpush1.bf16.msra.mxu0 %v2425
        %3139 = vmatprep.subr.bf16.mxu0 0
        %3140 = vmatpush1.bf16.msra.mxu0 %v2426
        %3141 = vmatprep.subr.bf16.mxu0 0
        %3142 = vmatpush1.bf16.msra.mxu0 %v2427
        %3143 = vmatprep.subr.bf16.mxu0 0
        %3144 = vmatpush1.bf16.msra.mxu0 %v2428
        %3145 = vmatprep.subr.bf16.mxu0 0
        %3146 = vmatpush1.bf16.msra.mxu0 %v2429
        %3147 = vmatprep.subr.bf16.mxu0 0
        %3148 = vmatpush1.bf16.msra.mxu0 %v2430
        %3149 = vmatprep.subr.bf16.mxu0 0
        %3150 = vmatpush1.bf16.msra.mxu0 %v2431
        %3151 = vmatprep.subr.bf16.mxu0 0
        %3152 = vmatpush1.bf16.msra.mxu0 %v2432
        %3153 = vmatprep.subr.bf16.mxu0 0
        %3154 = vmatpush1.bf16.msra.mxu0 %v2433
        %3155 = vmatprep.subr.bf16.mxu0 0
        %3156 = vmatpush1.bf16.msra.mxu0 %v2434
        %3157 = vmatprep.subr.bf16.mxu0 0
        %3158 = vmatpush1.bf16.msra.mxu0 %v2435
        %3159 = vmatprep.subr.bf16.mxu0 0
        %3160 = vmatpush1.bf16.msra.mxu0 %v2436
        %3161 = vmatprep.subr.bf16.mxu0 0
        %3162 = vmatpush1.bf16.msra.mxu0 %v2437
        %3163 = vmatprep.subr.bf16.mxu0 0
        %3164 = vmatpush1.bf16.msra.mxu0 %v2438
        %3165 = vmatprep.subr.bf16.mxu0 0
        %3166 = vmatpush1.bf16.msra.mxu0 %v2439
        %3167 = vmatprep.subr.bf16.mxu0 0
        %3168 = vmatpush1.bf16.msra.mxu0 %v2440
        %3169 = vmatprep.mubr.bf16.mxu0 %v1300
        %3170 = vmatmul.mubr.bf16.gmra.mrb[0].mxu0 %v1298
        %v3171 = vpop.f32.mrb[0].mxu0
        %v3172 = vadd.f32 %v3132, %v3171
        %v3173 = vpop.f32.mrb[0].mxu0
        %v3174 = vpop.f32.mrb[0].mxu0
        %v3175 = vpop.f32.mrb[0].mxu0
        %3176 = vdwg.mxu0
        %3177 = vmatprep.subr.bf16.mxu0 0
        %3178 = vmatpush1.bf16.msra.mxu0 %v2441
        %3179 = vmatprep.subr.bf16.mxu0 0
        %3180 = vmatpush1.bf16.msra.mxu0 %v2442
        %3181 = vmatprep.subr.bf16.mxu0 0
        %3182 = vmatpush1.bf16.msra.mxu0 %v2443
        %3183 = vmatprep.subr.bf16.mxu0 0
        %3184 = vmatpush1.bf16.msra.mxu0 %v2444
        %3185 = vmatprep.subr.bf16.mxu0 0
        %3186 = vmatpush1.bf16.msra.mxu0 %v2445
        %3187 = vmatprep.subr.bf16.mxu0 0
        %3188 = vmatpush1.bf16.msra.mxu0 %v2446
        %3189 = vmatprep.subr.bf16.mxu0 0
        %3190 = vmatpush1.bf16.msra.mxu0 %v2447
        %3191 = vmatprep.subr.bf16.mxu0 0
        %3192 = vmatpush1.bf16.msra.mxu0 %v2448
        %3193 = vmatprep.subr.bf16.mxu0 0
        %3194 = vmatpush1.bf16.msra.mxu0 %v2449
        %3195 = vmatprep.subr.bf16.mxu0 0
        %3196 = vmatpush1.bf16.msra.mxu0 %v2450
        %3197 = vmatprep.subr.bf16.mxu0 0
        %3198 = vmatpush1.bf16.msra.mxu0 %v2451
        %3199 = vmatprep.subr.bf16.mxu0 0
        %3200 = vmatpush1.bf16.msra.mxu0 %v2452
        %3201 = vmatprep.subr.bf16.mxu0 0
        %3202 = vmatpush1.bf16.msra.mxu0 %v2453
        %3203 = vmatprep.subr.bf16.mxu0 0
        %3204 = vmatpush1.bf16.msra.mxu0 %v2454
        %3205 = vmatprep.subr.bf16.mxu0 0
        %3206 = vmatpush1.bf16.msra.mxu0 %v2455
        %3207 = vmatprep.subr.bf16.mxu0 0
        %3208 = vmatpush1.bf16.msra.mxu0 %v2456
        %3209 = vmatprep.mubr.bf16.mxu0 %v1322
        %3210 = vmatmul.mubr.bf16.gmra.mrb[0].mxu0 %v1315
        %v3211 = vpop.f32.mrb[0].mxu0
        %v3212 = vadd.f32 %v3172, %v3211
        %v3213 = vpop.f32.mrb[0].mxu0
        %v3214 = vpop.f32.mrb[0].mxu0
        %v3215 = vpop.f32.mrb[0].mxu0
        %3216 = vdwg.mxu0
        %3217 = vmatprep.subr.bf16.mxu0 0
        %3218 = vmatpush1.bf16.msra.mxu0 %v2457
        %3219 = vmatprep.subr.bf16.mxu0 0
        %3220 = vmatpush1.bf16.msra.mxu0 %v2458
        %3221 = vmatprep.subr.bf16.mxu0 0
        %3222 = vmatpush1.bf16.msra.mxu0 %v2459
        %3223 = vmatprep.subr.bf16.mxu0 0
        %3224 = vmatpush1.bf16.msra.mxu0 %v2460
        %3225 = vmatprep.subr.bf16.mxu0 0
        %3226 = vmatpush1.bf16.msra.mxu0 %v2461
        %3227 = vmatprep.subr.bf16.mxu0 0
        %3228 = vmatpush1.bf16.msra.mxu0 %v2462
        %3229 = vmatprep.subr.bf16.mxu0 0
        %3230 = vmatpush1.bf16.msra.mxu0 %v2463
        %3231 = vmatprep.subr.bf16.mxu0 0
        %3232 = vmatpush1.bf16.msra.mxu0 %v2464
        %3233 = vmatprep.subr.bf16.mxu0 0
        %3234 = vmatpush1.bf16.msra.mxu0 %v2465
        %3235 = vmatprep.subr.bf16.mxu0 0
        %3236 = vmatpush1.bf16.msra.mxu0 %v2466
        %3237 = vmatprep.subr.bf16.mxu0 0
        %3238 = vmatpush1.bf16.msra.mxu0 %v2467
        %3239 = vmatprep.subr.bf16.mxu0 0
        %3240 = vmatpush1.bf16.msra.mxu0 %v2468
        %3241 = vmatprep.subr.bf16.mxu0 0
        %3242 = vmatpush1.bf16.msra.mxu0 %v2469
        %3243 = vmatprep.subr.bf16.mxu0 0
        %3244 = vmatpush1.bf16.msra.mxu0 %v2470
        %3245 = vmatprep.subr.bf16.mxu0 0
        %3246 = vmatpush1.bf16.msra.mxu0 %v2471
        %3247 = vmatprep.subr.bf16.mxu0 0
        %3248 = vmatpush1.bf16.msra.mxu0 %v2472
        %3249 = vmatprep.mubr.bf16.mxu0 %v1324
        %3250 = vmatmul.mubr.bf16.gmra.mrb[0].mxu0 %v1323
        %v3251 = vpop.f32.mrb[0].mxu0
        %v3252 = vadd.f32 %v3212, %v3251
        %v3253 = vpop.f32.mrb[0].mxu0
        %v3254 = vpop.f32.mrb[0].mxu0
        %v3255 = vpop.f32.mrb[0].mxu0
        %3256 = vdwg.mxu0
        %v3257 = vadd.f32 %v697, %v3252
        %vm3258 = vcmask 254976
        %3259 = vst.msk [vmem:[#allocation2] sm:$0x3] %vm3258, %v3257
        %p3260 = scmp.eq.s32.totalorder %s30, 6
        // Predicated region
        $region89: #{tpu_custom_call.1} parent=51 // pred_check
          %p3261 = pneg %p3260
        $region90: #{tpu_custom_call.1} parent=51 // pred_check_branch
          %3263 = sbr.rel (%p3261) target = $region92
        $region91: #{tpu_custom_call.1} parent=51 // pred_region
          %v3264 = vld [vmem:[#allocation2] sm:$0x3]
          %v3265 = vld [vmem:[#allocation12] sm:$0x1]
          %v3267 = vlaneseq
          %v3268 = vshrl.u32 %v3267, 7
          %v3269 = vsub.s32 0, %v3268
          %v3270 = vrot.slane %v3265, %v3269
          %v3272 = vadd.f32 %v3264, %v3270
          %v3273 = vld [vmem:[#allocation14] sm:$0xff]
          %v3274 = vld [vmem:[#allocation14 + $0x8] sm:$0xff]
          %v3275 = vld [vmem:[#allocation14 + $0x10] sm:$0xff]
          %v3276 = vld [vmem:[#allocation14 + $0x18] sm:$0xff]
          %v3277 = vld [vmem:[#allocation14 + $0x20] sm:$0xff]
          %v3278 = vld [vmem:[#allocation14 + $0x28] sm:$0xff]
          %v3279 = vld [vmem:[#allocation14 + $0x30] sm:$0xff]
          %v3280 = vld [vmem:[#allocation14 + $0x38] sm:$0xff]
          %v3281 = vld [vmem:[#allocation14 + $0x40] sm:$0xff]
          %v3282 = vld [vmem:[#allocation14 + $0x48] sm:$0xff]
          %v3283 = vld [vmem:[#allocation14 + $0x50] sm:$0xff]
          %v3284 = vld [vmem:[#allocation14 + $0x58] sm:$0xff]
          %v3285 = vld [vmem:[#allocation15] sm:$0x7]
          %v3287 = vlaneseq
          %v3288 = vshrl.u32 %v3287, 7
          %v3289 = vsub.s32 0, %v3288
          %v3290 = vrot.slane %v3285, %v3289
          %v3291 = vlaneseq
          %v3292 = vshrl.u32 %v3291, 7
          %v3293 = vsub.s32 1, %v3292
          %v3294 = vrot.slane %v3285, %v3293
          %v3295 = vlaneseq
          %v3296 = vshrl.u32 %v3295, 7
          %v3297 = vsub.s32 2, %v3296
          %v3298 = vrot.slane %v3285, %v3297
          %vm3302 = vcmask 261120
          %v3304 = vsel %vm3302, %v3272, 0
          %3306 = vmatprep.subr.mxu0 %v3274
          %3307 = vmatpush1.msra.mxu0 %v3273
          %3308 = vmatprep.subr.mxu0 %v3277
          %3309 = vmatpush1.msra.mxu0 %v3276
          %3310 = vmatprep.subr.mxu0 %v3280
          %3311 = vmatpush1.msra.mxu0 %v3279
          %3312 = vmatprep.subr.mxu0 %v3283
          %3313 = vmatpush1.msra.mxu0 %v3282
          %3314 = vmatprep.subr.mxu0 0.0
          %3315 = vmatpush1.msra.mxu0 0.0
          %3316 = vmatprep.subr.mxu0 0.0
          %3317 = vmatpush1.msra.mxu0 0.0
          %3318 = vmatprep.subr.mxu0 0.0
          %3319 = vmatpush1.msra.mxu0 0.0
          %3320 = vmatprep.subr.mxu0 0.0
          %3321 = vmatpush1.msra.mxu0 0.0
          %3322 = vmatprep.subr.mxu0 0.0
          %3323 = vmatpush1.msra.mxu0 0.0
          %3324 = vmatprep.subr.mxu0 0.0
          %3325 = vmatpush1.msra.mxu0 0.0
          %3326 = vmatprep.subr.mxu0 0.0
          %3327 = vmatpush1.msra.mxu0 0.0
          %3328 = vmatprep.subr.mxu0 0.0
          %3329 = vmatpush1.msra.mxu0 0.0
          %3330 = vmatprep.subr.mxu0 0.0
          %3331 = vmatpush1.msra.mxu0 0.0
          %3332 = vmatprep.subr.mxu0 0.0
          %3333 = vmatpush1.msra.mxu0 0.0
          %3334 = vmatprep.subr.mxu0 0.0
          %3335 = vmatpush1.msra.mxu0 0.0
          %3336 = vmatprep.subr.mxu0 0.0
          %3337 = vmatpush1.msra.mxu0 0.0
          %3338 = vmatprep.subr.mxu0 0.0
          %3339 = vmatpush1.msra.mxu0 0.0
          %3340 = vmatprep.subr.mxu0 0.0
          %3341 = vmatpush1.msra.mxu0 0.0
          %3342 = vmatprep.subr.mxu0 0.0
          %3343 = vmatpush1.msra.mxu0 0.0
          %3344 = vmatprep.subr.mxu0 0.0
          %3345 = vmatpush1.msra.mxu0 0.0
          %3346 = vmatprep.subr.mxu0 0.0
          %3347 = vmatpush1.msra.mxu0 0.0
          %3348 = vmatprep.subr.mxu0 0.0
          %3349 = vmatpush1.msra.mxu0 0.0
          %3350 = vmatprep.subr.mxu0 0.0
          %3351 = vmatpush1.msra.mxu0 0.0
          %3352 = vmatprep.subr.mxu0 0.0
          %3353 = vmatpush1.msra.mxu0 0.0
          %3354 = vmatprep.subr.mxu0 0.0
          %3355 = vmatpush1.msra.mxu0 0.0
          %3356 = vmatprep.subr.mxu0 0.0
          %3357 = vmatpush1.msra.mxu0 0.0
          %3358 = vmatprep.subr.mxu0 0.0
          %3359 = vmatpush1.msra.mxu0 0.0
          %3360 = vmatprep.subr.mxu0 0.0
          %3361 = vmatpush1.msra.mxu0 0.0
          %3362 = vmatprep.subr.mxu0 0.0
          %3363 = vmatpush1.msra.mxu0 0.0
          %3364 = vmatprep.subr.mxu0 0.0
          %3365 = vmatpush1.msra.mxu0 0.0
          %3366 = vmatprep.subr.mxu0 0.0
          %3367 = vmatpush1.msra.mxu0 0.0
          %3368 = vmatprep.subr.mxu0 0.0
          %3369 = vmatpush1.msra.mxu0 0.0
          %3370 = vmatprep.mubr.f32.mxu0 0.0
          %3371 = vmatmul.mubr.f32.gmra.mrb[0].mxu0 %v3304
          %v3372 = vpop.f32.mrb[0].mxu0
          %v3373 = vadd.f32 %v3290, %v3372
          %v3374 = vpop.f32.mrb[0].mxu0
          %v3375 = vadd.f32 %v3294, %v3374
          %3376 = vdwg.mxu0
          %3377 = vmatprep.subr.mxu0 0.0
          %3378 = vmatpush1.msra.mxu0 %v3275
          %3379 = vmatprep.subr.mxu0 0.0
          %3380 = vmatpush1.msra.mxu0 %v3278
          %3381 = vmatprep.subr.mxu0 0.0
          %3382 = vmatpush1.msra.mxu0 %v3281
          %3383 = vmatprep.subr.mxu0 0.0
          %3384 = vmatpush1.msra.mxu0 %v3284
          %3385 = vmatprep.subr.mxu0 0.0
          %3386 = vmatpush1.msra.mxu0 0.0
          %3387 = vmatprep.subr.mxu0 0.0
          %3388 = vmatpush1.msra.mxu0 0.0
          %3389 = vmatprep.subr.mxu0 0.0
          %3390 = vmatpush1.msra.mxu0 0.0
          %3391 = vmatprep.subr.mxu0 0.0
          %3392 = vmatpush1.msra.mxu0 0.0
          %3393 = vmatprep.subr.mxu0 0.0
          %3394 = vmatpush1.msra.mxu0 0.0
          %3395 = vmatprep.subr.mxu0 0.0
          %3396 = vmatpush1.msra.mxu0 0.0
          %3397 = vmatprep.subr.mxu0 0.0
          %3398 = vmatpush1.msra.mxu0 0.0
          %3399 = vmatprep.subr.mxu0 0.0
          %3400 = vmatpush1.msra.mxu0 0.0
          %3401 = vmatprep.subr.mxu0 0.0
          %3402 = vmatpush1.msra.mxu0 0.0
          %3403 = vmatprep.subr.mxu0 0.0
          %3404 = vmatpush1.msra.mxu0 0.0
          %3405 = vmatprep.subr.mxu0 0.0
          %3406 = vmatpush1.msra.mxu0 0.0
          %3407 = vmatprep.subr.mxu0 0.0
          %3408 = vmatpush1.msra.mxu0 0.0
          %3409 = vmatprep.subr.mxu0 0.0
          %3410 = vmatpush1.msra.mxu0 0.0
          %3411 = vmatprep.subr.mxu0 0.0
          %3412 = vmatpush1.msra.mxu0 0.0
          %3413 = vmatprep.subr.mxu0 0.0
          %3414 = vmatpush1.msra.mxu0 0.0
          %3415 = vmatprep.subr.mxu0 0.0
          %3416 = vmatpush1.msra.mxu0 0.0
          %3417 = vmatprep.subr.mxu0 0.0
          %3418 = vmatpush1.msra.mxu0 0.0
          %3419 = vmatprep.subr.mxu0 0.0
          %3420 = vmatpush1.msra.mxu0 0.0
          %3421 = vmatprep.subr.mxu0 0.0
          %3422 = vmatpush1.msra.mxu0 0.0
          %3423 = vmatprep.subr.mxu0 0.0
          %3424 = vmatpush1.msra.mxu0 0.0
          %3425 = vmatprep.subr.mxu0 0.0
          %3426 = vmatpush1.msra.mxu0 0.0
          %3427 = vmatprep.subr.mxu0 0.0
          %3428 = vmatpush1.msra.mxu0 0.0
          %3429 = vmatprep.subr.mxu0 0.0
          %3430 = vmatpush1.msra.mxu0 0.0
          %3431 = vmatprep.subr.mxu0 0.0
          %3432 = vmatpush1.msra.mxu0 0.0
          %3433 = vmatprep.subr.mxu0 0.0
          %3434 = vmatpush1.msra.mxu0 0.0
          %3435 = vmatprep.subr.mxu0 0.0
          %3436 = vmatpush1.msra.mxu0 0.0
          %3437 = vmatprep.subr.mxu0 0.0
          %3438 = vmatpush1.msra.mxu0 0.0
          %3439 = vmatprep.subr.mxu0 0.0
          %3440 = vmatpush1.msra.mxu0 0.0
          %3441 = vmatprep.mubr.f32.mxu0 0.0
          %3442 = vmatmul.mubr.f32.gmra.mrb[0].mxu0 %v3304
          %v3443 = vpop.f32.mrb[0].mxu0
          %v3444 = vadd.f32 %v3298, %v3443
          %v3445 = vpop.f32.mrb[0].mxu0
          %3446 = vdwg.mxu0
          %v3450 = vcombine.low %v3373, %v3375
          %v3452 = vunpack.c.l.s4 1983009808
          %v3453 = vunpack.c.0.s8 %v3452
          %v3454 = vlaneseq
          %v3455 = vshrl.u32 %v3454, 7
          %v3456 = vsub.s32 %v3453, %v3455
          %v3457 = vrot.slane %v3450, %v3456
          %v3459 = vunpack.c.l.s4 1983009808
          %v3460 = vunpack.c.0.s8 %v3459
          %v3461 = vlaneseq
          %v3462 = vshrl.u32 %v3461, 7
          %v3463 = vsub.s32 %v3460, %v3462
          %v3464 = vrot.slane %v3444, %v3463
          %v3465 = vcombine.low %v3457, %v3464
          %3467 = vst [vmem:[#allocation18] sm:$0x3f] %v3465
        $region92: #{tpu_custom_call.1} parent=51 // pred_fallthru
          _
        // Predicated region
        $region93: #{tpu_custom_call.1} parent=51 // pred_check
          %p3468 = pneg %p221
        $region94: #{tpu_custom_call.1} parent=51 // pred_check_branch
          %3470 = sbr.rel (%p3468) target = $region96
        $region95: #{tpu_custom_call.1} parent=51 // pred_region
          %s3472 = ssub.s32 32, 32
          %3473 = vsyncadd [#allocation5], %s3472
          %s3475 = sshll.u32 [#allocation17], 4
          %s3476 = int_to_ptr.vmem [resolvable:$true] %s3475
          %3478 = dma.vmem_to_hbm [thread:$0]  %s3476, 32, %s8, [#allocation5]
        $region96: #{tpu_custom_call.1} parent=51 // pred_fallthru
          _
        // Predicated region
        $region97: #{tpu_custom_call.1} parent=51 // pred_check
          %p3479 = pneg %p242
        $region98: #{tpu_custom_call.1} parent=51 // pred_check_branch
          %3481 = sbr.rel (%p3479) target = $region100
        $region99: #{tpu_custom_call.1} parent=51 // pred_region
          %s3483 = ssub.s32 96, 96
          %3484 = vsyncadd [#allocation19], %s3483
          %s3486 = sshll.u32 [#allocation18], 4
          %s3487 = int_to_ptr.vmem [resolvable:$true] %s3486
          %3489 = dma.vmem_to_hbm [thread:$0]  %s3487, 96, %s9, [#allocation19]
        $region100: #{tpu_custom_call.1} parent=51 // pred_fallthru
          _
        // Predicated region
        $region101: #{tpu_custom_call.1} parent=51 // pred_check
          %p3490 = pneg %p221
        $region102: #{tpu_custom_call.1} parent=51 // pred_check_branch
          %3492 = sbr.rel (%p3490) target = $region104
        $region103: #{tpu_custom_call.1} parent=51 // pred_region
          %3493 = dma.done [#allocation5], 32
        $region104: #{tpu_custom_call.1} parent=51 // pred_fallthru
          _
        // Predicated region
        $region105: #{tpu_custom_call.1} parent=51 // pred_check
          %p3494 = pneg %p242
        $region106: #{tpu_custom_call.1} parent=51 // pred_check_branch
          %3496 = sbr.rel (%p3494) target = $region108
        $region107: #{tpu_custom_call.1} parent=51 // pred_region
          %3497 = dma.done [#allocation19], 96
        $region108: #{tpu_custom_call.1} parent=51 // pred_fallthru
          _
      $region52: #{tpu_custom_call.1} parent=5 // pred_fallthru
        _
      %p3498 = scmp.le.s32.totalorder 2, %s25
      // Predicated region
      $region109: #{tpu_custom_call.1} parent=5 // pred_check
        %p3499 = pneg %p3498
      $region110: #{tpu_custom_call.1} parent=5 // pred_check_branch
        %3501 = sbr.rel (%p3499) target = $region112
      $region111: #{tpu_custom_call.1} parent=5 // pred_region
        %s3502 = ssub.s32 %s25, 2
      $region112: #{tpu_custom_call.1} parent=5 // pred_fallthru
        _
    $region6: #{tpu_custom_call.1} parent=1 // loop_footer
      %s29 = sadd.s32 1, %s25
    $region7: #{tpu_custom_call.1} parent=1 // loop_footer_branch
      %24 = sbr.rel target = $region3
    $region8: #{tpu_custom_call.1} parent=1 // loop_exit
      _
    %3503 = vsyncpa [#allocation4], 1
    %s3504 = scalar_lea.sflag [#allocation4], 1
    %3505 = vsyncpa %s3504, 1
    %3506 = vsyncpa [#allocation7], 1
    %s3507 = scalar_lea.sflag [#allocation7], 1
    %3508 = vsyncpa %s3507, 1
    %3509 = vsyncpa [#allocation10], 1
    %3510 = vsyncpa [#allocation13], 1
    %3511 = vsyncpa [#allocation16], 1
    %3512 = vsyncpa [#allocation5], 1
    %s3513 = scalar_lea.sflag [#allocation5], 1
    %3514 = vsyncpa %s3513, 1
    %3515 = vsyncpa [#allocation19], 1

</llo_original>
